<compile_context>
chip_gen: v7x
topology: tpu7x:2x2x1
jax: 0.10.0
libtpu: 0.0.40
codegen_flags: <defaults>
</compile_context>

<pallas_src>
import functools

import numpy as np
import jax
import jax.numpy as jnp
from jax.experimental import pallas as pl
from jax.experimental.pallas import tpu as pltpu


SHIFTS = [(1, 0), (2, 0), (3, 0), (-1, 0), (-2, 0), (-3, 0),
          (0, -1), (0, -2), (0, -3), (0, 1), (0, 2), (0, 3)]
_DIST = np.array([i * i + j * j for i, j in SHIFTS], np.float32)
SHIFT_WEIGHTS = np.exp(-_DIST / (2.0 * np.float32(1.5) ** 2)).astype(np.float32)
_TAP_OFFSETS = [(a, b) for a in (-1, 0, 1) for b in (-1, 0, 1)]   # k = (a+1)*3+(b+1)


# --------------------------------------------------------------------------
# Kernel (single invocation: whole batch, batch folded into sublanes)
# --------------------------------------------------------------------------
def _resa_kernel(x_ref, wbd_ref, s1_ref, b1_ref, dwf_ref, b2_ref,
                 tapm_ref, wrap_ref, o_ref, *, W, shifts, coefs):
    # x_ref   : (NC, L)   batch*channels in sublanes, flat spatial (L=H*W) in lanes
    # wbd_ref : (NC, NC)  block-diagonal 1x1 conv weight (w1 kron I_N)
    # s1_ref  : (NC, 1)   folded BN(eval) scale for the 1x1 conv
    # b1_ref  : (NC, 1)   folded BN(eval) shift (incl. conv bias)
    # dwf_ref : (NC, 9)   depthwise 3x3 taps with refine-BN scale folded in
    # b2_ref  : (NC, 1)   folded refine-BN shift (incl. refine-conv bias)
    # tapm_ref: (9, L)    {0,1} masks implementing the zero padding per tap
    # wrap_ref: (12, L)   {0,1} masks fixing the per-row wrap of W-rolls
    # o_ref   : (NC, L)
    NC, L = x_ref.shape

    def roll_flat(a, k):
        # circular roll along the flattened-spatial lane axis:
        # result[:, f] = a[:, (f - k) mod L]   (== jnp.roll(a, k, axis=1))
        k = k % L
        if k == 0:
            return a
        return jnp.concatenate([a[:, L - k:], a[:, :L - k]], axis=1)

    x = x_ref[...]                                                    # (NC, L)

    # Shared 1x1 conv + folded eval-BN + ReLU.  Pointwise in space, so it
    # commutes with torch.roll -> hoisted out of the 12-shift loop and done
    # once for the whole batch via a block-diagonal MXU matmul.
    y = jnp.dot(wbd_ref[...], x, preferred_element_type=jnp.float32)  # (NC, L)
    y = jnp.maximum(y * s1_ref[...] + b1_ref[...], 0.0)

    # Per-tap effective coefficient plane: zero-pad mask (1,L) x (tap * BN
    # scale) (NC,1).  Computed once (hoisted) -> inner loop is mul + add only.
    comb = [dwf_ref[:, k:k + 1] * tapm_ref[k:k + 1, :] for k in range(9)]

    acc = jnp.zeros((NC, L), jnp.float32)
    for s, ((sh, sw), coef) in enumerate(zip(shifts, coefs)):
        # torch.roll(y, (sh, sw), dims=(H, W)) on the flat row-major layout:
        # the H-roll is an exact flat roll by sh*W; the W-roll needs a
        # per-row wrap fix blended in with a precomputed {0,1} mask.
        z = y
        if sh != 0:
            z = roll_flat(z, sh * W)
        if sw != 0:
            main = roll_flat(z, sw)
            fix = roll_flat(z, sw - W if sw > 0 else sw + W)
            m = wrap_ref[s:s + 1, :]                                  # (1, L)
            z = main + (fix - main) * m

        # Depthwise 3x3 refine conv (zero padding + BN scale folded into comb),
        # then folded refine-BN shift + ReLU, weighted accumulate.
        conv = z * comb[4]                                            # center tap
        for k, (a, b) in enumerate(_TAP_OFFSETS):
            if a == 0 and b == 0:
                continue
            conv = conv + roll_flat(z, -(a * W + b)) * comb[k]
        acc = acc + coef * jnp.maximum(conv + b2_ref[...], 0.0)

    o_ref[...] = (x + acc).astype(o_ref.dtype)


# --------------------------------------------------------------------------
# Wrapper
# --------------------------------------------------------------------------
def resa_forward(x, params, eps=1e-5):
    # x: (N, C, H, W) float32, NCHW exactly like the PyTorch module.
    N, C, H, W = x.shape
    L = H * W
    NC = N * C

    # Fold eval-mode BatchNorm (+ conv biases) into per-channel scale/shift.
    s1 = params['bn_gamma'] / jnp.sqrt(params['bn_var'] + eps)
    b1 = params['bn_beta'] + s1 * (params['conv_b'] - params['bn_mean'])
    s2 = params['rbn_gamma'] / jnp.sqrt(params['rbn_var'] + eps)
    b2 = params['rbn_beta'] + s2 * (params['refine_b'] - params['rbn_mean'])
    dwf = (params['refine_w'] * s2[:, None, None]).reshape(C, 9)

    # Batch folded into the sublane axis: tile per-channel params over N and
    # make the shared 1x1 conv block-diagonal (one MXU matmul for all images).
    w_bd = jnp.kron(jnp.eye(N, dtype=params['conv_w'].dtype), params['conv_w'])
    s1_t = jnp.tile(s1, N).reshape(NC, 1)
    b1_t = jnp.tile(b1, N).reshape(NC, 1)
    b2_t = jnp.tile(b2, N).reshape(NC, 1)
    dwf_t = jnp.tile(dwf, (N, 1))

    coefs = tuple(float(c) for c in (0.5 * SHIFT_WEIGHTS / SHIFT_WEIGHTS.sum()))

    # Host-precomputed static boundary masks (flattened-spatial coordinates).
    col = np.tile(np.arange(W, dtype=np.int64), H)
    row = np.repeat(np.arange(H, dtype=np.int64), W)
    tap_masks = np.ones((9, L), np.float32)
    for k, (a, b) in enumerate(_TAP_OFFSETS):
        m = np.ones(L, bool)
        if a == -1:
            m &= row >= 1
        if a == 1:
            m &= row <= H - 2
        if b == -1:
            m &= col >= 1
        if b == 1:
            m &= col <= W - 2
        tap_masks[k] = m
    wrap_masks = np.zeros((len(SHIFTS), L), np.float32)
    for s, (sh, sw) in enumerate(SHIFTS):
        if sw > 0:
            wrap_masks[s] = col < sw
        elif sw < 0:
            wrap_masks[s] = col >= W + sw

    kernel = functools.partial(_resa_kernel, W=W, shifts=SHIFTS, coefs=coefs)

    x_flat = x.reshape(NC, L)            # contiguous merges -> free reshape
    out_flat = pl.pallas_call(
        kernel,
        out_shape=jax.ShapeDtypeStruct((NC, L), x.dtype),
        grid=(1,),
        in_specs=[
            pl.BlockSpec((NC, L), lambda i: (0, 0)),
            pl.BlockSpec((NC, NC), lambda i: (0, 0)),
            pl.BlockSpec((NC, 1), lambda i: (0, 0)),
            pl.BlockSpec((NC, 1), lambda i: (0, 0)),
            pl.BlockSpec((NC, 9), lambda i: (0, 0)),
            pl.BlockSpec((NC, 1), lambda i: (0, 0)),
            pl.BlockSpec((9, L), lambda i: (0, 0)),
            pl.BlockSpec((len(SHIFTS), L), lambda i: (0, 0)),
        ],
        out_specs=pl.BlockSpec((NC, L), lambda i: (0, 0)),
        compiler_params=pltpu.CompilerParams(
            dimension_semantics=("arbitrary",)),
    )(x_flat, w_bd, s1_t, b1_t, dwf_t, b2_t,
      jnp.asarray(tap_masks), jnp.asarray(wrap_masks))
    return out_flat.reshape(N, C, H, W)


# --------------------------------------------------------------------------
# Plain-JAX reference (literal translation of the PyTorch forward, eval-BN)
# --------------------------------------------------------------------------
def resa_reference(x, params, eps=1e-5):
    N, C, H, W = x.shape
    w1 = params['conv_w'][:, :, None, None]             # (C, C, 1, 1) OIHW
    dw = params['refine_w'][:, None, :, :]              # (C, 1, 3, 3) OIHW, groups=C

    def bn(u, g, b, m, v):
        inv = g / jnp.sqrt(v + eps)
        return (u - m[None, :, None, None]) * inv[None, :, None, None] \
            + b[None, :, None, None]

    total = jnp.zeros_like(x)
    for (sh, sw), wgt in zip(SHIFTS, SHIFT_WEIGHTS):
        shifted = jnp.roll(x, (sh, sw), axis=(2, 3))
        c1 = jax.lax.conv_general_dilated(
            shifted, w1, (1, 1), 'VALID',
            dimension_numbers=('NCHW', 'OIHW', 'NCHW'),
            precision=jax.lax.Precision.HIGHEST)
        c1 = c1 + params['conv_b'][None, :, None, None]
        c1 = jnp.maximum(bn(c1, params['bn_gamma'], params['bn_beta'],
                            params['bn_mean'], params['bn_var']), 0.0)
        c2 = jax.lax.conv_general_dilated(
            c1, dw, (1, 1), ((1, 1), (1, 1)),
            feature_group_count=C,
            dimension_numbers=('NCHW', 'OIHW', 'NCHW'),
            precision=jax.lax.Precision.HIGHEST)
        c2 = c2 + params['refine_b'][None, :, None, None]
        c2 = jnp.maximum(bn(c2, params['rbn_gamma'], params['rbn_beta'],
                            params['rbn_mean'], params['rbn_var']), 0.0)
        total = total + float(wgt) * c2
    return x + 0.5 * total / float(SHIFT_WEIGHTS.sum())


# --------------------------------------------------------------------------
# Deterministic synthetic parameters
# --------------------------------------------------------------------------
def init_resa_params(key, C):
    ks = jax.random.split(key, 12)

    def u(k, shape, fan_in):
        b = 1.0 / np.sqrt(fan_in)
        return jax.random.uniform(k, shape, jnp.float32, -b, b)

    p = {}
    p['conv_w'] = u(ks[0], (C, C), C)              # 1x1 conv (out, in)
    p['conv_b'] = u(ks[1], (C,), C)
    p['bn_gamma'] = jax.random.uniform(ks[2], (C,), jnp.float32, 0.5, 1.5)
    p['bn_beta'] = 0.1 * jax.random.normal(ks[3], (C,), jnp.float32)
    p['bn_mean'] = 0.1 * jax.random.normal(ks[4], (C,), jnp.float32)
    p['bn_var'] = jax.random.uniform(ks[5], (C,), jnp.float32, 0.5, 1.5)
    p['refine_w'] = u(ks[6], (C, 3, 3), 9)          # depthwise 3x3 (per channel)
    p['refine_b'] = u(ks[7], (C,), 9)
    p['rbn_gamma'] = jax.random.uniform(ks[8], (C,), jnp.float32, 0.5, 1.5)
    p['rbn_beta'] = 0.1 * jax.random.normal(ks[9], (C,), jnp.float32)
    p['rbn_mean'] = 0.1 * jax.random.normal(ks[10], (C,), jnp.float32)
    p['rbn_var'] = jax.random.uniform(ks[11], (C,), jnp.float32, 0.5, 1.5)
    return p


if __name__ == "__main__":
    N, C, H, W = 2, 4, 16, 16

    key = jax.random.PRNGKey(0)
    kp, kx = jax.random.split(key)
    params = init_resa_params(kp, C)
    x = jax.random.normal(kx, (N, C, H, W), jnp.float32)   # NCHW, like PyTorch

    out = jax.jit(resa_forward)(x, params)
    out = jax.block_until_ready(out)

    assert out.shape == (N, C, H, W), out.shape
    assert bool(jnp.all(jnp.isfinite(out)))

    ref = jax.jit(resa_reference)(x, params)
    ref = jax.block_until_ready(ref)
    max_err = float(jnp.max(jnp.abs(out - ref)))
    assert bool(jnp.allclose(out, ref, atol=5e-3, rtol=5e-3)), max_err

    print("KERNEL_OK")
</pallas_src>

<mosaic_0001>
module attributes {stable_mosaic.version = 11 : i64} {
  func.func @_resa_kernel(%arg0: i32, %arg1: memref<8x256xf32, #tpu.memory_space<vmem>>, %arg2: memref<8x8xf32, #tpu.memory_space<vmem>>, %arg3: memref<8x1xf32, #tpu.memory_space<vmem>>, %arg4: memref<8x1xf32, #tpu.memory_space<vmem>>, %arg5: memref<8x9xf32, #tpu.memory_space<vmem>>, %arg6: memref<8x1xf32, #tpu.memory_space<vmem>>, %arg7: memref<9x256xf32, #tpu.memory_space<vmem>>, %arg8: memref<12x256xf32, #tpu.memory_space<vmem>>, %arg9: memref<8x256xf32, #tpu.memory_space<vmem>>) attributes {dimension_semantics = [#tpu.dimension_semantics<arbitrary>], iteration_bounds = array<i64: 1>, scalar_prefetch = 0 : i64, scratch_operands = 0 : i64, tpu.core_type = #tpu.core_type<tc>, window_params = [{pipeline_mode = #tpu.pipeline_mode<synchronous>, transform_indices = @transform_0, window_bounds = array<i64: 8, 256>}, {pipeline_mode = #tpu.pipeline_mode<synchronous>, transform_indices = @transform_1, window_bounds = array<i64: 8, 8>}, {pipeline_mode = #tpu.pipeline_mode<synchronous>, transform_indices = @transform_2, window_bounds = array<i64: 8, 1>}, {pipeline_mode = #tpu.pipeline_mode<synchronous>, transform_indices = @transform_3, window_bounds = array<i64: 8, 1>}, {pipeline_mode = #tpu.pipeline_mode<synchronous>, transform_indices = @transform_4, window_bounds = array<i64: 8, 9>}, {pipeline_mode = #tpu.pipeline_mode<synchronous>, transform_indices = @transform_5, window_bounds = array<i64: 8, 1>}, {pipeline_mode = #tpu.pipeline_mode<synchronous>, transform_indices = @transform_6, window_bounds = array<i64: 9, 256>}, {pipeline_mode = #tpu.pipeline_mode<synchronous>, transform_indices = @transform_7, window_bounds = array<i64: 12, 256>}, {pipeline_mode = #tpu.pipeline_mode<synchronous>, transform_indices = @transform_8, window_bounds = array<i64: 8, 256>}]} {
    %c0 = arith.constant 0 : index
    %c0_0 = arith.constant 0 : index
    %0 = vector.load %arg1[%c0, %c0_0] : memref<8x256xf32, #tpu.memory_space<vmem>>, vector<8x256xf32>
    %c0_1 = arith.constant 0 : index
    %c0_2 = arith.constant 0 : index
    %1 = vector.load %arg2[%c0_1, %c0_2] : memref<8x8xf32, #tpu.memory_space<vmem>>, vector<8x8xf32>
    %cst = arith.constant dense<0.000000e+00> : vector<8x256xf32>
    %2 = tpu.matmul %1, %0, %cst {dimension_numbers = #tpu.dot_dimension_numbers<[1], [0], [0], [1], [0, 0, 1, 1], [], []>} : vector<8x8xf32>, vector<8x256xf32>, vector<8x256xf32> -> vector<8x256xf32>
    %c0_3 = arith.constant 0 : index
    %c0_4 = arith.constant 0 : index
    %3 = vector.load %arg3[%c0_3, %c0_4] : memref<8x1xf32, #tpu.memory_space<vmem>>, vector<8x1xf32>
    %4 = vector.broadcast %3 : vector<8x1xf32> to vector<8x256xf32>
    %5 = arith.mulf %2, %4 : vector<8x256xf32>
    %c0_5 = arith.constant 0 : index
    %c0_6 = arith.constant 0 : index
    %6 = vector.load %arg4[%c0_5, %c0_6] : memref<8x1xf32, #tpu.memory_space<vmem>>, vector<8x1xf32>
    %7 = vector.broadcast %6 : vector<8x1xf32> to vector<8x256xf32>
    %8 = arith.addf %5, %7 : vector<8x256xf32>
    %cst_7 = arith.constant 0.000000e+00 : f32
    %9 = vector.broadcast %cst_7 : f32 to vector<8x256xf32>
    %10 = arith.maximumf %8, %9 : vector<8x256xf32>
    %c0_8 = arith.constant 0 : index
    %c0_9 = arith.constant 0 : index
    %11 = vector.load %arg5[%c0_8, %c0_9] : memref<8x9xf32, #tpu.memory_space<vmem>>, vector<8x1xf32>
    %c0_10 = arith.constant 0 : index
    %c0_11 = arith.constant 0 : index
    %12 = vector.load %arg7[%c0_10, %c0_11] : memref<9x256xf32, #tpu.memory_space<vmem>>, vector<1x256xf32>
    %13 = vector.broadcast %11 : vector<8x1xf32> to vector<8x256xf32>
    %14 = vector.broadcast %12 : vector<1x256xf32> to vector<8x256xf32>
    %15 = arith.mulf %13, %14 : vector<8x256xf32>
    %c0_12 = arith.constant 0 : index
    %c1 = arith.constant 1 : index
    %16 = vector.load %arg5[%c0_12, %c1] : memref<8x9xf32, #tpu.memory_space<vmem>>, vector<8x1xf32>
    %c1_13 = arith.constant 1 : index
    %c0_14 = arith.constant 0 : index
    %17 = vector.load %arg7[%c1_13, %c0_14] : memref<9x256xf32, #tpu.memory_space<vmem>>, vector<1x256xf32>
    %18 = vector.broadcast %16 : vector<8x1xf32> to vector<8x256xf32>
    %19 = vector.broadcast %17 : vector<1x256xf32> to vector<8x256xf32>
    %20 = arith.mulf %18, %19 : vector<8x256xf32>
    %c0_15 = arith.constant 0 : index
    %c2 = arith.constant 2 : index
    %21 = vector.load %arg5[%c0_15, %c2] : memref<8x9xf32, #tpu.memory_space<vmem>>, vector<8x1xf32>
    %c2_16 = arith.constant 2 : index
    %c0_17 = arith.constant 0 : index
    %22 = vector.load %arg7[%c2_16, %c0_17] : memref<9x256xf32, #tpu.memory_space<vmem>>, vector<1x256xf32>
    %23 = vector.broadcast %21 : vector<8x1xf32> to vector<8x256xf32>
    %24 = vector.broadcast %22 : vector<1x256xf32> to vector<8x256xf32>
    %25 = arith.mulf %23, %24 : vector<8x256xf32>
    %c0_18 = arith.constant 0 : index
    %c3 = arith.constant 3 : index
    %26 = vector.load %arg5[%c0_18, %c3] : memref<8x9xf32, #tpu.memory_space<vmem>>, vector<8x1xf32>
    %c3_19 = arith.constant 3 : index
    %c0_20 = arith.constant 0 : index
    %27 = vector.load %arg7[%c3_19, %c0_20] : memref<9x256xf32, #tpu.memory_space<vmem>>, vector<1x256xf32>
    %28 = vector.broadcast %26 : vector<8x1xf32> to vector<8x256xf32>
    %29 = vector.broadcast %27 : vector<1x256xf32> to vector<8x256xf32>
    %30 = arith.mulf %28, %29 : vector<8x256xf32>
    %c0_21 = arith.constant 0 : index
    %c4 = arith.constant 4 : index
    %31 = vector.load %arg5[%c0_21, %c4] : memref<8x9xf32, #tpu.memory_space<vmem>>, vector<8x1xf32>
    %c4_22 = arith.constant 4 : index
    %c0_23 = arith.constant 0 : index
    %32 = vector.load %arg7[%c4_22, %c0_23] : memref<9x256xf32, #tpu.memory_space<vmem>>, vector<1x256xf32>
    %33 = vector.broadcast %31 : vector<8x1xf32> to vector<8x256xf32>
    %34 = vector.broadcast %32 : vector<1x256xf32> to vector<8x256xf32>
    %35 = arith.mulf %33, %34 : vector<8x256xf32>
    %c0_24 = arith.constant 0 : index
    %c5 = arith.constant 5 : index
    %36 = vector.load %arg5[%c0_24, %c5] : memref<8x9xf32, #tpu.memory_space<vmem>>, vector<8x1xf32>
    %c5_25 = arith.constant 5 : index
    %c0_26 = arith.constant 0 : index
    %37 = vector.load %arg7[%c5_25, %c0_26] : memref<9x256xf32, #tpu.memory_space<vmem>>, vector<1x256xf32>
    %38 = vector.broadcast %36 : vector<8x1xf32> to vector<8x256xf32>
    %39 = vector.broadcast %37 : vector<1x256xf32> to vector<8x256xf32>
    %40 = arith.mulf %38, %39 : vector<8x256xf32>
    %c0_27 = arith.constant 0 : index
    %c6 = arith.constant 6 : index
    %41 = vector.load %arg5[%c0_27, %c6] : memref<8x9xf32, #tpu.memory_space<vmem>>, vector<8x1xf32>
    %c6_28 = arith.constant 6 : index
    %c0_29 = arith.constant 0 : index
    %42 = vector.load %arg7[%c6_28, %c0_29] : memref<9x256xf32, #tpu.memory_space<vmem>>, vector<1x256xf32>
    %43 = vector.broadcast %41 : vector<8x1xf32> to vector<8x256xf32>
    %44 = vector.broadcast %42 : vector<1x256xf32> to vector<8x256xf32>
    %45 = arith.mulf %43, %44 : vector<8x256xf32>
    %c0_30 = arith.constant 0 : index
    %c7 = arith.constant 7 : index
    %46 = vector.load %arg5[%c0_30, %c7] : memref<8x9xf32, #tpu.memory_space<vmem>>, vector<8x1xf32>
    %c7_31 = arith.constant 7 : index
    %c0_32 = arith.constant 0 : index
    %47 = vector.load %arg7[%c7_31, %c0_32] : memref<9x256xf32, #tpu.memory_space<vmem>>, vector<1x256xf32>
    %48 = vector.broadcast %46 : vector<8x1xf32> to vector<8x256xf32>
    %49 = vector.broadcast %47 : vector<1x256xf32> to vector<8x256xf32>
    %50 = arith.mulf %48, %49 : vector<8x256xf32>
    %c0_33 = arith.constant 0 : index
    %c8 = arith.constant 8 : index
    %51 = vector.load %arg5[%c0_33, %c8] : memref<8x9xf32, #tpu.memory_space<vmem>>, vector<8x1xf32>
    %c8_34 = arith.constant 8 : index
    %c0_35 = arith.constant 0 : index
    %52 = vector.load %arg7[%c8_34, %c0_35] : memref<9x256xf32, #tpu.memory_space<vmem>>, vector<1x256xf32>
    %53 = vector.broadcast %51 : vector<8x1xf32> to vector<8x256xf32>
    %54 = vector.broadcast %52 : vector<1x256xf32> to vector<8x256xf32>
    %55 = arith.mulf %53, %54 : vector<8x256xf32>
    %cst_36 = arith.constant 0.000000e+00 : f32
    %56 = vector.broadcast %cst_36 : f32 to vector<8x256xf32>
    %57 = vector.extract_strided_slice %10 {offsets = [0, 240], sizes = [8, 16], strides = [1, 1]} : vector<8x256xf32> to vector<8x16xf32>
    %58 = vector.extract_strided_slice %10 {offsets = [0, 0], sizes = [8, 240], strides = [1, 1]} : vector<8x256xf32> to vector<8x240xf32>
    %59 = tpu.concatenate %57, %58 in 1 : vector<8x16xf32>, vector<8x240xf32> -> vector<8x256xf32>
    %60 = arith.mulf %59, %35 : vector<8x256xf32>
    %61 = vector.extract_strided_slice %59 {offsets = [0, 239], sizes = [8, 17], strides = [1, 1]} : vector<8x256xf32> to vector<8x17xf32>
    %62 = vector.extract_strided_slice %59 {offsets = [0, 0], sizes = [8, 239], strides = [1, 1]} : vector<8x256xf32> to vector<8x239xf32>
    %63 = tpu.concatenate %61, %62 in 1 : vector<8x17xf32>, vector<8x239xf32> -> vector<8x256xf32>
    %64 = arith.mulf %63, %15 : vector<8x256xf32>
    %65 = arith.addf %60, %64 : vector<8x256xf32>
    %66 = vector.extract_strided_slice %59 {offsets = [0, 240], sizes = [8, 16], strides = [1, 1]} : vector<8x256xf32> to vector<8x16xf32>
    %67 = vector.extract_strided_slice %59 {offsets = [0, 0], sizes = [8, 240], strides = [1, 1]} : vector<8x256xf32> to vector<8x240xf32>
    %68 = tpu.concatenate %66, %67 in 1 : vector<8x16xf32>, vector<8x240xf32> -> vector<8x256xf32>
    %69 = arith.mulf %68, %20 : vector<8x256xf32>
    %70 = arith.addf %65, %69 : vector<8x256xf32>
    %71 = vector.extract_strided_slice %59 {offsets = [0, 241], sizes = [8, 15], strides = [1, 1]} : vector<8x256xf32> to vector<8x15xf32>
    %72 = vector.extract_strided_slice %59 {offsets = [0, 0], sizes = [8, 241], strides = [1, 1]} : vector<8x256xf32> to vector<8x241xf32>
    %73 = tpu.concatenate %71, %72 in 1 : vector<8x15xf32>, vector<8x241xf32> -> vector<8x256xf32>
    %74 = arith.mulf %73, %25 : vector<8x256xf32>
    %75 = arith.addf %70, %74 : vector<8x256xf32>
    %76 = vector.extract_strided_slice %59 {offsets = [0, 255], sizes = [8, 1], strides = [1, 1]} : vector<8x256xf32> to vector<8x1xf32>
    %77 = vector.extract_strided_slice %59 {offsets = [0, 0], sizes = [8, 255], strides = [1, 1]} : vector<8x256xf32> to vector<8x255xf32>
    %78 = tpu.concatenate %76, %77 in 1 : vector<8x1xf32>, vector<8x255xf32> -> vector<8x256xf32>
    %79 = arith.mulf %78, %30 : vector<8x256xf32>
    %80 = arith.addf %75, %79 : vector<8x256xf32>
    %81 = vector.extract_strided_slice %59 {offsets = [0, 1], sizes = [8, 255], strides = [1, 1]} : vector<8x256xf32> to vector<8x255xf32>
    %82 = vector.extract_strided_slice %59 {offsets = [0, 0], sizes = [8, 1], strides = [1, 1]} : vector<8x256xf32> to vector<8x1xf32>
    %83 = tpu.concatenate %81, %82 in 1 : vector<8x255xf32>, vector<8x1xf32> -> vector<8x256xf32>
    %84 = arith.mulf %83, %40 : vector<8x256xf32>
    %85 = arith.addf %80, %84 : vector<8x256xf32>
    %86 = vector.extract_strided_slice %59 {offsets = [0, 15], sizes = [8, 241], strides = [1, 1]} : vector<8x256xf32> to vector<8x241xf32>
    %87 = vector.extract_strided_slice %59 {offsets = [0, 0], sizes = [8, 15], strides = [1, 1]} : vector<8x256xf32> to vector<8x15xf32>
    %88 = tpu.concatenate %86, %87 in 1 : vector<8x241xf32>, vector<8x15xf32> -> vector<8x256xf32>
    %89 = arith.mulf %88, %45 : vector<8x256xf32>
    %90 = arith.addf %85, %89 : vector<8x256xf32>
    %91 = vector.extract_strided_slice %59 {offsets = [0, 16], sizes = [8, 240], strides = [1, 1]} : vector<8x256xf32> to vector<8x240xf32>
    %92 = vector.extract_strided_slice %59 {offsets = [0, 0], sizes = [8, 16], strides = [1, 1]} : vector<8x256xf32> to vector<8x16xf32>
    %93 = tpu.concatenate %91, %92 in 1 : vector<8x240xf32>, vector<8x16xf32> -> vector<8x256xf32>
    %94 = arith.mulf %93, %50 : vector<8x256xf32>
    %95 = arith.addf %90, %94 : vector<8x256xf32>
    %96 = vector.extract_strided_slice %59 {offsets = [0, 17], sizes = [8, 239], strides = [1, 1]} : vector<8x256xf32> to vector<8x239xf32>
    %97 = vector.extract_strided_slice %59 {offsets = [0, 0], sizes = [8, 17], strides = [1, 1]} : vector<8x256xf32> to vector<8x17xf32>
    %98 = tpu.concatenate %96, %97 in 1 : vector<8x239xf32>, vector<8x17xf32> -> vector<8x256xf32>
    %99 = arith.mulf %98, %55 : vector<8x256xf32>
    %100 = arith.addf %95, %99 : vector<8x256xf32>
    %c0_37 = arith.constant 0 : index
    %c0_38 = arith.constant 0 : index
    %101 = vector.load %arg6[%c0_37, %c0_38] : memref<8x1xf32, #tpu.memory_space<vmem>>, vector<8x1xf32>
    %102 = vector.broadcast %101 : vector<8x1xf32> to vector<8x256xf32>
    %103 = arith.addf %100, %102 : vector<8x256xf32>
    %cst_39 = arith.constant 0.000000e+00 : f32
    %104 = vector.broadcast %cst_39 : f32 to vector<8x256xf32>
    %105 = arith.maximumf %103, %104 : vector<8x256xf32>
    %cst_40 = arith.constant 0.0742972717 : f32
    %106 = vector.broadcast %cst_40 : f32 to vector<8x256xf32>
    %107 = arith.mulf %106, %105 : vector<8x256xf32>
    %108 = arith.addf %56, %107 : vector<8x256xf32>
    %109 = vector.extract_strided_slice %10 {offsets = [0, 224], sizes = [8, 32], strides = [1, 1]} : vector<8x256xf32> to vector<8x32xf32>
    %110 = vector.extract_strided_slice %10 {offsets = [0, 0], sizes = [8, 224], strides = [1, 1]} : vector<8x256xf32> to vector<8x224xf32>
    %111 = tpu.concatenate %109, %110 in 1 : vector<8x32xf32>, vector<8x224xf32> -> vector<8x256xf32>
    %112 = arith.mulf %111, %35 : vector<8x256xf32>
    %113 = vector.extract_strided_slice %111 {offsets = [0, 239], sizes = [8, 17], strides = [1, 1]} : vector<8x256xf32> to vector<8x17xf32>
    %114 = vector.extract_strided_slice %111 {offsets = [0, 0], sizes = [8, 239], strides = [1, 1]} : vector<8x256xf32> to vector<8x239xf32>
    %115 = tpu.concatenate %113, %114 in 1 : vector<8x17xf32>, vector<8x239xf32> -> vector<8x256xf32>
    %116 = arith.mulf %115, %15 : vector<8x256xf32>
    %117 = arith.addf %112, %116 : vector<8x256xf32>
    %118 = vector.extract_strided_slice %111 {offsets = [0, 240], sizes = [8, 16], strides = [1, 1]} : vector<8x256xf32> to vector<8x16xf32>
    %119 = vector.extract_strided_slice %111 {offsets = [0, 0], sizes = [8, 240], strides = [1, 1]} : vector<8x256xf32> to vector<8x240xf32>
    %120 = tpu.concatenate %118, %119 in 1 : vector<8x16xf32>, vector<8x240xf32> -> vector<8x256xf32>
    %121 = arith.mulf %120, %20 : vector<8x256xf32>
    %122 = arith.addf %117, %121 : vector<8x256xf32>
    %123 = vector.extract_strided_slice %111 {offsets = [0, 241], sizes = [8, 15], strides = [1, 1]} : vector<8x256xf32> to vector<8x15xf32>
    %124 = vector.extract_strided_slice %111 {offsets = [0, 0], sizes = [8, 241], strides = [1, 1]} : vector<8x256xf32> to vector<8x241xf32>
    %125 = tpu.concatenate %123, %124 in 1 : vector<8x15xf32>, vector<8x241xf32> -> vector<8x256xf32>
    %126 = arith.mulf %125, %25 : vector<8x256xf32>
    %127 = arith.addf %122, %126 : vector<8x256xf32>
    %128 = vector.extract_strided_slice %111 {offsets = [0, 255], sizes = [8, 1], strides = [1, 1]} : vector<8x256xf32> to vector<8x1xf32>
    %129 = vector.extract_strided_slice %111 {offsets = [0, 0], sizes = [8, 255], strides = [1, 1]} : vector<8x256xf32> to vector<8x255xf32>
    %130 = tpu.concatenate %128, %129 in 1 : vector<8x1xf32>, vector<8x255xf32> -> vector<8x256xf32>
    %131 = arith.mulf %130, %30 : vector<8x256xf32>
    %132 = arith.addf %127, %131 : vector<8x256xf32>
    %133 = vector.extract_strided_slice %111 {offsets = [0, 1], sizes = [8, 255], strides = [1, 1]} : vector<8x256xf32> to vector<8x255xf32>
    %134 = vector.extract_strided_slice %111 {offsets = [0, 0], sizes = [8, 1], strides = [1, 1]} : vector<8x256xf32> to vector<8x1xf32>
    %135 = tpu.concatenate %133, %134 in 1 : vector<8x255xf32>, vector<8x1xf32> -> vector<8x256xf32>
    %136 = arith.mulf %135, %40 : vector<8x256xf32>
    %137 = arith.addf %132, %136 : vector<8x256xf32>
    %138 = vector.extract_strided_slice %111 {offsets = [0, 15], sizes = [8, 241], strides = [1, 1]} : vector<8x256xf32> to vector<8x241xf32>
    %139 = vector.extract_strided_slice %111 {offsets = [0, 0], sizes = [8, 15], strides = [1, 1]} : vector<8x256xf32> to vector<8x15xf32>
    %140 = tpu.concatenate %138, %139 in 1 : vector<8x241xf32>, vector<8x15xf32> -> vector<8x256xf32>
    %141 = arith.mulf %140, %45 : vector<8x256xf32>
    %142 = arith.addf %137, %141 : vector<8x256xf32>
    %143 = vector.extract_strided_slice %111 {offsets = [0, 16], sizes = [8, 240], strides = [1, 1]} : vector<8x256xf32> to vector<8x240xf32>
    %144 = vector.extract_strided_slice %111 {offsets = [0, 0], sizes = [8, 16], strides = [1, 1]} : vector<8x256xf32> to vector<8x16xf32>
    %145 = tpu.concatenate %143, %144 in 1 : vector<8x240xf32>, vector<8x16xf32> -> vector<8x256xf32>
    %146 = arith.mulf %145, %50 : vector<8x256xf32>
    %147 = arith.addf %142, %146 : vector<8x256xf32>
    %148 = vector.extract_strided_slice %111 {offsets = [0, 17], sizes = [8, 239], strides = [1, 1]} : vector<8x256xf32> to vector<8x239xf32>
    %149 = vector.extract_strided_slice %111 {offsets = [0, 0], sizes = [8, 17], strides = [1, 1]} : vector<8x256xf32> to vector<8x17xf32>
    %150 = tpu.concatenate %148, %149 in 1 : vector<8x239xf32>, vector<8x17xf32> -> vector<8x256xf32>
    %151 = arith.mulf %150, %55 : vector<8x256xf32>
    %152 = arith.addf %147, %151 : vector<8x256xf32>
    %c0_41 = arith.constant 0 : index
    %c0_42 = arith.constant 0 : index
    %153 = vector.load %arg6[%c0_41, %c0_42] : memref<8x1xf32, #tpu.memory_space<vmem>>, vector<8x1xf32>
    %154 = vector.broadcast %153 : vector<8x1xf32> to vector<8x256xf32>
    %155 = arith.addf %152, %154 : vector<8x256xf32>
    %cst_43 = arith.constant 0.000000e+00 : f32
    %156 = vector.broadcast %cst_43 : f32 to vector<8x256xf32>
    %157 = arith.maximumf %155, %156 : vector<8x256xf32>
    %cst_44 = arith.constant 0.0381454937 : f32
    %158 = vector.broadcast %cst_44 : f32 to vector<8x256xf32>
    %159 = arith.mulf %158, %157 : vector<8x256xf32>
    %160 = arith.addf %108, %159 : vector<8x256xf32>
    %161 = vector.extract_strided_slice %10 {offsets = [0, 208], sizes = [8, 48], strides = [1, 1]} : vector<8x256xf32> to vector<8x48xf32>
    %162 = vector.extract_strided_slice %10 {offsets = [0, 0], sizes = [8, 208], strides = [1, 1]} : vector<8x256xf32> to vector<8x208xf32>
    %163 = tpu.concatenate %161, %162 in 1 : vector<8x48xf32>, vector<8x208xf32> -> vector<8x256xf32>
    %164 = arith.mulf %163, %35 : vector<8x256xf32>
    %165 = vector.extract_strided_slice %163 {offsets = [0, 239], sizes = [8, 17], strides = [1, 1]} : vector<8x256xf32> to vector<8x17xf32>
    %166 = vector.extract_strided_slice %163 {offsets = [0, 0], sizes = [8, 239], strides = [1, 1]} : vector<8x256xf32> to vector<8x239xf32>
    %167 = tpu.concatenate %165, %166 in 1 : vector<8x17xf32>, vector<8x239xf32> -> vector<8x256xf32>
    %168 = arith.mulf %167, %15 : vector<8x256xf32>
    %169 = arith.addf %164, %168 : vector<8x256xf32>
    %170 = vector.extract_strided_slice %163 {offsets = [0, 240], sizes = [8, 16], strides = [1, 1]} : vector<8x256xf32> to vector<8x16xf32>
    %171 = vector.extract_strided_slice %163 {offsets = [0, 0], sizes = [8, 240], strides = [1, 1]} : vector<8x256xf32> to vector<8x240xf32>
    %172 = tpu.concatenate %170, %171 in 1 : vector<8x16xf32>, vector<8x240xf32> -> vector<8x256xf32>
    %173 = arith.mulf %172, %20 : vector<8x256xf32>
    %174 = arith.addf %169, %173 : vector<8x256xf32>
    %175 = vector.extract_strided_slice %163 {offsets = [0, 241], sizes = [8, 15], strides = [1, 1]} : vector<8x256xf32> to vector<8x15xf32>
    %176 = vector.extract_strided_slice %163 {offsets = [0, 0], sizes = [8, 241], strides = [1, 1]} : vector<8x256xf32> to vector<8x241xf32>
    %177 = tpu.concatenate %175, %176 in 1 : vector<8x15xf32>, vector<8x241xf32> -> vector<8x256xf32>
    %178 = arith.mulf %177, %25 : vector<8x256xf32>
    %179 = arith.addf %174, %178 : vector<8x256xf32>
    %180 = vector.extract_strided_slice %163 {offsets = [0, 255], sizes = [8, 1], strides = [1, 1]} : vector<8x256xf32> to vector<8x1xf32>
    %181 = vector.extract_strided_slice %163 {offsets = [0, 0], sizes = [8, 255], strides = [1, 1]} : vector<8x256xf32> to vector<8x255xf32>
    %182 = tpu.concatenate %180, %181 in 1 : vector<8x1xf32>, vector<8x255xf32> -> vector<8x256xf32>
    %183 = arith.mulf %182, %30 : vector<8x256xf32>
    %184 = arith.addf %179, %183 : vector<8x256xf32>
    %185 = vector.extract_strided_slice %163 {offsets = [0, 1], sizes = [8, 255], strides = [1, 1]} : vector<8x256xf32> to vector<8x255xf32>
    %186 = vector.extract_strided_slice %163 {offsets = [0, 0], sizes = [8, 1], strides = [1, 1]} : vector<8x256xf32> to vector<8x1xf32>
    %187 = tpu.concatenate %185, %186 in 1 : vector<8x255xf32>, vector<8x1xf32> -> vector<8x256xf32>
    %188 = arith.mulf %187, %40 : vector<8x256xf32>
    %189 = arith.addf %184, %188 : vector<8x256xf32>
    %190 = vector.extract_strided_slice %163 {offsets = [0, 15], sizes = [8, 241], strides = [1, 1]} : vector<8x256xf32> to vector<8x241xf32>
    %191 = vector.extract_strided_slice %163 {offsets = [0, 0], sizes = [8, 15], strides = [1, 1]} : vector<8x256xf32> to vector<8x15xf32>
    %192 = tpu.concatenate %190, %191 in 1 : vector<8x241xf32>, vector<8x15xf32> -> vector<8x256xf32>
    %193 = arith.mulf %192, %45 : vector<8x256xf32>
    %194 = arith.addf %189, %193 : vector<8x256xf32>
    %195 = vector.extract_strided_slice %163 {offsets = [0, 16], sizes = [8, 240], strides = [1, 1]} : vector<8x256xf32> to vector<8x240xf32>
    %196 = vector.extract_strided_slice %163 {offsets = [0, 0], sizes = [8, 16], strides = [1, 1]} : vector<8x256xf32> to vector<8x16xf32>
    %197 = tpu.concatenate %195, %196 in 1 : vector<8x240xf32>, vector<8x16xf32> -> vector<8x256xf32>
    %198 = arith.mulf %197, %50 : vector<8x256xf32>
    %199 = arith.addf %194, %198 : vector<8x256xf32>
    %200 = vector.extract_strided_slice %163 {offsets = [0, 17], sizes = [8, 239], strides = [1, 1]} : vector<8x256xf32> to vector<8x239xf32>
    %201 = vector.extract_strided_slice %163 {offsets = [0, 0], sizes = [8, 17], strides = [1, 1]} : vector<8x256xf32> to vector<8x17xf32>
    %202 = tpu.concatenate %200, %201 in 1 : vector<8x239xf32>, vector<8x17xf32> -> vector<8x256xf32>
    %203 = arith.mulf %202, %55 : vector<8x256xf32>
    %204 = arith.addf %199, %203 : vector<8x256xf32>
    %c0_45 = arith.constant 0 : index
    %c0_46 = arith.constant 0 : index
    %205 = vector.load %arg6[%c0_45, %c0_46] : memref<8x1xf32, #tpu.memory_space<vmem>>, vector<8x1xf32>
    %206 = vector.broadcast %205 : vector<8x1xf32> to vector<8x256xf32>
    %207 = arith.addf %204, %206 : vector<8x256xf32>
    %cst_47 = arith.constant 0.000000e+00 : f32
    %208 = vector.broadcast %cst_47 : f32 to vector<8x256xf32>
    %209 = arith.maximumf %207, %208 : vector<8x256xf32>
    %cst_48 = arith.constant 0.012557229 : f32
    %210 = vector.broadcast %cst_48 : f32 to vector<8x256xf32>
    %211 = arith.mulf %210, %209 : vector<8x256xf32>
    %212 = arith.addf %160, %211 : vector<8x256xf32>
    %213 = vector.extract_strided_slice %10 {offsets = [0, 16], sizes = [8, 240], strides = [1, 1]} : vector<8x256xf32> to vector<8x240xf32>
    %214 = vector.extract_strided_slice %10 {offsets = [0, 0], sizes = [8, 16], strides = [1, 1]} : vector<8x256xf32> to vector<8x16xf32>
    %215 = tpu.concatenate %213, %214 in 1 : vector<8x240xf32>, vector<8x16xf32> -> vector<8x256xf32>
    %216 = arith.mulf %215, %35 : vector<8x256xf32>
    %217 = vector.extract_strided_slice %215 {offsets = [0, 239], sizes = [8, 17], strides = [1, 1]} : vector<8x256xf32> to vector<8x17xf32>
    %218 = vector.extract_strided_slice %215 {offsets = [0, 0], sizes = [8, 239], strides = [1, 1]} : vector<8x256xf32> to vector<8x239xf32>
    %219 = tpu.concatenate %217, %218 in 1 : vector<8x17xf32>, vector<8x239xf32> -> vector<8x256xf32>
    %220 = arith.mulf %219, %15 : vector<8x256xf32>
    %221 = arith.addf %216, %220 : vector<8x256xf32>
    %222 = vector.extract_strided_slice %215 {offsets = [0, 240], sizes = [8, 16], strides = [1, 1]} : vector<8x256xf32> to vector<8x16xf32>
    %223 = vector.extract_strided_slice %215 {offsets = [0, 0], sizes = [8, 240], strides = [1, 1]} : vector<8x256xf32> to vector<8x240xf32>
    %224 = tpu.concatenate %222, %223 in 1 : vector<8x16xf32>, vector<8x240xf32> -> vector<8x256xf32>
    %225 = arith.mulf %224, %20 : vector<8x256xf32>
    %226 = arith.addf %221, %225 : vector<8x256xf32>
    %227 = vector.extract_strided_slice %215 {offsets = [0, 241], sizes = [8, 15], strides = [1, 1]} : vector<8x256xf32> to vector<8x15xf32>
    %228 = vector.extract_strided_slice %215 {offsets = [0, 0], sizes = [8, 241], strides = [1, 1]} : vector<8x256xf32> to vector<8x241xf32>
    %229 = tpu.concatenate %227, %228 in 1 : vector<8x15xf32>, vector<8x241xf32> -> vector<8x256xf32>
    %230 = arith.mulf %229, %25 : vector<8x256xf32>
    %231 = arith.addf %226, %230 : vector<8x256xf32>
    %232 = vector.extract_strided_slice %215 {offsets = [0, 255], sizes = [8, 1], strides = [1, 1]} : vector<8x256xf32> to vector<8x1xf32>
    %233 = vector.extract_strided_slice %215 {offsets = [0, 0], sizes = [8, 255], strides = [1, 1]} : vector<8x256xf32> to vector<8x255xf32>
    %234 = tpu.concatenate %232, %233 in 1 : vector<8x1xf32>, vector<8x255xf32> -> vector<8x256xf32>
    %235 = arith.mulf %234, %30 : vector<8x256xf32>
    %236 = arith.addf %231, %235 : vector<8x256xf32>
    %237 = vector.extract_strided_slice %215 {offsets = [0, 1], sizes = [8, 255], strides = [1, 1]} : vector<8x256xf32> to vector<8x255xf32>
    %238 = vector.extract_strided_slice %215 {offsets = [0, 0], sizes = [8, 1], strides = [1, 1]} : vector<8x256xf32> to vector<8x1xf32>
    %239 = tpu.concatenate %237, %238 in 1 : vector<8x255xf32>, vector<8x1xf32> -> vector<8x256xf32>
    %240 = arith.mulf %239, %40 : vector<8x256xf32>
    %241 = arith.addf %236, %240 : vector<8x256xf32>
    %242 = vector.extract_strided_slice %215 {offsets = [0, 15], sizes = [8, 241], strides = [1, 1]} : vector<8x256xf32> to vector<8x241xf32>
    %243 = vector.extract_strided_slice %215 {offsets = [0, 0], sizes = [8, 15], strides = [1, 1]} : vector<8x256xf32> to vector<8x15xf32>
    %244 = tpu.concatenate %242, %243 in 1 : vector<8x241xf32>, vector<8x15xf32> -> vector<8x256xf32>
    %245 = arith.mulf %244, %45 : vector<8x256xf32>
    %246 = arith.addf %241, %245 : vector<8x256xf32>
    %247 = vector.extract_strided_slice %215 {offsets = [0, 16], sizes = [8, 240], strides = [1, 1]} : vector<8x256xf32> to vector<8x240xf32>
    %248 = vector.extract_strided_slice %215 {offsets = [0, 0], sizes = [8, 16], strides = [1, 1]} : vector<8x256xf32> to vector<8x16xf32>
    %249 = tpu.concatenate %247, %248 in 1 : vector<8x240xf32>, vector<8x16xf32> -> vector<8x256xf32>
    %250 = arith.mulf %249, %50 : vector<8x256xf32>
    %251 = arith.addf %246, %250 : vector<8x256xf32>
    %252 = vector.extract_strided_slice %215 {offsets = [0, 17], sizes = [8, 239], strides = [1, 1]} : vector<8x256xf32> to vector<8x239xf32>
    %253 = vector.extract_strided_slice %215 {offsets = [0, 0], sizes = [8, 17], strides = [1, 1]} : vector<8x256xf32> to vector<8x17xf32>
    %254 = tpu.concatenate %252, %253 in 1 : vector<8x239xf32>, vector<8x17xf32> -> vector<8x256xf32>
    %255 = arith.mulf %254, %55 : vector<8x256xf32>
    %256 = arith.addf %251, %255 : vector<8x256xf32>
    %c0_49 = arith.constant 0 : index
    %c0_50 = arith.constant 0 : index
    %257 = vector.load %arg6[%c0_49, %c0_50] : memref<8x1xf32, #tpu.memory_space<vmem>>, vector<8x1xf32>
    %258 = vector.broadcast %257 : vector<8x1xf32> to vector<8x256xf32>
    %259 = arith.addf %256, %258 : vector<8x256xf32>
    %cst_51 = arith.constant 0.000000e+00 : f32
    %260 = vector.broadcast %cst_51 : f32 to vector<8x256xf32>
    %261 = arith.maximumf %259, %260 : vector<8x256xf32>
    %cst_52 = arith.constant 0.0742972717 : f32
    %262 = vector.broadcast %cst_52 : f32 to vector<8x256xf32>
    %263 = arith.mulf %262, %261 : vector<8x256xf32>
    %264 = arith.addf %212, %263 : vector<8x256xf32>
    %265 = vector.extract_strided_slice %10 {offsets = [0, 32], sizes = [8, 224], strides = [1, 1]} : vector<8x256xf32> to vector<8x224xf32>
    %266 = vector.extract_strided_slice %10 {offsets = [0, 0], sizes = [8, 32], strides = [1, 1]} : vector<8x256xf32> to vector<8x32xf32>
    %267 = tpu.concatenate %265, %266 in 1 : vector<8x224xf32>, vector<8x32xf32> -> vector<8x256xf32>
    %268 = arith.mulf %267, %35 : vector<8x256xf32>
    %269 = vector.extract_strided_slice %267 {offsets = [0, 239], sizes = [8, 17], strides = [1, 1]} : vector<8x256xf32> to vector<8x17xf32>
    %270 = vector.extract_strided_slice %267 {offsets = [0, 0], sizes = [8, 239], strides = [1, 1]} : vector<8x256xf32> to vector<8x239xf32>
    %271 = tpu.concatenate %269, %270 in 1 : vector<8x17xf32>, vector<8x239xf32> -> vector<8x256xf32>
    %272 = arith.mulf %271, %15 : vector<8x256xf32>
    %273 = arith.addf %268, %272 : vector<8x256xf32>
    %274 = vector.extract_strided_slice %267 {offsets = [0, 240], sizes = [8, 16], strides = [1, 1]} : vector<8x256xf32> to vector<8x16xf32>
    %275 = vector.extract_strided_slice %267 {offsets = [0, 0], sizes = [8, 240], strides = [1, 1]} : vector<8x256xf32> to vector<8x240xf32>
    %276 = tpu.concatenate %274, %275 in 1 : vector<8x16xf32>, vector<8x240xf32> -> vector<8x256xf32>
    %277 = arith.mulf %276, %20 : vector<8x256xf32>
    %278 = arith.addf %273, %277 : vector<8x256xf32>
    %279 = vector.extract_strided_slice %267 {offsets = [0, 241], sizes = [8, 15], strides = [1, 1]} : vector<8x256xf32> to vector<8x15xf32>
    %280 = vector.extract_strided_slice %267 {offsets = [0, 0], sizes = [8, 241], strides = [1, 1]} : vector<8x256xf32> to vector<8x241xf32>
    %281 = tpu.concatenate %279, %280 in 1 : vector<8x15xf32>, vector<8x241xf32> -> vector<8x256xf32>
    %282 = arith.mulf %281, %25 : vector<8x256xf32>
    %283 = arith.addf %278, %282 : vector<8x256xf32>
    %284 = vector.extract_strided_slice %267 {offsets = [0, 255], sizes = [8, 1], strides = [1, 1]} : vector<8x256xf32> to vector<8x1xf32>
    %285 = vector.extract_strided_slice %267 {offsets = [0, 0], sizes = [8, 255], strides = [1, 1]} : vector<8x256xf32> to vector<8x255xf32>
    %286 = tpu.concatenate %284, %285 in 1 : vector<8x1xf32>, vector<8x255xf32> -> vector<8x256xf32>
    %287 = arith.mulf %286, %30 : vector<8x256xf32>
    %288 = arith.addf %283, %287 : vector<8x256xf32>
    %289 = vector.extract_strided_slice %267 {offsets = [0, 1], sizes = [8, 255], strides = [1, 1]} : vector<8x256xf32> to vector<8x255xf32>
    %290 = vector.extract_strided_slice %267 {offsets = [0, 0], sizes = [8, 1], strides = [1, 1]} : vector<8x256xf32> to vector<8x1xf32>
    %291 = tpu.concatenate %289, %290 in 1 : vector<8x255xf32>, vector<8x1xf32> -> vector<8x256xf32>
    %292 = arith.mulf %291, %40 : vector<8x256xf32>
    %293 = arith.addf %288, %292 : vector<8x256xf32>
    %294 = vector.extract_strided_slice %267 {offsets = [0, 15], sizes = [8, 241], strides = [1, 1]} : vector<8x256xf32> to vector<8x241xf32>
    %295 = vector.extract_strided_slice %267 {offsets = [0, 0], sizes = [8, 15], strides = [1, 1]} : vector<8x256xf32> to vector<8x15xf32>
    %296 = tpu.concatenate %294, %295 in 1 : vector<8x241xf32>, vector<8x15xf32> -> vector<8x256xf32>
    %297 = arith.mulf %296, %45 : vector<8x256xf32>
    %298 = arith.addf %293, %297 : vector<8x256xf32>
    %299 = vector.extract_strided_slice %267 {offsets = [0, 16], sizes = [8, 240], strides = [1, 1]} : vector<8x256xf32> to vector<8x240xf32>
    %300 = vector.extract_strided_slice %267 {offsets = [0, 0], sizes = [8, 16], strides = [1, 1]} : vector<8x256xf32> to vector<8x16xf32>
    %301 = tpu.concatenate %299, %300 in 1 : vector<8x240xf32>, vector<8x16xf32> -> vector<8x256xf32>
    %302 = arith.mulf %301, %50 : vector<8x256xf32>
    %303 = arith.addf %298, %302 : vector<8x256xf32>
    %304 = vector.extract_strided_slice %267 {offsets = [0, 17], sizes = [8, 239], strides = [1, 1]} : vector<8x256xf32> to vector<8x239xf32>
    %305 = vector.extract_strided_slice %267 {offsets = [0, 0], sizes = [8, 17], strides = [1, 1]} : vector<8x256xf32> to vector<8x17xf32>
    %306 = tpu.concatenate %304, %305 in 1 : vector<8x239xf32>, vector<8x17xf32> -> vector<8x256xf32>
    %307 = arith.mulf %306, %55 : vector<8x256xf32>
    %308 = arith.addf %303, %307 : vector<8x256xf32>
    %c0_53 = arith.constant 0 : index
    %c0_54 = arith.constant 0 : index
    %309 = vector.load %arg6[%c0_53, %c0_54] : memref<8x1xf32, #tpu.memory_space<vmem>>, vector<8x1xf32>
    %310 = vector.broadcast %309 : vector<8x1xf32> to vector<8x256xf32>
    %311 = arith.addf %308, %310 : vector<8x256xf32>
    %cst_55 = arith.constant 0.000000e+00 : f32
    %312 = vector.broadcast %cst_55 : f32 to vector<8x256xf32>
    %313 = arith.maximumf %311, %312 : vector<8x256xf32>
    %cst_56 = arith.constant 0.0381454937 : f32
    %314 = vector.broadcast %cst_56 : f32 to vector<8x256xf32>
    %315 = arith.mulf %314, %313 : vector<8x256xf32>
    %316 = arith.addf %264, %315 : vector<8x256xf32>
    %317 = vector.extract_strided_slice %10 {offsets = [0, 48], sizes = [8, 208], strides = [1, 1]} : vector<8x256xf32> to vector<8x208xf32>
    %318 = vector.extract_strided_slice %10 {offsets = [0, 0], sizes = [8, 48], strides = [1, 1]} : vector<8x256xf32> to vector<8x48xf32>
    %319 = tpu.concatenate %317, %318 in 1 : vector<8x208xf32>, vector<8x48xf32> -> vector<8x256xf32>
    %320 = arith.mulf %319, %35 : vector<8x256xf32>
    %321 = vector.extract_strided_slice %319 {offsets = [0, 239], sizes = [8, 17], strides = [1, 1]} : vector<8x256xf32> to vector<8x17xf32>
    %322 = vector.extract_strided_slice %319 {offsets = [0, 0], sizes = [8, 239], strides = [1, 1]} : vector<8x256xf32> to vector<8x239xf32>
    %323 = tpu.concatenate %321, %322 in 1 : vector<8x17xf32>, vector<8x239xf32> -> vector<8x256xf32>
    %324 = arith.mulf %323, %15 : vector<8x256xf32>
    %325 = arith.addf %320, %324 : vector<8x256xf32>
    %326 = vector.extract_strided_slice %319 {offsets = [0, 240], sizes = [8, 16], strides = [1, 1]} : vector<8x256xf32> to vector<8x16xf32>
    %327 = vector.extract_strided_slice %319 {offsets = [0, 0], sizes = [8, 240], strides = [1, 1]} : vector<8x256xf32> to vector<8x240xf32>
    %328 = tpu.concatenate %326, %327 in 1 : vector<8x16xf32>, vector<8x240xf32> -> vector<8x256xf32>
    %329 = arith.mulf %328, %20 : vector<8x256xf32>
    %330 = arith.addf %325, %329 : vector<8x256xf32>
    %331 = vector.extract_strided_slice %319 {offsets = [0, 241], sizes = [8, 15], strides = [1, 1]} : vector<8x256xf32> to vector<8x15xf32>
    %332 = vector.extract_strided_slice %319 {offsets = [0, 0], sizes = [8, 241], strides = [1, 1]} : vector<8x256xf32> to vector<8x241xf32>
    %333 = tpu.concatenate %331, %332 in 1 : vector<8x15xf32>, vector<8x241xf32> -> vector<8x256xf32>
    %334 = arith.mulf %333, %25 : vector<8x256xf32>
    %335 = arith.addf %330, %334 : vector<8x256xf32>
    %336 = vector.extract_strided_slice %319 {offsets = [0, 255], sizes = [8, 1], strides = [1, 1]} : vector<8x256xf32> to vector<8x1xf32>
    %337 = vector.extract_strided_slice %319 {offsets = [0, 0], sizes = [8, 255], strides = [1, 1]} : vector<8x256xf32> to vector<8x255xf32>
    %338 = tpu.concatenate %336, %337 in 1 : vector<8x1xf32>, vector<8x255xf32> -> vector<8x256xf32>
    %339 = arith.mulf %338, %30 : vector<8x256xf32>
    %340 = arith.addf %335, %339 : vector<8x256xf32>
    %341 = vector.extract_strided_slice %319 {offsets = [0, 1], sizes = [8, 255], strides = [1, 1]} : vector<8x256xf32> to vector<8x255xf32>
    %342 = vector.extract_strided_slice %319 {offsets = [0, 0], sizes = [8, 1], strides = [1, 1]} : vector<8x256xf32> to vector<8x1xf32>
    %343 = tpu.concatenate %341, %342 in 1 : vector<8x255xf32>, vector<8x1xf32> -> vector<8x256xf32>
    %344 = arith.mulf %343, %40 : vector<8x256xf32>
    %345 = arith.addf %340, %344 : vector<8x256xf32>
    %346 = vector.extract_strided_slice %319 {offsets = [0, 15], sizes = [8, 241], strides = [1, 1]} : vector<8x256xf32> to vector<8x241xf32>
    %347 = vector.extract_strided_slice %319 {offsets = [0, 0], sizes = [8, 15], strides = [1, 1]} : vector<8x256xf32> to vector<8x15xf32>
    %348 = tpu.concatenate %346, %347 in 1 : vector<8x241xf32>, vector<8x15xf32> -> vector<8x256xf32>
    %349 = arith.mulf %348, %45 : vector<8x256xf32>
    %350 = arith.addf %345, %349 : vector<8x256xf32>
    %351 = vector.extract_strided_slice %319 {offsets = [0, 16], sizes = [8, 240], strides = [1, 1]} : vector<8x256xf32> to vector<8x240xf32>
    %352 = vector.extract_strided_slice %319 {offsets = [0, 0], sizes = [8, 16], strides = [1, 1]} : vector<8x256xf32> to vector<8x16xf32>
    %353 = tpu.concatenate %351, %352 in 1 : vector<8x240xf32>, vector<8x16xf32> -> vector<8x256xf32>
    %354 = arith.mulf %353, %50 : vector<8x256xf32>
    %355 = arith.addf %350, %354 : vector<8x256xf32>
    %356 = vector.extract_strided_slice %319 {offsets = [0, 17], sizes = [8, 239], strides = [1, 1]} : vector<8x256xf32> to vector<8x239xf32>
    %357 = vector.extract_strided_slice %319 {offsets = [0, 0], sizes = [8, 17], strides = [1, 1]} : vector<8x256xf32> to vector<8x17xf32>
    %358 = tpu.concatenate %356, %357 in 1 : vector<8x239xf32>, vector<8x17xf32> -> vector<8x256xf32>
    %359 = arith.mulf %358, %55 : vector<8x256xf32>
    %360 = arith.addf %355, %359 : vector<8x256xf32>
    %c0_57 = arith.constant 0 : index
    %c0_58 = arith.constant 0 : index
    %361 = vector.load %arg6[%c0_57, %c0_58] : memref<8x1xf32, #tpu.memory_space<vmem>>, vector<8x1xf32>
    %362 = vector.broadcast %361 : vector<8x1xf32> to vector<8x256xf32>
    %363 = arith.addf %360, %362 : vector<8x256xf32>
    %cst_59 = arith.constant 0.000000e+00 : f32
    %364 = vector.broadcast %cst_59 : f32 to vector<8x256xf32>
    %365 = arith.maximumf %363, %364 : vector<8x256xf32>
    %cst_60 = arith.constant 0.012557229 : f32
    %366 = vector.broadcast %cst_60 : f32 to vector<8x256xf32>
    %367 = arith.mulf %366, %365 : vector<8x256xf32>
    %368 = arith.addf %316, %367 : vector<8x256xf32>
    %369 = vector.extract_strided_slice %10 {offsets = [0, 1], sizes = [8, 255], strides = [1, 1]} : vector<8x256xf32> to vector<8x255xf32>
    %370 = vector.extract_strided_slice %10 {offsets = [0, 0], sizes = [8, 1], strides = [1, 1]} : vector<8x256xf32> to vector<8x1xf32>
    %371 = tpu.concatenate %369, %370 in 1 : vector<8x255xf32>, vector<8x1xf32> -> vector<8x256xf32>
    %372 = vector.extract_strided_slice %10 {offsets = [0, 241], sizes = [8, 15], strides = [1, 1]} : vector<8x256xf32> to vector<8x15xf32>
    %373 = vector.extract_strided_slice %10 {offsets = [0, 0], sizes = [8, 241], strides = [1, 1]} : vector<8x256xf32> to vector<8x241xf32>
    %374 = tpu.concatenate %372, %373 in 1 : vector<8x15xf32>, vector<8x241xf32> -> vector<8x256xf32>
    %c6_61 = arith.constant 6 : index
    %c0_62 = arith.constant 0 : index
    %375 = vector.load %arg8[%c6_61, %c0_62] : memref<12x256xf32, #tpu.memory_space<vmem>>, vector<1x256xf32>
    %376 = arith.subf %374, %371 : vector<8x256xf32>
    %377 = vector.broadcast %375 : vector<1x256xf32> to vector<8x256xf32>
    %378 = arith.mulf %376, %377 : vector<8x256xf32>
    %379 = arith.addf %371, %378 : vector<8x256xf32>
    %380 = arith.mulf %379, %35 : vector<8x256xf32>
    %381 = vector.extract_strided_slice %379 {offsets = [0, 239], sizes = [8, 17], strides = [1, 1]} : vector<8x256xf32> to vector<8x17xf32>
    %382 = vector.extract_strided_slice %379 {offsets = [0, 0], sizes = [8, 239], strides = [1, 1]} : vector<8x256xf32> to vector<8x239xf32>
    %383 = tpu.concatenate %381, %382 in 1 : vector<8x17xf32>, vector<8x239xf32> -> vector<8x256xf32>
    %384 = arith.mulf %383, %15 : vector<8x256xf32>
    %385 = arith.addf %380, %384 : vector<8x256xf32>
    %386 = vector.extract_strided_slice %379 {offsets = [0, 240], sizes = [8, 16], strides = [1, 1]} : vector<8x256xf32> to vector<8x16xf32>
    %387 = vector.extract_strided_slice %379 {offsets = [0, 0], sizes = [8, 240], strides = [1, 1]} : vector<8x256xf32> to vector<8x240xf32>
    %388 = tpu.concatenate %386, %387 in 1 : vector<8x16xf32>, vector<8x240xf32> -> vector<8x256xf32>
    %389 = arith.mulf %388, %20 : vector<8x256xf32>
    %390 = arith.addf %385, %389 : vector<8x256xf32>
    %391 = vector.extract_strided_slice %379 {offsets = [0, 241], sizes = [8, 15], strides = [1, 1]} : vector<8x256xf32> to vector<8x15xf32>
    %392 = vector.extract_strided_slice %379 {offsets = [0, 0], sizes = [8, 241], strides = [1, 1]} : vector<8x256xf32> to vector<8x241xf32>
    %393 = tpu.concatenate %391, %392 in 1 : vector<8x15xf32>, vector<8x241xf32> -> vector<8x256xf32>
    %394 = arith.mulf %393, %25 : vector<8x256xf32>
    %395 = arith.addf %390, %394 : vector<8x256xf32>
    %396 = vector.extract_strided_slice %379 {offsets = [0, 255], sizes = [8, 1], strides = [1, 1]} : vector<8x256xf32> to vector<8x1xf32>
    %397 = vector.extract_strided_slice %379 {offsets = [0, 0], sizes = [8, 255], strides = [1, 1]} : vector<8x256xf32> to vector<8x255xf32>
    %398 = tpu.concatenate %396, %397 in 1 : vector<8x1xf32>, vector<8x255xf32> -> vector<8x256xf32>
    %399 = arith.mulf %398, %30 : vector<8x256xf32>
    %400 = arith.addf %395, %399 : vector<8x256xf32>
    %401 = vector.extract_strided_slice %379 {offsets = [0, 1], sizes = [8, 255], strides = [1, 1]} : vector<8x256xf32> to vector<8x255xf32>
    %402 = vector.extract_strided_slice %379 {offsets = [0, 0], sizes = [8, 1], strides = [1, 1]} : vector<8x256xf32> to vector<8x1xf32>
    %403 = tpu.concatenate %401, %402 in 1 : vector<8x255xf32>, vector<8x1xf32> -> vector<8x256xf32>
    %404 = arith.mulf %403, %40 : vector<8x256xf32>
    %405 = arith.addf %400, %404 : vector<8x256xf32>
    %406 = vector.extract_strided_slice %379 {offsets = [0, 15], sizes = [8, 241], strides = [1, 1]} : vector<8x256xf32> to vector<8x241xf32>
    %407 = vector.extract_strided_slice %379 {offsets = [0, 0], sizes = [8, 15], strides = [1, 1]} : vector<8x256xf32> to vector<8x15xf32>
    %408 = tpu.concatenate %406, %407 in 1 : vector<8x241xf32>, vector<8x15xf32> -> vector<8x256xf32>
    %409 = arith.mulf %408, %45 : vector<8x256xf32>
    %410 = arith.addf %405, %409 : vector<8x256xf32>
    %411 = vector.extract_strided_slice %379 {offsets = [0, 16], sizes = [8, 240], strides = [1, 1]} : vector<8x256xf32> to vector<8x240xf32>
    %412 = vector.extract_strided_slice %379 {offsets = [0, 0], sizes = [8, 16], strides = [1, 1]} : vector<8x256xf32> to vector<8x16xf32>
    %413 = tpu.concatenate %411, %412 in 1 : vector<8x240xf32>, vector<8x16xf32> -> vector<8x256xf32>
    %414 = arith.mulf %413, %50 : vector<8x256xf32>
    %415 = arith.addf %410, %414 : vector<8x256xf32>
    %416 = vector.extract_strided_slice %379 {offsets = [0, 17], sizes = [8, 239], strides = [1, 1]} : vector<8x256xf32> to vector<8x239xf32>
    %417 = vector.extract_strided_slice %379 {offsets = [0, 0], sizes = [8, 17], strides = [1, 1]} : vector<8x256xf32> to vector<8x17xf32>
    %418 = tpu.concatenate %416, %417 in 1 : vector<8x239xf32>, vector<8x17xf32> -> vector<8x256xf32>
    %419 = arith.mulf %418, %55 : vector<8x256xf32>
    %420 = arith.addf %415, %419 : vector<8x256xf32>
    %c0_63 = arith.constant 0 : index
    %c0_64 = arith.constant 0 : index
    %421 = vector.load %arg6[%c0_63, %c0_64] : memref<8x1xf32, #tpu.memory_space<vmem>>, vector<8x1xf32>
    %422 = vector.broadcast %421 : vector<8x1xf32> to vector<8x256xf32>
    %423 = arith.addf %420, %422 : vector<8x256xf32>
    %cst_65 = arith.constant 0.000000e+00 : f32
    %424 = vector.broadcast %cst_65 : f32 to vector<8x256xf32>
    %425 = arith.maximumf %423, %424 : vector<8x256xf32>
    %cst_66 = arith.constant 0.0742972717 : f32
    %426 = vector.broadcast %cst_66 : f32 to vector<8x256xf32>
    %427 = arith.mulf %426, %425 : vector<8x256xf32>
    %428 = arith.addf %368, %427 : vector<8x256xf32>
    %429 = vector.extract_strided_slice %10 {offsets = [0, 2], sizes = [8, 254], strides = [1, 1]} : vector<8x256xf32> to vector<8x254xf32>
    %430 = vector.extract_strided_slice %10 {offsets = [0, 0], sizes = [8, 2], strides = [1, 1]} : vector<8x256xf32> to vector<8x2xf32>
    %431 = tpu.concatenate %429, %430 in 1 : vector<8x254xf32>, vector<8x2xf32> -> vector<8x256xf32>
    %432 = vector.extract_strided_slice %10 {offsets = [0, 242], sizes = [8, 14], strides = [1, 1]} : vector<8x256xf32> to vector<8x14xf32>
    %433 = vector.extract_strided_slice %10 {offsets = [0, 0], sizes = [8, 242], strides = [1, 1]} : vector<8x256xf32> to vector<8x242xf32>
    %434 = tpu.concatenate %432, %433 in 1 : vector<8x14xf32>, vector<8x242xf32> -> vector<8x256xf32>
    %c7_67 = arith.constant 7 : index
    %c0_68 = arith.constant 0 : index
    %435 = vector.load %arg8[%c7_67, %c0_68] : memref<12x256xf32, #tpu.memory_space<vmem>>, vector<1x256xf32>
    %436 = arith.subf %434, %431 : vector<8x256xf32>
    %437 = vector.broadcast %435 : vector<1x256xf32> to vector<8x256xf32>
    %438 = arith.mulf %436, %437 : vector<8x256xf32>
    %439 = arith.addf %431, %438 : vector<8x256xf32>
    %440 = arith.mulf %439, %35 : vector<8x256xf32>
    %441 = vector.extract_strided_slice %439 {offsets = [0, 239], sizes = [8, 17], strides = [1, 1]} : vector<8x256xf32> to vector<8x17xf32>
    %442 = vector.extract_strided_slice %439 {offsets = [0, 0], sizes = [8, 239], strides = [1, 1]} : vector<8x256xf32> to vector<8x239xf32>
    %443 = tpu.concatenate %441, %442 in 1 : vector<8x17xf32>, vector<8x239xf32> -> vector<8x256xf32>
    %444 = arith.mulf %443, %15 : vector<8x256xf32>
    %445 = arith.addf %440, %444 : vector<8x256xf32>
    %446 = vector.extract_strided_slice %439 {offsets = [0, 240], sizes = [8, 16], strides = [1, 1]} : vector<8x256xf32> to vector<8x16xf32>
    %447 = vector.extract_strided_slice %439 {offsets = [0, 0], sizes = [8, 240], strides = [1, 1]} : vector<8x256xf32> to vector<8x240xf32>
    %448 = tpu.concatenate %446, %447 in 1 : vector<8x16xf32>, vector<8x240xf32> -> vector<8x256xf32>
    %449 = arith.mulf %448, %20 : vector<8x256xf32>
    %450 = arith.addf %445, %449 : vector<8x256xf32>
    %451 = vector.extract_strided_slice %439 {offsets = [0, 241], sizes = [8, 15], strides = [1, 1]} : vector<8x256xf32> to vector<8x15xf32>
    %452 = vector.extract_strided_slice %439 {offsets = [0, 0], sizes = [8, 241], strides = [1, 1]} : vector<8x256xf32> to vector<8x241xf32>
    %453 = tpu.concatenate %451, %452 in 1 : vector<8x15xf32>, vector<8x241xf32> -> vector<8x256xf32>
    %454 = arith.mulf %453, %25 : vector<8x256xf32>
    %455 = arith.addf %450, %454 : vector<8x256xf32>
    %456 = vector.extract_strided_slice %439 {offsets = [0, 255], sizes = [8, 1], strides = [1, 1]} : vector<8x256xf32> to vector<8x1xf32>
    %457 = vector.extract_strided_slice %439 {offsets = [0, 0], sizes = [8, 255], strides = [1, 1]} : vector<8x256xf32> to vector<8x255xf32>
    %458 = tpu.concatenate %456, %457 in 1 : vector<8x1xf32>, vector<8x255xf32> -> vector<8x256xf32>
    %459 = arith.mulf %458, %30 : vector<8x256xf32>
    %460 = arith.addf %455, %459 : vector<8x256xf32>
    %461 = vector.extract_strided_slice %439 {offsets = [0, 1], sizes = [8, 255], strides = [1, 1]} : vector<8x256xf32> to vector<8x255xf32>
    %462 = vector.extract_strided_slice %439 {offsets = [0, 0], sizes = [8, 1], strides = [1, 1]} : vector<8x256xf32> to vector<8x1xf32>
    %463 = tpu.concatenate %461, %462 in 1 : vector<8x255xf32>, vector<8x1xf32> -> vector<8x256xf32>
    %464 = arith.mulf %463, %40 : vector<8x256xf32>
    %465 = arith.addf %460, %464 : vector<8x256xf32>
    %466 = vector.extract_strided_slice %439 {offsets = [0, 15], sizes = [8, 241], strides = [1, 1]} : vector<8x256xf32> to vector<8x241xf32>
    %467 = vector.extract_strided_slice %439 {offsets = [0, 0], sizes = [8, 15], strides = [1, 1]} : vector<8x256xf32> to vector<8x15xf32>
    %468 = tpu.concatenate %466, %467 in 1 : vector<8x241xf32>, vector<8x15xf32> -> vector<8x256xf32>
    %469 = arith.mulf %468, %45 : vector<8x256xf32>
    %470 = arith.addf %465, %469 : vector<8x256xf32>
    %471 = vector.extract_strided_slice %439 {offsets = [0, 16], sizes = [8, 240], strides = [1, 1]} : vector<8x256xf32> to vector<8x240xf32>
    %472 = vector.extract_strided_slice %439 {offsets = [0, 0], sizes = [8, 16], strides = [1, 1]} : vector<8x256xf32> to vector<8x16xf32>
    %473 = tpu.concatenate %471, %472 in 1 : vector<8x240xf32>, vector<8x16xf32> -> vector<8x256xf32>
    %474 = arith.mulf %473, %50 : vector<8x256xf32>
    %475 = arith.addf %470, %474 : vector<8x256xf32>
    %476 = vector.extract_strided_slice %439 {offsets = [0, 17], sizes = [8, 239], strides = [1, 1]} : vector<8x256xf32> to vector<8x239xf32>
    %477 = vector.extract_strided_slice %439 {offsets = [0, 0], sizes = [8, 17], strides = [1, 1]} : vector<8x256xf32> to vector<8x17xf32>
    %478 = tpu.concatenate %476, %477 in 1 : vector<8x239xf32>, vector<8x17xf32> -> vector<8x256xf32>
    %479 = arith.mulf %478, %55 : vector<8x256xf32>
    %480 = arith.addf %475, %479 : vector<8x256xf32>
    %c0_69 = arith.constant 0 : index
    %c0_70 = arith.constant 0 : index
    %481 = vector.load %arg6[%c0_69, %c0_70] : memref<8x1xf32, #tpu.memory_space<vmem>>, vector<8x1xf32>
    %482 = vector.broadcast %481 : vector<8x1xf32> to vector<8x256xf32>
    %483 = arith.addf %480, %482 : vector<8x256xf32>
    %cst_71 = arith.constant 0.000000e+00 : f32
    %484 = vector.broadcast %cst_71 : f32 to vector<8x256xf32>
    %485 = arith.maximumf %483, %484 : vector<8x256xf32>
    %cst_72 = arith.constant 0.0381454937 : f32
    %486 = vector.broadcast %cst_72 : f32 to vector<8x256xf32>
    %487 = arith.mulf %486, %485 : vector<8x256xf32>
    %488 = arith.addf %428, %487 : vector<8x256xf32>
    %489 = vector.extract_strided_slice %10 {offsets = [0, 3], sizes = [8, 253], strides = [1, 1]} : vector<8x256xf32> to vector<8x253xf32>
    %490 = vector.extract_strided_slice %10 {offsets = [0, 0], sizes = [8, 3], strides = [1, 1]} : vector<8x256xf32> to vector<8x3xf32>
    %491 = tpu.concatenate %489, %490 in 1 : vector<8x253xf32>, vector<8x3xf32> -> vector<8x256xf32>
    %492 = vector.extract_strided_slice %10 {offsets = [0, 243], sizes = [8, 13], strides = [1, 1]} : vector<8x256xf32> to vector<8x13xf32>
    %493 = vector.extract_strided_slice %10 {offsets = [0, 0], sizes = [8, 243], strides = [1, 1]} : vector<8x256xf32> to vector<8x243xf32>
    %494 = tpu.concatenate %492, %493 in 1 : vector<8x13xf32>, vector<8x243xf32> -> vector<8x256xf32>
    %c8_73 = arith.constant 8 : index
    %c0_74 = arith.constant 0 : index
    %495 = vector.load %arg8[%c8_73, %c0_74] : memref<12x256xf32, #tpu.memory_space<vmem>>, vector<1x256xf32>
    %496 = arith.subf %494, %491 : vector<8x256xf32>
    %497 = vector.broadcast %495 : vector<1x256xf32> to vector<8x256xf32>
    %498 = arith.mulf %496, %497 : vector<8x256xf32>
    %499 = arith.addf %491, %498 : vector<8x256xf32>
    %500 = arith.mulf %499, %35 : vector<8x256xf32>
    %501 = vector.extract_strided_slice %499 {offsets = [0, 239], sizes = [8, 17], strides = [1, 1]} : vector<8x256xf32> to vector<8x17xf32>
    %502 = vector.extract_strided_slice %499 {offsets = [0, 0], sizes = [8, 239], strides = [1, 1]} : vector<8x256xf32> to vector<8x239xf32>
    %503 = tpu.concatenate %501, %502 in 1 : vector<8x17xf32>, vector<8x239xf32> -> vector<8x256xf32>
    %504 = arith.mulf %503, %15 : vector<8x256xf32>
    %505 = arith.addf %500, %504 : vector<8x256xf32>
    %506 = vector.extract_strided_slice %499 {offsets = [0, 240], sizes = [8, 16], strides = [1, 1]} : vector<8x256xf32> to vector<8x16xf32>
    %507 = vector.extract_strided_slice %499 {offsets = [0, 0], sizes = [8, 240], strides = [1, 1]} : vector<8x256xf32> to vector<8x240xf32>
    %508 = tpu.concatenate %506, %507 in 1 : vector<8x16xf32>, vector<8x240xf32> -> vector<8x256xf32>
    %509 = arith.mulf %508, %20 : vector<8x256xf32>
    %510 = arith.addf %505, %509 : vector<8x256xf32>
    %511 = vector.extract_strided_slice %499 {offsets = [0, 241], sizes = [8, 15], strides = [1, 1]} : vector<8x256xf32> to vector<8x15xf32>
    %512 = vector.extract_strided_slice %499 {offsets = [0, 0], sizes = [8, 241], strides = [1, 1]} : vector<8x256xf32> to vector<8x241xf32>
    %513 = tpu.concatenate %511, %512 in 1 : vector<8x15xf32>, vector<8x241xf32> -> vector<8x256xf32>
    %514 = arith.mulf %513, %25 : vector<8x256xf32>
    %515 = arith.addf %510, %514 : vector<8x256xf32>
    %516 = vector.extract_strided_slice %499 {offsets = [0, 255], sizes = [8, 1], strides = [1, 1]} : vector<8x256xf32> to vector<8x1xf32>
    %517 = vector.extract_strided_slice %499 {offsets = [0, 0], sizes = [8, 255], strides = [1, 1]} : vector<8x256xf32> to vector<8x255xf32>
    %518 = tpu.concatenate %516, %517 in 1 : vector<8x1xf32>, vector<8x255xf32> -> vector<8x256xf32>
    %519 = arith.mulf %518, %30 : vector<8x256xf32>
    %520 = arith.addf %515, %519 : vector<8x256xf32>
    %521 = vector.extract_strided_slice %499 {offsets = [0, 1], sizes = [8, 255], strides = [1, 1]} : vector<8x256xf32> to vector<8x255xf32>
    %522 = vector.extract_strided_slice %499 {offsets = [0, 0], sizes = [8, 1], strides = [1, 1]} : vector<8x256xf32> to vector<8x1xf32>
    %523 = tpu.concatenate %521, %522 in 1 : vector<8x255xf32>, vector<8x1xf32> -> vector<8x256xf32>
    %524 = arith.mulf %523, %40 : vector<8x256xf32>
    %525 = arith.addf %520, %524 : vector<8x256xf32>
    %526 = vector.extract_strided_slice %499 {offsets = [0, 15], sizes = [8, 241], strides = [1, 1]} : vector<8x256xf32> to vector<8x241xf32>
    %527 = vector.extract_strided_slice %499 {offsets = [0, 0], sizes = [8, 15], strides = [1, 1]} : vector<8x256xf32> to vector<8x15xf32>
    %528 = tpu.concatenate %526, %527 in 1 : vector<8x241xf32>, vector<8x15xf32> -> vector<8x256xf32>
    %529 = arith.mulf %528, %45 : vector<8x256xf32>
    %530 = arith.addf %525, %529 : vector<8x256xf32>
    %531 = vector.extract_strided_slice %499 {offsets = [0, 16], sizes = [8, 240], strides = [1, 1]} : vector<8x256xf32> to vector<8x240xf32>
    %532 = vector.extract_strided_slice %499 {offsets = [0, 0], sizes = [8, 16], strides = [1, 1]} : vector<8x256xf32> to vector<8x16xf32>
    %533 = tpu.concatenate %531, %532 in 1 : vector<8x240xf32>, vector<8x16xf32> -> vector<8x256xf32>
    %534 = arith.mulf %533, %50 : vector<8x256xf32>
    %535 = arith.addf %530, %534 : vector<8x256xf32>
    %536 = vector.extract_strided_slice %499 {offsets = [0, 17], sizes = [8, 239], strides = [1, 1]} : vector<8x256xf32> to vector<8x239xf32>
    %537 = vector.extract_strided_slice %499 {offsets = [0, 0], sizes = [8, 17], strides = [1, 1]} : vector<8x256xf32> to vector<8x17xf32>
    %538 = tpu.concatenate %536, %537 in 1 : vector<8x239xf32>, vector<8x17xf32> -> vector<8x256xf32>
    %539 = arith.mulf %538, %55 : vector<8x256xf32>
    %540 = arith.addf %535, %539 : vector<8x256xf32>
    %c0_75 = arith.constant 0 : index
    %c0_76 = arith.constant 0 : index
    %541 = vector.load %arg6[%c0_75, %c0_76] : memref<8x1xf32, #tpu.memory_space<vmem>>, vector<8x1xf32>
    %542 = vector.broadcast %541 : vector<8x1xf32> to vector<8x256xf32>
    %543 = arith.addf %540, %542 : vector<8x256xf32>
    %cst_77 = arith.constant 0.000000e+00 : f32
    %544 = vector.broadcast %cst_77 : f32 to vector<8x256xf32>
    %545 = arith.maximumf %543, %544 : vector<8x256xf32>
    %cst_78 = arith.constant 0.012557229 : f32
    %546 = vector.broadcast %cst_78 : f32 to vector<8x256xf32>
    %547 = arith.mulf %546, %545 : vector<8x256xf32>
    %548 = arith.addf %488, %547 : vector<8x256xf32>
    %549 = vector.extract_strided_slice %10 {offsets = [0, 255], sizes = [8, 1], strides = [1, 1]} : vector<8x256xf32> to vector<8x1xf32>
    %550 = vector.extract_strided_slice %10 {offsets = [0, 0], sizes = [8, 255], strides = [1, 1]} : vector<8x256xf32> to vector<8x255xf32>
    %551 = tpu.concatenate %549, %550 in 1 : vector<8x1xf32>, vector<8x255xf32> -> vector<8x256xf32>
    %552 = vector.extract_strided_slice %10 {offsets = [0, 15], sizes = [8, 241], strides = [1, 1]} : vector<8x256xf32> to vector<8x241xf32>
    %553 = vector.extract_strided_slice %10 {offsets = [0, 0], sizes = [8, 15], strides = [1, 1]} : vector<8x256xf32> to vector<8x15xf32>
    %554 = tpu.concatenate %552, %553 in 1 : vector<8x241xf32>, vector<8x15xf32> -> vector<8x256xf32>
    %c9 = arith.constant 9 : index
    %c0_79 = arith.constant 0 : index
    %555 = vector.load %arg8[%c9, %c0_79] : memref<12x256xf32, #tpu.memory_space<vmem>>, vector<1x256xf32>
    %556 = arith.subf %554, %551 : vector<8x256xf32>
    %557 = vector.broadcast %555 : vector<1x256xf32> to vector<8x256xf32>
    %558 = arith.mulf %556, %557 : vector<8x256xf32>
    %559 = arith.addf %551, %558 : vector<8x256xf32>
    %560 = arith.mulf %559, %35 : vector<8x256xf32>
    %561 = vector.extract_strided_slice %559 {offsets = [0, 239], sizes = [8, 17], strides = [1, 1]} : vector<8x256xf32> to vector<8x17xf32>
    %562 = vector.extract_strided_slice %559 {offsets = [0, 0], sizes = [8, 239], strides = [1, 1]} : vector<8x256xf32> to vector<8x239xf32>
    %563 = tpu.concatenate %561, %562 in 1 : vector<8x17xf32>, vector<8x239xf32> -> vector<8x256xf32>
    %564 = arith.mulf %563, %15 : vector<8x256xf32>
    %565 = arith.addf %560, %564 : vector<8x256xf32>
    %566 = vector.extract_strided_slice %559 {offsets = [0, 240], sizes = [8, 16], strides = [1, 1]} : vector<8x256xf32> to vector<8x16xf32>
    %567 = vector.extract_strided_slice %559 {offsets = [0, 0], sizes = [8, 240], strides = [1, 1]} : vector<8x256xf32> to vector<8x240xf32>
    %568 = tpu.concatenate %566, %567 in 1 : vector<8x16xf32>, vector<8x240xf32> -> vector<8x256xf32>
    %569 = arith.mulf %568, %20 : vector<8x256xf32>
    %570 = arith.addf %565, %569 : vector<8x256xf32>
    %571 = vector.extract_strided_slice %559 {offsets = [0, 241], sizes = [8, 15], strides = [1, 1]} : vector<8x256xf32> to vector<8x15xf32>
    %572 = vector.extract_strided_slice %559 {offsets = [0, 0], sizes = [8, 241], strides = [1, 1]} : vector<8x256xf32> to vector<8x241xf32>
    %573 = tpu.concatenate %571, %572 in 1 : vector<8x15xf32>, vector<8x241xf32> -> vector<8x256xf32>
    %574 = arith.mulf %573, %25 : vector<8x256xf32>
    %575 = arith.addf %570, %574 : vector<8x256xf32>
    %576 = vector.extract_strided_slice %559 {offsets = [0, 255], sizes = [8, 1], strides = [1, 1]} : vector<8x256xf32> to vector<8x1xf32>
    %577 = vector.extract_strided_slice %559 {offsets = [0, 0], sizes = [8, 255], strides = [1, 1]} : vector<8x256xf32> to vector<8x255xf32>
    %578 = tpu.concatenate %576, %577 in 1 : vector<8x1xf32>, vector<8x255xf32> -> vector<8x256xf32>
    %579 = arith.mulf %578, %30 : vector<8x256xf32>
    %580 = arith.addf %575, %579 : vector<8x256xf32>
    %581 = vector.extract_strided_slice %559 {offsets = [0, 1], sizes = [8, 255], strides = [1, 1]} : vector<8x256xf32> to vector<8x255xf32>
    %582 = vector.extract_strided_slice %559 {offsets = [0, 0], sizes = [8, 1], strides = [1, 1]} : vector<8x256xf32> to vector<8x1xf32>
    %583 = tpu.concatenate %581, %582 in 1 : vector<8x255xf32>, vector<8x1xf32> -> vector<8x256xf32>
    %584 = arith.mulf %583, %40 : vector<8x256xf32>
    %585 = arith.addf %580, %584 : vector<8x256xf32>
    %586 = vector.extract_strided_slice %559 {offsets = [0, 15], sizes = [8, 241], strides = [1, 1]} : vector<8x256xf32> to vector<8x241xf32>
    %587 = vector.extract_strided_slice %559 {offsets = [0, 0], sizes = [8, 15], strides = [1, 1]} : vector<8x256xf32> to vector<8x15xf32>
    %588 = tpu.concatenate %586, %587 in 1 : vector<8x241xf32>, vector<8x15xf32> -> vector<8x256xf32>
    %589 = arith.mulf %588, %45 : vector<8x256xf32>
    %590 = arith.addf %585, %589 : vector<8x256xf32>
    %591 = vector.extract_strided_slice %559 {offsets = [0, 16], sizes = [8, 240], strides = [1, 1]} : vector<8x256xf32> to vector<8x240xf32>
    %592 = vector.extract_strided_slice %559 {offsets = [0, 0], sizes = [8, 16], strides = [1, 1]} : vector<8x256xf32> to vector<8x16xf32>
    %593 = tpu.concatenate %591, %592 in 1 : vector<8x240xf32>, vector<8x16xf32> -> vector<8x256xf32>
    %594 = arith.mulf %593, %50 : vector<8x256xf32>
    %595 = arith.addf %590, %594 : vector<8x256xf32>
    %596 = vector.extract_strided_slice %559 {offsets = [0, 17], sizes = [8, 239], strides = [1, 1]} : vector<8x256xf32> to vector<8x239xf32>
    %597 = vector.extract_strided_slice %559 {offsets = [0, 0], sizes = [8, 17], strides = [1, 1]} : vector<8x256xf32> to vector<8x17xf32>
    %598 = tpu.concatenate %596, %597 in 1 : vector<8x239xf32>, vector<8x17xf32> -> vector<8x256xf32>
    %599 = arith.mulf %598, %55 : vector<8x256xf32>
    %600 = arith.addf %595, %599 : vector<8x256xf32>
    %c0_80 = arith.constant 0 : index
    %c0_81 = arith.constant 0 : index
    %601 = vector.load %arg6[%c0_80, %c0_81] : memref<8x1xf32, #tpu.memory_space<vmem>>, vector<8x1xf32>
    %602 = vector.broadcast %601 : vector<8x1xf32> to vector<8x256xf32>
    %603 = arith.addf %600, %602 : vector<8x256xf32>
    %cst_82 = arith.constant 0.000000e+00 : f32
    %604 = vector.broadcast %cst_82 : f32 to vector<8x256xf32>
    %605 = arith.maximumf %603, %604 : vector<8x256xf32>
    %cst_83 = arith.constant 0.0742972717 : f32
    %606 = vector.broadcast %cst_83 : f32 to vector<8x256xf32>
    %607 = arith.mulf %606, %605 : vector<8x256xf32>
    %608 = arith.addf %548, %607 : vector<8x256xf32>
    %609 = vector.extract_strided_slice %10 {offsets = [0, 254], sizes = [8, 2], strides = [1, 1]} : vector<8x256xf32> to vector<8x2xf32>
    %610 = vector.extract_strided_slice %10 {offsets = [0, 0], sizes = [8, 254], strides = [1, 1]} : vector<8x256xf32> to vector<8x254xf32>
    %611 = tpu.concatenate %609, %610 in 1 : vector<8x2xf32>, vector<8x254xf32> -> vector<8x256xf32>
    %612 = vector.extract_strided_slice %10 {offsets = [0, 14], sizes = [8, 242], strides = [1, 1]} : vector<8x256xf32> to vector<8x242xf32>
    %613 = vector.extract_strided_slice %10 {offsets = [0, 0], sizes = [8, 14], strides = [1, 1]} : vector<8x256xf32> to vector<8x14xf32>
    %614 = tpu.concatenate %612, %613 in 1 : vector<8x242xf32>, vector<8x14xf32> -> vector<8x256xf32>
    %c10 = arith.constant 10 : index
    %c0_84 = arith.constant 0 : index
    %615 = vector.load %arg8[%c10, %c0_84] : memref<12x256xf32, #tpu.memory_space<vmem>>, vector<1x256xf32>
    %616 = arith.subf %614, %611 : vector<8x256xf32>
    %617 = vector.broadcast %615 : vector<1x256xf32> to vector<8x256xf32>
    %618 = arith.mulf %616, %617 : vector<8x256xf32>
    %619 = arith.addf %611, %618 : vector<8x256xf32>
    %620 = arith.mulf %619, %35 : vector<8x256xf32>
    %621 = vector.extract_strided_slice %619 {offsets = [0, 239], sizes = [8, 17], strides = [1, 1]} : vector<8x256xf32> to vector<8x17xf32>
    %622 = vector.extract_strided_slice %619 {offsets = [0, 0], sizes = [8, 239], strides = [1, 1]} : vector<8x256xf32> to vector<8x239xf32>
    %623 = tpu.concatenate %621, %622 in 1 : vector<8x17xf32>, vector<8x239xf32> -> vector<8x256xf32>
    %624 = arith.mulf %623, %15 : vector<8x256xf32>
    %625 = arith.addf %620, %624 : vector<8x256xf32>
    %626 = vector.extract_strided_slice %619 {offsets = [0, 240], sizes = [8, 16], strides = [1, 1]} : vector<8x256xf32> to vector<8x16xf32>
    %627 = vector.extract_strided_slice %619 {offsets = [0, 0], sizes = [8, 240], strides = [1, 1]} : vector<8x256xf32> to vector<8x240xf32>
    %628 = tpu.concatenate %626, %627 in 1 : vector<8x16xf32>, vector<8x240xf32> -> vector<8x256xf32>
    %629 = arith.mulf %628, %20 : vector<8x256xf32>
    %630 = arith.addf %625, %629 : vector<8x256xf32>
    %631 = vector.extract_strided_slice %619 {offsets = [0, 241], sizes = [8, 15], strides = [1, 1]} : vector<8x256xf32> to vector<8x15xf32>
    %632 = vector.extract_strided_slice %619 {offsets = [0, 0], sizes = [8, 241], strides = [1, 1]} : vector<8x256xf32> to vector<8x241xf32>
    %633 = tpu.concatenate %631, %632 in 1 : vector<8x15xf32>, vector<8x241xf32> -> vector<8x256xf32>
    %634 = arith.mulf %633, %25 : vector<8x256xf32>
    %635 = arith.addf %630, %634 : vector<8x256xf32>
    %636 = vector.extract_strided_slice %619 {offsets = [0, 255], sizes = [8, 1], strides = [1, 1]} : vector<8x256xf32> to vector<8x1xf32>
    %637 = vector.extract_strided_slice %619 {offsets = [0, 0], sizes = [8, 255], strides = [1, 1]} : vector<8x256xf32> to vector<8x255xf32>
    %638 = tpu.concatenate %636, %637 in 1 : vector<8x1xf32>, vector<8x255xf32> -> vector<8x256xf32>
    %639 = arith.mulf %638, %30 : vector<8x256xf32>
    %640 = arith.addf %635, %639 : vector<8x256xf32>
    %641 = vector.extract_strided_slice %619 {offsets = [0, 1], sizes = [8, 255], strides = [1, 1]} : vector<8x256xf32> to vector<8x255xf32>
    %642 = vector.extract_strided_slice %619 {offsets = [0, 0], sizes = [8, 1], strides = [1, 1]} : vector<8x256xf32> to vector<8x1xf32>
    %643 = tpu.concatenate %641, %642 in 1 : vector<8x255xf32>, vector<8x1xf32> -> vector<8x256xf32>
    %644 = arith.mulf %643, %40 : vector<8x256xf32>
    %645 = arith.addf %640, %644 : vector<8x256xf32>
    %646 = vector.extract_strided_slice %619 {offsets = [0, 15], sizes = [8, 241], strides = [1, 1]} : vector<8x256xf32> to vector<8x241xf32>
    %647 = vector.extract_strided_slice %619 {offsets = [0, 0], sizes = [8, 15], strides = [1, 1]} : vector<8x256xf32> to vector<8x15xf32>
    %648 = tpu.concatenate %646, %647 in 1 : vector<8x241xf32>, vector<8x15xf32> -> vector<8x256xf32>
    %649 = arith.mulf %648, %45 : vector<8x256xf32>
    %650 = arith.addf %645, %649 : vector<8x256xf32>
    %651 = vector.extract_strided_slice %619 {offsets = [0, 16], sizes = [8, 240], strides = [1, 1]} : vector<8x256xf32> to vector<8x240xf32>
    %652 = vector.extract_strided_slice %619 {offsets = [0, 0], sizes = [8, 16], strides = [1, 1]} : vector<8x256xf32> to vector<8x16xf32>
    %653 = tpu.concatenate %651, %652 in 1 : vector<8x240xf32>, vector<8x16xf32> -> vector<8x256xf32>
    %654 = arith.mulf %653, %50 : vector<8x256xf32>
    %655 = arith.addf %650, %654 : vector<8x256xf32>
    %656 = vector.extract_strided_slice %619 {offsets = [0, 17], sizes = [8, 239], strides = [1, 1]} : vector<8x256xf32> to vector<8x239xf32>
    %657 = vector.extract_strided_slice %619 {offsets = [0, 0], sizes = [8, 17], strides = [1, 1]} : vector<8x256xf32> to vector<8x17xf32>
    %658 = tpu.concatenate %656, %657 in 1 : vector<8x239xf32>, vector<8x17xf32> -> vector<8x256xf32>
    %659 = arith.mulf %658, %55 : vector<8x256xf32>
    %660 = arith.addf %655, %659 : vector<8x256xf32>
    %c0_85 = arith.constant 0 : index
    %c0_86 = arith.constant 0 : index
    %661 = vector.load %arg6[%c0_85, %c0_86] : memref<8x1xf32, #tpu.memory_space<vmem>>, vector<8x1xf32>
    %662 = vector.broadcast %661 : vector<8x1xf32> to vector<8x256xf32>
    %663 = arith.addf %660, %662 : vector<8x256xf32>
    %cst_87 = arith.constant 0.000000e+00 : f32
    %664 = vector.broadcast %cst_87 : f32 to vector<8x256xf32>
    %665 = arith.maximumf %663, %664 : vector<8x256xf32>
    %cst_88 = arith.constant 0.0381454937 : f32
    %666 = vector.broadcast %cst_88 : f32 to vector<8x256xf32>
    %667 = arith.mulf %666, %665 : vector<8x256xf32>
    %668 = arith.addf %608, %667 : vector<8x256xf32>
    %669 = vector.extract_strided_slice %10 {offsets = [0, 253], sizes = [8, 3], strides = [1, 1]} : vector<8x256xf32> to vector<8x3xf32>
    %670 = vector.extract_strided_slice %10 {offsets = [0, 0], sizes = [8, 253], strides = [1, 1]} : vector<8x256xf32> to vector<8x253xf32>
    %671 = tpu.concatenate %669, %670 in 1 : vector<8x3xf32>, vector<8x253xf32> -> vector<8x256xf32>
    %672 = vector.extract_strided_slice %10 {offsets = [0, 13], sizes = [8, 243], strides = [1, 1]} : vector<8x256xf32> to vector<8x243xf32>
    %673 = vector.extract_strided_slice %10 {offsets = [0, 0], sizes = [8, 13], strides = [1, 1]} : vector<8x256xf32> to vector<8x13xf32>
    %674 = tpu.concatenate %672, %673 in 1 : vector<8x243xf32>, vector<8x13xf32> -> vector<8x256xf32>
    %c11 = arith.constant 11 : index
    %c0_89 = arith.constant 0 : index
    %675 = vector.load %arg8[%c11, %c0_89] : memref<12x256xf32, #tpu.memory_space<vmem>>, vector<1x256xf32>
    %676 = arith.subf %674, %671 : vector<8x256xf32>
    %677 = vector.broadcast %675 : vector<1x256xf32> to vector<8x256xf32>
    %678 = arith.mulf %676, %677 : vector<8x256xf32>
    %679 = arith.addf %671, %678 : vector<8x256xf32>
    %680 = arith.mulf %679, %35 : vector<8x256xf32>
    %681 = vector.extract_strided_slice %679 {offsets = [0, 239], sizes = [8, 17], strides = [1, 1]} : vector<8x256xf32> to vector<8x17xf32>
    %682 = vector.extract_strided_slice %679 {offsets = [0, 0], sizes = [8, 239], strides = [1, 1]} : vector<8x256xf32> to vector<8x239xf32>
    %683 = tpu.concatenate %681, %682 in 1 : vector<8x17xf32>, vector<8x239xf32> -> vector<8x256xf32>
    %684 = arith.mulf %683, %15 : vector<8x256xf32>
    %685 = arith.addf %680, %684 : vector<8x256xf32>
    %686 = vector.extract_strided_slice %679 {offsets = [0, 240], sizes = [8, 16], strides = [1, 1]} : vector<8x256xf32> to vector<8x16xf32>
    %687 = vector.extract_strided_slice %679 {offsets = [0, 0], sizes = [8, 240], strides = [1, 1]} : vector<8x256xf32> to vector<8x240xf32>
    %688 = tpu.concatenate %686, %687 in 1 : vector<8x16xf32>, vector<8x240xf32> -> vector<8x256xf32>
    %689 = arith.mulf %688, %20 : vector<8x256xf32>
    %690 = arith.addf %685, %689 : vector<8x256xf32>
    %691 = vector.extract_strided_slice %679 {offsets = [0, 241], sizes = [8, 15], strides = [1, 1]} : vector<8x256xf32> to vector<8x15xf32>
    %692 = vector.extract_strided_slice %679 {offsets = [0, 0], sizes = [8, 241], strides = [1, 1]} : vector<8x256xf32> to vector<8x241xf32>
    %693 = tpu.concatenate %691, %692 in 1 : vector<8x15xf32>, vector<8x241xf32> -> vector<8x256xf32>
    %694 = arith.mulf %693, %25 : vector<8x256xf32>
    %695 = arith.addf %690, %694 : vector<8x256xf32>
    %696 = vector.extract_strided_slice %679 {offsets = [0, 255], sizes = [8, 1], strides = [1, 1]} : vector<8x256xf32> to vector<8x1xf32>
    %697 = vector.extract_strided_slice %679 {offsets = [0, 0], sizes = [8, 255], strides = [1, 1]} : vector<8x256xf32> to vector<8x255xf32>
    %698 = tpu.concatenate %696, %697 in 1 : vector<8x1xf32>, vector<8x255xf32> -> vector<8x256xf32>
    %699 = arith.mulf %698, %30 : vector<8x256xf32>
    %700 = arith.addf %695, %699 : vector<8x256xf32>
    %701 = vector.extract_strided_slice %679 {offsets = [0, 1], sizes = [8, 255], strides = [1, 1]} : vector<8x256xf32> to vector<8x255xf32>
    %702 = vector.extract_strided_slice %679 {offsets = [0, 0], sizes = [8, 1], strides = [1, 1]} : vector<8x256xf32> to vector<8x1xf32>
    %703 = tpu.concatenate %701, %702 in 1 : vector<8x255xf32>, vector<8x1xf32> -> vector<8x256xf32>
    %704 = arith.mulf %703, %40 : vector<8x256xf32>
    %705 = arith.addf %700, %704 : vector<8x256xf32>
    %706 = vector.extract_strided_slice %679 {offsets = [0, 15], sizes = [8, 241], strides = [1, 1]} : vector<8x256xf32> to vector<8x241xf32>
    %707 = vector.extract_strided_slice %679 {offsets = [0, 0], sizes = [8, 15], strides = [1, 1]} : vector<8x256xf32> to vector<8x15xf32>
    %708 = tpu.concatenate %706, %707 in 1 : vector<8x241xf32>, vector<8x15xf32> -> vector<8x256xf32>
    %709 = arith.mulf %708, %45 : vector<8x256xf32>
    %710 = arith.addf %705, %709 : vector<8x256xf32>
    %711 = vector.extract_strided_slice %679 {offsets = [0, 16], sizes = [8, 240], strides = [1, 1]} : vector<8x256xf32> to vector<8x240xf32>
    %712 = vector.extract_strided_slice %679 {offsets = [0, 0], sizes = [8, 16], strides = [1, 1]} : vector<8x256xf32> to vector<8x16xf32>
    %713 = tpu.concatenate %711, %712 in 1 : vector<8x240xf32>, vector<8x16xf32> -> vector<8x256xf32>
    %714 = arith.mulf %713, %50 : vector<8x256xf32>
    %715 = arith.addf %710, %714 : vector<8x256xf32>
    %716 = vector.extract_strided_slice %679 {offsets = [0, 17], sizes = [8, 239], strides = [1, 1]} : vector<8x256xf32> to vector<8x239xf32>
    %717 = vector.extract_strided_slice %679 {offsets = [0, 0], sizes = [8, 17], strides = [1, 1]} : vector<8x256xf32> to vector<8x17xf32>
    %718 = tpu.concatenate %716, %717 in 1 : vector<8x239xf32>, vector<8x17xf32> -> vector<8x256xf32>
    %719 = arith.mulf %718, %55 : vector<8x256xf32>
    %720 = arith.addf %715, %719 : vector<8x256xf32>
    %c0_90 = arith.constant 0 : index
    %c0_91 = arith.constant 0 : index
    %721 = vector.load %arg6[%c0_90, %c0_91] : memref<8x1xf32, #tpu.memory_space<vmem>>, vector<8x1xf32>
    %722 = vector.broadcast %721 : vector<8x1xf32> to vector<8x256xf32>
    %723 = arith.addf %720, %722 : vector<8x256xf32>
    %cst_92 = arith.constant 0.000000e+00 : f32
    %724 = vector.broadcast %cst_92 : f32 to vector<8x256xf32>
    %725 = arith.maximumf %723, %724 : vector<8x256xf32>
    %cst_93 = arith.constant 0.012557229 : f32
    %726 = vector.broadcast %cst_93 : f32 to vector<8x256xf32>
    %727 = arith.mulf %726, %725 : vector<8x256xf32>
    %728 = arith.addf %668, %727 : vector<8x256xf32>
    %729 = arith.addf %0, %728 : vector<8x256xf32>
    %c0_94 = arith.constant 0 : index
    %c0_95 = arith.constant 0 : index
    %730 = vector.load %arg9[%c0_94, %c0_95] : memref<8x256xf32, #tpu.memory_space<vmem>>, vector<8x256xf32>
    tpu.vector_store %arg9[%c0_94, %c0_95], %729 {strides = array<i32>} : memref<8x256xf32, #tpu.memory_space<vmem>>, vector<8x256xf32>,
    return
  }
  func.func @transform_0(%arg0: i32) -> (i32, i32) {
    %c0_i32 = arith.constant 0 : i32
    %c0_i32_0 = arith.constant 0 : i32
    %c0_i32_1 = arith.constant 0 : i32
    return %c0_i32, %c0_i32_0 : i32, i32
  }
  func.func @transform_1(%arg0: i32) -> (i32, i32) {
    %c0_i32 = arith.constant 0 : i32
    %c0_i32_0 = arith.constant 0 : i32
    %c0_i32_1 = arith.constant 0 : i32
    return %c0_i32, %c0_i32_0 : i32, i32
  }
  func.func @transform_2(%arg0: i32) -> (i32, i32) {
    %c0_i32 = arith.constant 0 : i32
    %c0_i32_0 = arith.constant 0 : i32
    %c0_i32_1 = arith.constant 0 : i32
    return %c0_i32, %c0_i32_0 : i32, i32
  }
  func.func @transform_3(%arg0: i32) -> (i32, i32) {
    %c0_i32 = arith.constant 0 : i32
    %c0_i32_0 = arith.constant 0 : i32
    %c0_i32_1 = arith.constant 0 : i32
    return %c0_i32, %c0_i32_0 : i32, i32
  }
  func.func @transform_4(%arg0: i32) -> (i32, i32) {
    %c0_i32 = arith.constant 0 : i32
    %c0_i32_0 = arith.constant 0 : i32
    %c0_i32_1 = arith.constant 0 : i32
    return %c0_i32, %c0_i32_0 : i32, i32
  }
  func.func @transform_5(%arg0: i32) -> (i32, i32) {
    %c0_i32 = arith.constant 0 : i32
    %c0_i32_0 = arith.constant 0 : i32
    %c0_i32_1 = arith.constant 0 : i32
    return %c0_i32, %c0_i32_0 : i32, i32
  }
  func.func @transform_6(%arg0: i32) -> (i32, i32) {
    %c0_i32 = arith.constant 0 : i32
    %c0_i32_0 = arith.constant 0 : i32
    %c0_i32_1 = arith.constant 0 : i32
    return %c0_i32, %c0_i32_0 : i32, i32
  }
  func.func @transform_7(%arg0: i32) -> (i32, i32) {
    %c0_i32 = arith.constant 0 : i32
    %c0_i32_0 = arith.constant 0 : i32
    %c0_i32_1 = arith.constant 0 : i32
    return %c0_i32, %c0_i32_0 : i32, i32
  }
  func.func @transform_8(%arg0: i32) -> (i32, i32) {
    %c0_i32 = arith.constant 0 : i32
    %c0_i32_0 = arith.constant 0 : i32
    %c0_i32_1 = arith.constant 0 : i32
    return %c0_i32, %c0_i32_0 : i32, i32
  }
}

</mosaic_0001>

<llo_original>
// kernel: tile.27
$region0: #{tile.27}
  #allocation0 [shape = 's32[1]{0}', space=sflag, size = 0x4, scoped, tag = 'scoped memory for tile.27']
  %s0 = inlined_call_operand.vmem [shape: f32[4], index: 0, kind: input, shape index: {}]
  %s1 = inlined_call_operand.vmem [shape: f32[2,4], index: 1, kind: output, shape index: {}]
  // Predicated region
  $region2: #{tile.27} parent=0 // pred_check
    _
  $region3: #{tile.27} parent=0 // pred_check_branch
    %3 = sbr.rel (0) target = $region5
  $region4: #{tile.27} parent=0 // pred_region
    _
  $region5: #{tile.27} parent=0 // pred_fallthru
    _
  %v4 = vld [vmem:[%s0] ss:$0 sm:$0xff]
  %5 = vst [vmem:[%s1] sm:$0x3] %v4

// kernel: tile.2
$region0: #{tile.2}
  %s0 = inlined_call_operand.vmem [shape: f32[2,4], index: 0, kind: input, shape index: {}]
  %s1 = inlined_call_operand.vmem [shape: f32[8,1], index: 1, kind: output, shape index: {}]
  $region1: #{tile.2} parent=0
    #allocation0 [shape = 'u8[4096]{0}', space=vmem, size = 0x1000, scoped, tag = 'scoped mem for input reshape']
    %s3 = sshllo.u32 0, 2
    %v4 = vld [vmem:[%s0] sm:%s3]
    %5 = vst [vmem:[#allocation0] sm:%s3] %v4
    %v6 = vld [vmem:[#allocation0] sm:$0x3]
    %vm7 = vcmask 7168
    %8 = vst.msk [vmem:[%s1] ss:$4 sm:$0x3] %vm7, %v6
    %v9 = vld [vmem:[#allocation0] sm:$0x3]
    %10 = vrot.lane.b32.xlu0 %v9, 127
    %v11 = vpop.permute.xlu0 %10
    %vm12 = vcmask 7168
    %s13 = scalar_lea.vmem %s1, 1
    %14 = vst.msk [vmem:[%s13] ss:$4 sm:$0x3] %vm12, %v11
    %v15 = vld [vmem:[#allocation0] sm:$0x3]
    %16 = vrot.lane.b32.xlu0 %v15, 126
    %v17 = vpop.permute.xlu0 %16
    %vm18 = vcmask 7168
    %s19 = scalar_lea.vmem %s1, 2
    %20 = vst.msk [vmem:[%s19] ss:$4 sm:$0x3] %vm18, %v17
    %v21 = vld [vmem:[#allocation0] sm:$0x3]
    %22 = vrot.lane.b32.xlu0 %v21, 125
    %v23 = vpop.permute.xlu0 %22
    %vm24 = vcmask 7168
    %s25 = scalar_lea.vmem %s1, 3
    %26 = vst.msk [vmem:[%s25] ss:$4 sm:$0x3] %vm24, %v23

// kernel: resa_forward.1
$region0: #{resa_forward.1}
  #allocation0 [shape = 'u32[]', space=smem, size = 0x4, offset = 0x4, fixed_abs, tag = 'smem constant byte address 0x4 - core index']
  #allocation1 [shape = 'u32[144,128]{1,0:T(1,128)}', space=vmem, size = 0x12000, scoped, tag = 'internal scratch']
  %s0 = inlined_call_operand.vmem [shape: f32[8,256], index: 0, kind: input, shape index: {}]
  %s1 = inlined_call_operand.vmem [shape: f32[8,8], index: 1, kind: input, shape index: {}]
  %s2 = inlined_call_operand.vmem [shape: f32[8,1], index: 2, kind: input, shape index: {}]
  %s3 = inlined_call_operand.vmem [shape: f32[8,1], index: 3, kind: input, shape index: {}]
  %s4 = inlined_call_operand.vmem [shape: f32[8,9], index: 4, kind: input, shape index: {}]
  %s5 = inlined_call_operand.vmem [shape: f32[8,1], index: 5, kind: input, shape index: {}]
  %s6 = inlined_call_operand.vmem [shape: f32[9,256], index: 6, kind: input, shape index: {}]
  %s7 = inlined_call_operand.vmem [shape: f32[12,256], index: 7, kind: input, shape index: {}]
  %s8 = inlined_call_operand.vmem [shape: f32[8,256], index: 8, kind: output, shape index: {}]
  %s9 = sld [smem:[#allocation0]]
  $region42: #{resa_forward.1} parent=0
    _
  %s11 = ssub.s32 1, %s9
  %s12 = scalar_select 0, %s11, %s9
  // Predicated region
  $region2: #{resa_forward.1} parent=0 // pred_check
    _
  $region3: #{resa_forward.1} parent=0 // pred_check_branch
    %14 = sbr.rel (0) target = $region5
  $region4: #{resa_forward.1} parent=0 // pred_region
    _
  $region5: #{resa_forward.1} parent=0 // pred_fallthru
    _
  // Predicated region
  $region6: #{resa_forward.1} parent=0 // pred_check
    _
  $region7: #{resa_forward.1} parent=0 // pred_check_branch
    %16 = sbr.rel (0) target = $region9
  $region8: #{resa_forward.1} parent=0 // pred_region
    _
  $region9: #{resa_forward.1} parent=0 // pred_fallthru
    _
  // Predicated region
  $region10: #{resa_forward.1} parent=0 // pred_check
    _
  $region11: #{resa_forward.1} parent=0 // pred_check_branch
    %18 = sbr.rel (0) target = $region13
  $region12: #{resa_forward.1} parent=0 // pred_region
    _
  $region13: #{resa_forward.1} parent=0 // pred_fallthru
    _
  // Predicated region
  $region14: #{resa_forward.1} parent=0 // pred_check
    _
  $region15: #{resa_forward.1} parent=0 // pred_check_branch
    %20 = sbr.rel (0) target = $region17
  $region16: #{resa_forward.1} parent=0 // pred_region
    _
  $region17: #{resa_forward.1} parent=0 // pred_fallthru
    _
  // Predicated region
  $region18: #{resa_forward.1} parent=0 // pred_check
    _
  $region19: #{resa_forward.1} parent=0 // pred_check_branch
    %22 = sbr.rel (0) target = $region21
  $region20: #{resa_forward.1} parent=0 // pred_region
    _
  $region21: #{resa_forward.1} parent=0 // pred_fallthru
    _
  // Predicated region
  $region22: #{resa_forward.1} parent=0 // pred_check
    _
  $region23: #{resa_forward.1} parent=0 // pred_check_branch
    %24 = sbr.rel (0) target = $region25
  $region24: #{resa_forward.1} parent=0 // pred_region
    _
  $region25: #{resa_forward.1} parent=0 // pred_fallthru
    _
  // Predicated region
  $region26: #{resa_forward.1} parent=0 // pred_check
    _
  $region27: #{resa_forward.1} parent=0 // pred_check_branch
    %26 = sbr.rel (0) target = $region29
  $region28: #{resa_forward.1} parent=0 // pred_region
    _
  $region29: #{resa_forward.1} parent=0 // pred_fallthru
    _
  // Predicated region
  $region30: #{resa_forward.1} parent=0 // pred_check
    _
  $region31: #{resa_forward.1} parent=0 // pred_check_branch
    %28 = sbr.rel (0) target = $region33
  $region32: #{resa_forward.1} parent=0 // pred_region
    _
  $region33: #{resa_forward.1} parent=0 // pred_fallthru
    _
  %v29 = vld [vmem:[%s0] sm:$0xff]
  %v30 = vld [vmem:[%s0 + $0x8] sm:$0xff]
  %v31 = vld [vmem:[%s1] sm:$0xff]
  %vm32 = vcmask 64512
  %v34 = vsel %vm32, %v31, 0
  %36 = vmatprep.subr.mxu0 %v30
  %37 = vmatpush1.msra.mxu0 %v29
  %38 = vmatprep.subr.mxu0 0.0
  %39 = vmatpush1.msra.mxu0 0.0
  %40 = vmatprep.subr.mxu0 0.0
  %41 = vmatpush1.msra.mxu0 0.0
  %42 = vmatprep.subr.mxu0 0.0
  %43 = vmatpush1.msra.mxu0 0.0
  %44 = vmatprep.subr.mxu0 0.0
  %45 = vmatpush1.msra.mxu0 0.0
  %46 = vmatprep.subr.mxu0 0.0
  %47 = vmatpush1.msra.mxu0 0.0
  %48 = vmatprep.subr.mxu0 0.0
  %49 = vmatpush1.msra.mxu0 0.0
  %50 = vmatprep.subr.mxu0 0.0
  %51 = vmatpush1.msra.mxu0 0.0
  %52 = vmatprep.subr.mxu0 0.0
  %53 = vmatpush1.msra.mxu0 0.0
  %54 = vmatprep.subr.mxu0 0.0
  %55 = vmatpush1.msra.mxu0 0.0
  %56 = vmatprep.subr.mxu0 0.0
  %57 = vmatpush1.msra.mxu0 0.0
  %58 = vmatprep.subr.mxu0 0.0
  %59 = vmatpush1.msra.mxu0 0.0
  %60 = vmatprep.subr.mxu0 0.0
  %61 = vmatpush1.msra.mxu0 0.0
  %62 = vmatprep.subr.mxu0 0.0
  %63 = vmatpush1.msra.mxu0 0.0
  %64 = vmatprep.subr.mxu0 0.0
  %65 = vmatpush1.msra.mxu0 0.0
  %66 = vmatprep.subr.mxu0 0.0
  %67 = vmatpush1.msra.mxu0 0.0
  %68 = vmatprep.subr.mxu0 0.0
  %69 = vmatpush1.msra.mxu0 0.0
  %70 = vmatprep.subr.mxu0 0.0
  %71 = vmatpush1.msra.mxu0 0.0
  %72 = vmatprep.subr.mxu0 0.0
  %73 = vmatpush1.msra.mxu0 0.0
  %74 = vmatprep.subr.mxu0 0.0
  %75 = vmatpush1.msra.mxu0 0.0
  %76 = vmatprep.subr.mxu0 0.0
  %77 = vmatpush1.msra.mxu0 0.0
  %78 = vmatprep.subr.mxu0 0.0
  %79 = vmatpush1.msra.mxu0 0.0
  %80 = vmatprep.subr.mxu0 0.0
  %81 = vmatpush1.msra.mxu0 0.0
  %82 = vmatprep.subr.mxu0 0.0
  %83 = vmatpush1.msra.mxu0 0.0
  %84 = vmatprep.subr.mxu0 0.0
  %85 = vmatpush1.msra.mxu0 0.0
  %86 = vmatprep.subr.mxu0 0.0
  %87 = vmatpush1.msra.mxu0 0.0
  %88 = vmatprep.subr.mxu0 0.0
  %89 = vmatpush1.msra.mxu0 0.0
  %90 = vmatprep.subr.mxu0 0.0
  %91 = vmatpush1.msra.mxu0 0.0
  %92 = vmatprep.subr.mxu0 0.0
  %93 = vmatpush1.msra.mxu0 0.0
  %94 = vmatprep.subr.mxu0 0.0
  %95 = vmatpush1.msra.mxu0 0.0
  %96 = vmatprep.subr.mxu0 0.0
  %97 = vmatpush1.msra.mxu0 0.0
  %98 = vmatprep.subr.mxu0 0.0
  %99 = vmatpush1.msra.mxu0 0.0
  %100 = vmatprep.mubr.f32.mxu0 0.0
  %101 = vmatmul.mubr.f32.gmra.mrb[0].mxu0 %v34
  %v102 = vpop.f32.mrb[0].mxu0
  %v103 = vadd.f32 0.0, %v102
  %v104 = vpop.f32.mrb[0].mxu0
  %v105 = vadd.f32 0.0, %v104
  %106 = vdwg.mxu0
  %v107 = vld [vmem:[%s2] sm:$0xff]
  %109 = vset.pattern.permute.xlu0 0
  %110 = vperm.xlu0 %109, %v107
  %v111 = vpop.permute.xlu0 %110
  %v113 = vmul.f32 %v103, %v111
  %v114 = vmul.f32 %v105, %v111
  %v115 = vld [vmem:[%s3] sm:$0xff]
  %117 = vset.pattern.permute.xlu0 0
  %118 = vperm.xlu0 %117, %v115
  %v119 = vpop.permute.xlu0 %118
  %v121 = vadd.f32 %v113, %v119
  %v122 = vadd.f32 %v114, %v119
  %v123 = vmax.f32 %v121, 0.0
  %v124 = vmax.f32 %v122, 0.0
  %v125 = vld [vmem:[%s4] sm:$0xff]
  %v126 = vld [vmem:[%s6] ss:$8 sm:$0x3]
  %128 = vset.pattern.permute.xlu0 0
  %129 = vperm.xlu0 %128, %v125
  %v130 = vpop.permute.xlu0 %129
  %v133 = vlaneseq
  %v134 = vshrl.u32 %v133, 7
  %v135 = vsub.s32 0, %v134
  %v136 = vrot.slane %v126, %v135
  %v137 = vlaneseq
  %v138 = vshrl.u32 %v137, 7
  %v139 = vsub.s32 1, %v138
  %v140 = vrot.slane %v126, %v139
  %v143 = vmul.f32 %v130, %v136
  %v144 = vmul.f32 %v130, %v140
  %s145 = scalar_lea.vmem %s6, 1
  %v146 = vld [vmem:[%s145] ss:$8 sm:$0x3]
  %147 = vset.pattern.permute.xlu0 1
  %148 = vperm.xlu0 %147, %v125
  %v149 = vpop.permute.xlu0 %148
  %v152 = vlaneseq
  %v153 = vshrl.u32 %v152, 7
  %v154 = vsub.s32 0, %v153
  %v155 = vrot.slane %v146, %v154
  %v156 = vlaneseq
  %v157 = vshrl.u32 %v156, 7
  %v158 = vsub.s32 1, %v157
  %v159 = vrot.slane %v146, %v158
  %v162 = vmul.f32 %v149, %v155
  %v163 = vmul.f32 %v149, %v159
  %s164 = scalar_lea.vmem %s6, 2
  %v165 = vld [vmem:[%s164] ss:$8 sm:$0x3]
  %166 = vset.pattern.permute.xlu0 2
  %167 = vperm.xlu0 %166, %v125
  %v168 = vpop.permute.xlu0 %167
  %v171 = vlaneseq
  %v172 = vshrl.u32 %v171, 7
  %v173 = vsub.s32 0, %v172
  %v174 = vrot.slane %v165, %v173
  %v175 = vlaneseq
  %v176 = vshrl.u32 %v175, 7
  %v177 = vsub.s32 1, %v176
  %v178 = vrot.slane %v165, %v177
  %v181 = vmul.f32 %v168, %v174
  %v182 = vmul.f32 %v168, %v178
  %s183 = scalar_lea.vmem %s6, 3
  %v184 = vld [vmem:[%s183] ss:$8 sm:$0x3]
  %185 = vset.pattern.permute.xlu0 3
  %186 = vperm.xlu0 %185, %v125
  %v187 = vpop.permute.xlu0 %186
  %v190 = vlaneseq
  %v191 = vshrl.u32 %v190, 7
  %v192 = vsub.s32 0, %v191
  %v193 = vrot.slane %v184, %v192
  %v194 = vlaneseq
  %v195 = vshrl.u32 %v194, 7
  %v196 = vsub.s32 1, %v195
  %v197 = vrot.slane %v184, %v196
  %v200 = vmul.f32 %v187, %v193
  %v201 = vmul.f32 %v187, %v197
  %s202 = scalar_lea.vmem %s6, 4
  %v203 = vld [vmem:[%s202] ss:$8 sm:$0x3]
  %204 = vset.pattern.permute.xlu0 4
  %205 = vperm.xlu0 %204, %v125
  %v206 = vpop.permute.xlu0 %205
  %v209 = vlaneseq
  %v210 = vshrl.u32 %v209, 7
  %v211 = vsub.s32 0, %v210
  %v212 = vrot.slane %v203, %v211
  %v213 = vlaneseq
  %v214 = vshrl.u32 %v213, 7
  %v215 = vsub.s32 1, %v214
  %v216 = vrot.slane %v203, %v215
  %v219 = vmul.f32 %v206, %v212
  %v220 = vmul.f32 %v206, %v216
  %s221 = scalar_lea.vmem %s6, 5
  %v222 = vld [vmem:[%s221] ss:$8 sm:$0x3]
  %223 = vset.pattern.permute.xlu0 5
  %224 = vperm.xlu0 %223, %v125
  %v225 = vpop.permute.xlu0 %224
  %v228 = vlaneseq
  %v229 = vshrl.u32 %v228, 7
  %v230 = vsub.s32 0, %v229
  %v231 = vrot.slane %v222, %v230
  %v232 = vlaneseq
  %v233 = vshrl.u32 %v232, 7
  %v234 = vsub.s32 1, %v233
  %v235 = vrot.slane %v222, %v234
  %v238 = vmul.f32 %v225, %v231
  %v239 = vmul.f32 %v225, %v235
  %s240 = scalar_lea.vmem %s6, 6
  %v241 = vld [vmem:[%s240] ss:$8 sm:$0x3]
  %242 = vset.pattern.permute.xlu0 6
  %243 = vperm.xlu0 %242, %v125
  %v244 = vpop.permute.xlu0 %243
  %v247 = vlaneseq
  %v248 = vshrl.u32 %v247, 7
  %v249 = vsub.s32 0, %v248
  %v250 = vrot.slane %v241, %v249
  %v251 = vlaneseq
  %v252 = vshrl.u32 %v251, 7
  %v253 = vsub.s32 1, %v252
  %v254 = vrot.slane %v241, %v253
  %v257 = vmul.f32 %v244, %v250
  %v258 = vmul.f32 %v244, %v254
  %s259 = scalar_lea.vmem %s6, 7
  %v260 = vld [vmem:[%s259] ss:$8 sm:$0x3]
  %261 = vset.pattern.permute.xlu0 7
  %262 = vperm.xlu0 %261, %v125
  %v263 = vpop.permute.xlu0 %262
  %v266 = vlaneseq
  %v267 = vshrl.u32 %v266, 7
  %v268 = vsub.s32 0, %v267
  %v269 = vrot.slane %v260, %v268
  %v270 = vlaneseq
  %v271 = vshrl.u32 %v270, 7
  %v272 = vsub.s32 1, %v271
  %v273 = vrot.slane %v260, %v272
  %v276 = vmul.f32 %v263, %v269
  %v277 = vmul.f32 %v263, %v273
  %s278 = scalar_lea.vmem %s6, 16
  %v279 = vld [vmem:[%s278] ss:$8 sm:$0x3]
  %280 = vset.pattern.permute.xlu0 8
  %281 = vperm.xlu0 %280, %v125
  %v282 = vpop.permute.xlu0 %281
  %v285 = vlaneseq
  %v286 = vshrl.u32 %v285, 7
  %v287 = vsub.s32 0, %v286
  %v288 = vrot.slane %v279, %v287
  %v289 = vlaneseq
  %v290 = vshrl.u32 %v289, 7
  %v291 = vsub.s32 1, %v290
  %v292 = vrot.slane %v279, %v291
  %v295 = vmul.f32 %v282, %v288
  %v296 = vmul.f32 %v282, %v292
  %298 = vrot.lane.b32.xlu0 %v124, 16
  %v299 = vpop.permute.xlu0 %298
  %302 = vrot.lane.b32.xlu0 %v123, 16
  %v303 = vpop.permute.xlu0 %302
  %vm304 = vcmask 130048
  %v305 = vsel %vm304, %v303, %v299
  %v308 = vsel %vm304, %v299, %v303
  %v309 = vmul.f32 %v308, %v219
  %v310 = vmul.f32 %v305, %v220
  %311 = vrot.lane.b32.xlu0 %v305, 17
  %v312 = vpop.permute.xlu0 %311
  %315 = vrot.lane.b32.xlu0 %v308, 17
  %v316 = vpop.permute.xlu0 %315
  %vm317 = vcmask 138240
  %v318 = vsel %vm317, %v316, %v312
  %v321 = vsel %vm317, %v312, %v316
  %v322 = vmul.f32 %v321, %v143
  %v323 = vmul.f32 %v318, %v144
  %v324 = vadd.f32 %v309, %v322
  %v325 = vadd.f32 %v310, %v323
  %326 = vrot.lane.b32.xlu0 %v305, 16
  %v327 = vpop.permute.xlu0 %326
  %329 = vrot.lane.b32.xlu0 %v308, 16
  %v330 = vpop.permute.xlu0 %329
  %v331 = vsel %vm304, %v330, %v327
  %v334 = vsel %vm304, %v327, %v330
  %v335 = vmul.f32 %v334, %v162
  %v336 = vmul.f32 %v331, %v163
  %v337 = vadd.f32 %v324, %v335
  %v338 = vadd.f32 %v325, %v336
  %339 = vrot.lane.b32.xlu0 %v305, 15
  %v340 = vpop.permute.xlu0 %339
  %342 = vrot.lane.b32.xlu0 %v308, 15
  %v343 = vpop.permute.xlu0 %342
  %vm344 = vcmask 121856
  %v345 = vsel %vm344, %v343, %v340
  %v348 = vsel %vm344, %v340, %v343
  %v349 = vmul.f32 %v348, %v181
  %v350 = vmul.f32 %v345, %v182
  %v351 = vadd.f32 %v337, %v349
  %v352 = vadd.f32 %v338, %v350
  %353 = vrot.lane.b32.xlu0 %v305, 1
  %v354 = vpop.permute.xlu0 %353
  %356 = vrot.lane.b32.xlu0 %v308, 1
  %v357 = vpop.permute.xlu0 %356
  %vm358 = vcmask 7168
  %v359 = vsel %vm358, %v357, %v354
  %v362 = vsel %vm358, %v354, %v357
  %v363 = vmul.f32 %v362, %v200
  %v364 = vmul.f32 %v359, %v201
  %v365 = vadd.f32 %v351, %v363
  %v366 = vadd.f32 %v352, %v364
  %367 = vrot.lane.b32.xlu0 %v308, 127
  %v368 = vpop.permute.xlu0 %367
  %369 = vrot.lane.b32.xlu0 %v305, 127
  %v370 = vpop.permute.xlu0 %369
  %vm371 = vcmask 1039360
  %v372 = vsel %vm371, %v368, %v370
  %v376 = vsel %vm371, %v370, %v368
  %v377 = vmul.f32 %v372, %v238
  %v378 = vmul.f32 %v376, %v239
  %v379 = vadd.f32 %v365, %v377
  %v380 = vadd.f32 %v366, %v378
  %381 = vrot.lane.b32.xlu0 %v308, 113
  %v382 = vpop.permute.xlu0 %381
  %383 = vrot.lane.b32.xlu0 %v305, 113
  %v384 = vpop.permute.xlu0 %383
  %vm385 = vcmask 924672
  %v386 = vsel %vm385, %v382, %v384
  %v390 = vsel %vm385, %v384, %v382
  %v391 = vmul.f32 %v386, %v257
  %v392 = vmul.f32 %v390, %v258
  %v393 = vadd.f32 %v379, %v391
  %v394 = vadd.f32 %v380, %v392
  %395 = vrot.lane.b32.xlu0 %v308, 112
  %v396 = vpop.permute.xlu0 %395
  %397 = vrot.lane.b32.xlu0 %v305, 112
  %v398 = vpop.permute.xlu0 %397
  %vm399 = vcmask 916480
  %v400 = vsel %vm399, %v396, %v398
  %v404 = vsel %vm399, %v398, %v396
  %v405 = vmul.f32 %v400, %v276
  %v406 = vmul.f32 %v404, %v277
  %v407 = vadd.f32 %v393, %v405
  %v408 = vadd.f32 %v394, %v406
  %409 = vrot.lane.b32.xlu0 %v308, 111
  %v410 = vpop.permute.xlu0 %409
  %411 = vrot.lane.b32.xlu0 %v305, 111
  %v412 = vpop.permute.xlu0 %411
  %vm413 = vcmask 908288
  %v414 = vsel %vm413, %v410, %v412
  %v418 = vsel %vm413, %v412, %v410
  %v419 = vmul.f32 %v414, %v295
  %v420 = vmul.f32 %v418, %v296
  %v421 = vadd.f32 %v407, %v419
  %v422 = vadd.f32 %v408, %v420
  %v423 = vld [vmem:[%s5] sm:$0xff]
  %425 = vset.pattern.permute.xlu0 0
  %426 = vperm.xlu0 %425, %v423
  %v427 = vpop.permute.xlu0 %426
  %v429 = vadd.f32 %v421, %v427
  %v430 = vadd.f32 %v422, %v427
  %v431 = vmax.f32 %v429, 0.0
  %v432 = vmax.f32 %v430, 0.0
  %v433 = vmul.f32 %v431, 0.07429727
  %v434 = vmul.f32 %v432, 0.07429727
  %v435 = vadd.f32 %v433, 0.0
  %v436 = vadd.f32 %v434, 0.0
  %437 = vrot.lane.b32.xlu0 %v124, 32
  %v438 = vpop.permute.xlu0 %437
  %440 = vrot.lane.b32.xlu0 %v123, 32
  %v441 = vpop.permute.xlu0 %440
  %vm442 = vcmask 261120
  %v443 = vsel %vm442, %v441, %v438
  %v446 = vsel %vm442, %v438, %v441
  %v447 = vmul.f32 %v446, %v219
  %v448 = vmul.f32 %v443, %v220
  %449 = vrot.lane.b32.xlu0 %v443, 17
  %v450 = vpop.permute.xlu0 %449
  %453 = vrot.lane.b32.xlu0 %v446, 17
  %v454 = vpop.permute.xlu0 %453
  %v455 = vsel %vm317, %v454, %v450
  %v458 = vsel %vm317, %v450, %v454
  %v459 = vmul.f32 %v458, %v143
  %v460 = vmul.f32 %v455, %v144
  %v461 = vadd.f32 %v447, %v459
  %v462 = vadd.f32 %v448, %v460
  %463 = vrot.lane.b32.xlu0 %v443, 16
  %v464 = vpop.permute.xlu0 %463
  %466 = vrot.lane.b32.xlu0 %v446, 16
  %v467 = vpop.permute.xlu0 %466
  %v468 = vsel %vm304, %v467, %v464
  %v471 = vsel %vm304, %v464, %v467
  %v472 = vmul.f32 %v471, %v162
  %v473 = vmul.f32 %v468, %v163
  %v474 = vadd.f32 %v461, %v472
  %v475 = vadd.f32 %v462, %v473
  %476 = vrot.lane.b32.xlu0 %v443, 15
  %v477 = vpop.permute.xlu0 %476
  %479 = vrot.lane.b32.xlu0 %v446, 15
  %v480 = vpop.permute.xlu0 %479
  %v481 = vsel %vm344, %v480, %v477
  %v484 = vsel %vm344, %v477, %v480
  %v485 = vmul.f32 %v484, %v181
  %v486 = vmul.f32 %v481, %v182
  %v487 = vadd.f32 %v474, %v485
  %v488 = vadd.f32 %v475, %v486
  %489 = vrot.lane.b32.xlu0 %v443, 1
  %v490 = vpop.permute.xlu0 %489
  %492 = vrot.lane.b32.xlu0 %v446, 1
  %v493 = vpop.permute.xlu0 %492
  %v494 = vsel %vm358, %v493, %v490
  %v497 = vsel %vm358, %v490, %v493
  %v498 = vmul.f32 %v497, %v200
  %v499 = vmul.f32 %v494, %v201
  %v500 = vadd.f32 %v487, %v498
  %v501 = vadd.f32 %v488, %v499
  %502 = vrot.lane.b32.xlu0 %v446, 127
  %v503 = vpop.permute.xlu0 %502
  %504 = vrot.lane.b32.xlu0 %v443, 127
  %v505 = vpop.permute.xlu0 %504
  %v506 = vsel %vm371, %v503, %v505
  %v510 = vsel %vm371, %v505, %v503
  %v511 = vmul.f32 %v506, %v238
  %v512 = vmul.f32 %v510, %v239
  %v513 = vadd.f32 %v500, %v511
  %v514 = vadd.f32 %v501, %v512
  %515 = vrot.lane.b32.xlu0 %v446, 113
  %v516 = vpop.permute.xlu0 %515
  %517 = vrot.lane.b32.xlu0 %v443, 113
  %v518 = vpop.permute.xlu0 %517
  %v519 = vsel %vm385, %v516, %v518
  %v523 = vsel %vm385, %v518, %v516
  %v524 = vmul.f32 %v519, %v257
  %v525 = vmul.f32 %v523, %v258
  %v526 = vadd.f32 %v513, %v524
  %v527 = vadd.f32 %v514, %v525
  %528 = vrot.lane.b32.xlu0 %v446, 112
  %v529 = vpop.permute.xlu0 %528
  %530 = vrot.lane.b32.xlu0 %v443, 112
  %v531 = vpop.permute.xlu0 %530
  %v532 = vsel %vm399, %v529, %v531
  %v536 = vsel %vm399, %v531, %v529
  %v537 = vmul.f32 %v532, %v276
  %v538 = vmul.f32 %v536, %v277
  %v539 = vadd.f32 %v526, %v537
  %v540 = vadd.f32 %v527, %v538
  %541 = vrot.lane.b32.xlu0 %v446, 111
  %v542 = vpop.permute.xlu0 %541
  %543 = vrot.lane.b32.xlu0 %v443, 111
  %v544 = vpop.permute.xlu0 %543
  %v545 = vsel %vm413, %v542, %v544
  %v549 = vsel %vm413, %v544, %v542
  %v550 = vmul.f32 %v545, %v295
  %v551 = vmul.f32 %v549, %v296
  %v552 = vadd.f32 %v539, %v550
  %v553 = vadd.f32 %v540, %v551
  %v554 = vadd.f32 %v552, %v427
  %v555 = vadd.f32 %v553, %v427
  %v556 = vmax.f32 %v554, 0.0
  %v557 = vmax.f32 %v555, 0.0
  %v558 = vmul.f32 %v556, 0.038145494
  %v559 = vmul.f32 %v557, 0.038145494
  %v560 = vadd.f32 %v435, %v558
  %v561 = vadd.f32 %v436, %v559
  %562 = vrot.lane.b32.xlu0 %v124, 48
  %v563 = vpop.permute.xlu0 %562
  %565 = vrot.lane.b32.xlu0 %v123, 48
  %v566 = vpop.permute.xlu0 %565
  %vm567 = vcmask 392192
  %v568 = vsel %vm567, %v566, %v563
  %v571 = vsel %vm567, %v563, %v566
  %v572 = vmul.f32 %v571, %v219
  %v573 = vmul.f32 %v568, %v220
  %574 = vrot.lane.b32.xlu0 %v568, 17
  %v575 = vpop.permute.xlu0 %574
  %578 = vrot.lane.b32.xlu0 %v571, 17
  %v579 = vpop.permute.xlu0 %578
  %v580 = vsel %vm317, %v579, %v575
  %v583 = vsel %vm317, %v575, %v579
  %v584 = vmul.f32 %v583, %v143
  %v585 = vmul.f32 %v580, %v144
  %v586 = vadd.f32 %v572, %v584
  %v587 = vadd.f32 %v573, %v585
  %588 = vrot.lane.b32.xlu0 %v568, 16
  %v589 = vpop.permute.xlu0 %588
  %591 = vrot.lane.b32.xlu0 %v571, 16
  %v592 = vpop.permute.xlu0 %591
  %v593 = vsel %vm304, %v592, %v589
  %v596 = vsel %vm304, %v589, %v592
  %v597 = vmul.f32 %v596, %v162
  %v598 = vmul.f32 %v593, %v163
  %v599 = vadd.f32 %v586, %v597
  %v600 = vadd.f32 %v587, %v598
  %601 = vrot.lane.b32.xlu0 %v568, 15
  %v602 = vpop.permute.xlu0 %601
  %604 = vrot.lane.b32.xlu0 %v571, 15
  %v605 = vpop.permute.xlu0 %604
  %v606 = vsel %vm344, %v605, %v602
  %v609 = vsel %vm344, %v602, %v605
  %v610 = vmul.f32 %v609, %v181
  %v611 = vmul.f32 %v606, %v182
  %v612 = vadd.f32 %v599, %v610
  %v613 = vadd.f32 %v600, %v611
  %614 = vrot.lane.b32.xlu0 %v568, 1
  %v615 = vpop.permute.xlu0 %614
  %617 = vrot.lane.b32.xlu0 %v571, 1
  %v618 = vpop.permute.xlu0 %617
  %v619 = vsel %vm358, %v618, %v615
  %v622 = vsel %vm358, %v615, %v618
  %v623 = vmul.f32 %v622, %v200
  %v624 = vmul.f32 %v619, %v201
  %v625 = vadd.f32 %v612, %v623
  %v626 = vadd.f32 %v613, %v624
  %627 = vrot.lane.b32.xlu0 %v571, 127
  %v628 = vpop.permute.xlu0 %627
  %629 = vrot.lane.b32.xlu0 %v568, 127
  %v630 = vpop.permute.xlu0 %629
  %v631 = vsel %vm371, %v628, %v630
  %v635 = vsel %vm371, %v630, %v628
  %v636 = vmul.f32 %v631, %v238
  %v637 = vmul.f32 %v635, %v239
  %v638 = vadd.f32 %v625, %v636
  %v639 = vadd.f32 %v626, %v637
  %640 = vrot.lane.b32.xlu0 %v571, 113
  %v641 = vpop.permute.xlu0 %640
  %642 = vrot.lane.b32.xlu0 %v568, 113
  %v643 = vpop.permute.xlu0 %642
  %v644 = vsel %vm385, %v641, %v643
  %v648 = vsel %vm385, %v643, %v641
  %v649 = vmul.f32 %v644, %v257
  %v650 = vmul.f32 %v648, %v258
  %v651 = vadd.f32 %v638, %v649
  %v652 = vadd.f32 %v639, %v650
  %653 = vrot.lane.b32.xlu0 %v571, 112
  %v654 = vpop.permute.xlu0 %653
  %655 = vrot.lane.b32.xlu0 %v568, 112
  %v656 = vpop.permute.xlu0 %655
  %v657 = vsel %vm399, %v654, %v656
  %v661 = vsel %vm399, %v656, %v654
  %v662 = vmul.f32 %v657, %v276
  %v663 = vmul.f32 %v661, %v277
  %v664 = vadd.f32 %v651, %v662
  %v665 = vadd.f32 %v652, %v663
  %666 = vrot.lane.b32.xlu0 %v571, 111
  %v667 = vpop.permute.xlu0 %666
  %668 = vrot.lane.b32.xlu0 %v568, 111
  %v669 = vpop.permute.xlu0 %668
  %v670 = vsel %vm413, %v667, %v669
  %v674 = vsel %vm413, %v669, %v667
  %v675 = vmul.f32 %v670, %v295
  %v676 = vmul.f32 %v674, %v296
  %v677 = vadd.f32 %v664, %v675
  %v678 = vadd.f32 %v665, %v676
  %v679 = vadd.f32 %v677, %v427
  %v680 = vadd.f32 %v678, %v427
  %v681 = vmax.f32 %v679, 0.0
  %v682 = vmax.f32 %v680, 0.0
  %v683 = vmul.f32 %v681, 0.012557229
  %v684 = vmul.f32 %v682, 0.012557229
  %v685 = vadd.f32 %v560, %v683
  %v686 = vadd.f32 %v561, %v684
  %687 = vrot.lane.b32.xlu0 %v123, 112
  %v688 = vpop.permute.xlu0 %687
  %689 = vrot.lane.b32.xlu0 %v124, 112
  %v690 = vpop.permute.xlu0 %689
  %v691 = vsel %vm399, %v688, %v690
  %v695 = vsel %vm399, %v690, %v688
  %v696 = vmul.f32 %v691, %v219
  %v697 = vmul.f32 %v695, %v220
  %699 = vrot.lane.b32.xlu0 %v695, 17
  %v700 = vpop.permute.xlu0 %699
  %702 = vrot.lane.b32.xlu0 %v691, 17
  %v703 = vpop.permute.xlu0 %702
  %v704 = vsel %vm317, %v703, %v700
  %v707 = vsel %vm317, %v700, %v703
  %v708 = vmul.f32 %v707, %v143
  %v709 = vmul.f32 %v704, %v144
  %v710 = vadd.f32 %v696, %v708
  %v711 = vadd.f32 %v697, %v709
  %712 = vrot.lane.b32.xlu0 %v695, 16
  %v713 = vpop.permute.xlu0 %712
  %715 = vrot.lane.b32.xlu0 %v691, 16
  %v716 = vpop.permute.xlu0 %715
  %v717 = vsel %vm304, %v716, %v713
  %v720 = vsel %vm304, %v713, %v716
  %v721 = vmul.f32 %v720, %v162
  %v722 = vmul.f32 %v717, %v163
  %v723 = vadd.f32 %v710, %v721
  %v724 = vadd.f32 %v711, %v722
  %725 = vrot.lane.b32.xlu0 %v695, 15
  %v726 = vpop.permute.xlu0 %725
  %728 = vrot.lane.b32.xlu0 %v691, 15
  %v729 = vpop.permute.xlu0 %728
  %v730 = vsel %vm344, %v729, %v726
  %v733 = vsel %vm344, %v726, %v729
  %v734 = vmul.f32 %v733, %v181
  %v735 = vmul.f32 %v730, %v182
  %v736 = vadd.f32 %v723, %v734
  %v737 = vadd.f32 %v724, %v735
  %738 = vrot.lane.b32.xlu0 %v695, 1
  %v739 = vpop.permute.xlu0 %738
  %741 = vrot.lane.b32.xlu0 %v691, 1
  %v742 = vpop.permute.xlu0 %741
  %v743 = vsel %vm358, %v742, %v739
  %v746 = vsel %vm358, %v739, %v742
  %v747 = vmul.f32 %v746, %v200
  %v748 = vmul.f32 %v743, %v201
  %v749 = vadd.f32 %v736, %v747
  %v750 = vadd.f32 %v737, %v748
  %751 = vrot.lane.b32.xlu0 %v691, 127
  %v752 = vpop.permute.xlu0 %751
  %753 = vrot.lane.b32.xlu0 %v695, 127
  %v754 = vpop.permute.xlu0 %753
  %v755 = vsel %vm371, %v752, %v754
  %v759 = vsel %vm371, %v754, %v752
  %v760 = vmul.f32 %v755, %v238
  %v761 = vmul.f32 %v759, %v239
  %v762 = vadd.f32 %v749, %v760
  %v763 = vadd.f32 %v750, %v761
  %764 = vrot.lane.b32.xlu0 %v691, 113
  %v765 = vpop.permute.xlu0 %764
  %766 = vrot.lane.b32.xlu0 %v695, 113
  %v767 = vpop.permute.xlu0 %766
  %v768 = vsel %vm385, %v765, %v767
  %v772 = vsel %vm385, %v767, %v765
  %v773 = vmul.f32 %v768, %v257
  %v774 = vmul.f32 %v772, %v258
  %v775 = vadd.f32 %v762, %v773
  %v776 = vadd.f32 %v763, %v774
  %777 = vrot.lane.b32.xlu0 %v691, 112
  %v778 = vpop.permute.xlu0 %777
  %779 = vrot.lane.b32.xlu0 %v695, 112
  %v780 = vpop.permute.xlu0 %779
  %v781 = vsel %vm399, %v778, %v780
  %v785 = vsel %vm399, %v780, %v778
  %v786 = vmul.f32 %v781, %v276
  %v787 = vmul.f32 %v785, %v277
  %v788 = vadd.f32 %v775, %v786
  %v789 = vadd.f32 %v776, %v787
  %790 = vrot.lane.b32.xlu0 %v691, 111
  %v791 = vpop.permute.xlu0 %790
  %792 = vrot.lane.b32.xlu0 %v695, 111
  %v793 = vpop.permute.xlu0 %792
  %v794 = vsel %vm413, %v791, %v793
  %v798 = vsel %vm413, %v793, %v791
  %v799 = vmul.f32 %v794, %v295
  %v800 = vmul.f32 %v798, %v296
  %v801 = vadd.f32 %v788, %v799
  %v802 = vadd.f32 %v789, %v800
  %v803 = vadd.f32 %v801, %v427
  %v804 = vadd.f32 %v802, %v427
  %v805 = vmax.f32 %v803, 0.0
  %v806 = vmax.f32 %v804, 0.0
  %v807 = vmul.f32 %v805, 0.07429727
  %v808 = vmul.f32 %v806, 0.07429727
  %v809 = vadd.f32 %v685, %v807
  %v810 = vadd.f32 %v686, %v808
  %811 = vrot.lane.b32.xlu0 %v123, 96
  %v812 = vpop.permute.xlu0 %811
  %813 = vrot.lane.b32.xlu0 %v124, 96
  %v814 = vpop.permute.xlu0 %813
  %vm815 = vcmask 785408
  %v816 = vsel %vm815, %v812, %v814
  %v820 = vsel %vm815, %v814, %v812
  %v821 = vmul.f32 %v816, %v219
  %v822 = vmul.f32 %v820, %v220
  %824 = vrot.lane.b32.xlu0 %v820, 17
  %v825 = vpop.permute.xlu0 %824
  %827 = vrot.lane.b32.xlu0 %v816, 17
  %v828 = vpop.permute.xlu0 %827
  %v829 = vsel %vm317, %v828, %v825
  %v832 = vsel %vm317, %v825, %v828
  %v833 = vmul.f32 %v832, %v143
  %v834 = vmul.f32 %v829, %v144
  %v835 = vadd.f32 %v821, %v833
  %v836 = vadd.f32 %v822, %v834
  %837 = vrot.lane.b32.xlu0 %v820, 16
  %v838 = vpop.permute.xlu0 %837
  %840 = vrot.lane.b32.xlu0 %v816, 16
  %v841 = vpop.permute.xlu0 %840
  %v842 = vsel %vm304, %v841, %v838
  %v845 = vsel %vm304, %v838, %v841
  %v846 = vmul.f32 %v845, %v162
  %v847 = vmul.f32 %v842, %v163
  %v848 = vadd.f32 %v835, %v846
  %v849 = vadd.f32 %v836, %v847
  %850 = vrot.lane.b32.xlu0 %v820, 15
  %v851 = vpop.permute.xlu0 %850
  %853 = vrot.lane.b32.xlu0 %v816, 15
  %v854 = vpop.permute.xlu0 %853
  %v855 = vsel %vm344, %v854, %v851
  %v858 = vsel %vm344, %v851, %v854
  %v859 = vmul.f32 %v858, %v181
  %v860 = vmul.f32 %v855, %v182
  %v861 = vadd.f32 %v848, %v859
  %v862 = vadd.f32 %v849, %v860
  %863 = vrot.lane.b32.xlu0 %v820, 1
  %v864 = vpop.permute.xlu0 %863
  %866 = vrot.lane.b32.xlu0 %v816, 1
  %v867 = vpop.permute.xlu0 %866
  %v868 = vsel %vm358, %v867, %v864
  %v871 = vsel %vm358, %v864, %v867
  %v872 = vmul.f32 %v871, %v200
  %v873 = vmul.f32 %v868, %v201
  %v874 = vadd.f32 %v861, %v872
  %v875 = vadd.f32 %v862, %v873
  %876 = vrot.lane.b32.xlu0 %v816, 127
  %v877 = vpop.permute.xlu0 %876
  %878 = vrot.lane.b32.xlu0 %v820, 127
  %v879 = vpop.permute.xlu0 %878
  %v880 = vsel %vm371, %v877, %v879
  %v884 = vsel %vm371, %v879, %v877
  %v885 = vmul.f32 %v880, %v238
  %v886 = vmul.f32 %v884, %v239
  %v887 = vadd.f32 %v874, %v885
  %v888 = vadd.f32 %v875, %v886
  %889 = vrot.lane.b32.xlu0 %v816, 113
  %v890 = vpop.permute.xlu0 %889
  %891 = vrot.lane.b32.xlu0 %v820, 113
  %v892 = vpop.permute.xlu0 %891
  %v893 = vsel %vm385, %v890, %v892
  %v897 = vsel %vm385, %v892, %v890
  %v898 = vmul.f32 %v893, %v257
  %v899 = vmul.f32 %v897, %v258
  %v900 = vadd.f32 %v887, %v898
  %v901 = vadd.f32 %v888, %v899
  %902 = vrot.lane.b32.xlu0 %v816, 112
  %v903 = vpop.permute.xlu0 %902
  %904 = vrot.lane.b32.xlu0 %v820, 112
  %v905 = vpop.permute.xlu0 %904
  %v906 = vsel %vm399, %v903, %v905
  %v910 = vsel %vm399, %v905, %v903
  %v911 = vmul.f32 %v906, %v276
  %v912 = vmul.f32 %v910, %v277
  %v913 = vadd.f32 %v900, %v911
  %v914 = vadd.f32 %v901, %v912
  %915 = vrot.lane.b32.xlu0 %v816, 111
  %v916 = vpop.permute.xlu0 %915
  %917 = vrot.lane.b32.xlu0 %v820, 111
  %v918 = vpop.permute.xlu0 %917
  %v919 = vsel %vm413, %v916, %v918
  %v923 = vsel %vm413, %v918, %v916
  %v924 = vmul.f32 %v919, %v295
  %v925 = vmul.f32 %v923, %v296
  %v926 = vadd.f32 %v913, %v924
  %v927 = vadd.f32 %v914, %v925
  %v928 = vadd.f32 %v926, %v427
  %v929 = vadd.f32 %v927, %v427
  %v930 = vmax.f32 %v928, 0.0
  %v931 = vmax.f32 %v929, 0.0
  %v932 = vmul.f32 %v930, 0.038145494
  %v933 = vmul.f32 %v931, 0.038145494
  %v934 = vadd.f32 %v809, %v932
  %v935 = vadd.f32 %v810, %v933
  %936 = vrot.lane.b32.xlu0 %v123, 80
  %v937 = vpop.permute.xlu0 %936
  %938 = vrot.lane.b32.xlu0 %v124, 80
  %v939 = vpop.permute.xlu0 %938
  %vm940 = vcmask 654336
  %v941 = vsel %vm940, %v937, %v939
  %v945 = vsel %vm940, %v939, %v937
  %v946 = vmul.f32 %v941, %v219
  %v947 = vmul.f32 %v945, %v220
  %949 = vrot.lane.b32.xlu0 %v945, 17
  %v950 = vpop.permute.xlu0 %949
  %952 = vrot.lane.b32.xlu0 %v941, 17
  %v953 = vpop.permute.xlu0 %952
  %v954 = vsel %vm317, %v953, %v950
  %v957 = vsel %vm317, %v950, %v953
  %v958 = vmul.f32 %v957, %v143
  %v959 = vmul.f32 %v954, %v144
  %v960 = vadd.f32 %v946, %v958
  %v961 = vadd.f32 %v947, %v959
  %962 = vrot.lane.b32.xlu0 %v945, 16
  %v963 = vpop.permute.xlu0 %962
  %965 = vrot.lane.b32.xlu0 %v941, 16
  %v966 = vpop.permute.xlu0 %965
  %v967 = vsel %vm304, %v966, %v963
  %v970 = vsel %vm304, %v963, %v966
  %v971 = vmul.f32 %v970, %v162
  %v972 = vmul.f32 %v967, %v163
  %v973 = vadd.f32 %v960, %v971
  %v974 = vadd.f32 %v961, %v972
  %975 = vrot.lane.b32.xlu0 %v945, 15
  %v976 = vpop.permute.xlu0 %975
  %978 = vrot.lane.b32.xlu0 %v941, 15
  %v979 = vpop.permute.xlu0 %978
  %v980 = vsel %vm344, %v979, %v976
  %v983 = vsel %vm344, %v976, %v979
  %v984 = vmul.f32 %v983, %v181
  %v985 = vmul.f32 %v980, %v182
  %v986 = vadd.f32 %v973, %v984
  %v987 = vadd.f32 %v974, %v985
  %988 = vrot.lane.b32.xlu0 %v945, 1
  %v989 = vpop.permute.xlu0 %988
  %991 = vrot.lane.b32.xlu0 %v941, 1
  %v992 = vpop.permute.xlu0 %991
  %v993 = vsel %vm358, %v992, %v989
  %v996 = vsel %vm358, %v989, %v992
  %v997 = vmul.f32 %v996, %v200
  %v998 = vmul.f32 %v993, %v201
  %v999 = vadd.f32 %v986, %v997
  %v1000 = vadd.f32 %v987, %v998
  %1001 = vrot.lane.b32.xlu0 %v941, 127
  %v1002 = vpop.permute.xlu0 %1001
  %1003 = vrot.lane.b32.xlu0 %v945, 127
  %v1004 = vpop.permute.xlu0 %1003
  %v1005 = vsel %vm371, %v1002, %v1004
  %v1009 = vsel %vm371, %v1004, %v1002
  %v1010 = vmul.f32 %v1005, %v238
  %v1011 = vmul.f32 %v1009, %v239
  %v1012 = vadd.f32 %v999, %v1010
  %v1013 = vadd.f32 %v1000, %v1011
  %1014 = vrot.lane.b32.xlu0 %v941, 113
  %v1015 = vpop.permute.xlu0 %1014
  %1016 = vrot.lane.b32.xlu0 %v945, 113
  %v1017 = vpop.permute.xlu0 %1016
  %v1018 = vsel %vm385, %v1015, %v1017
  %v1022 = vsel %vm385, %v1017, %v1015
  %v1023 = vmul.f32 %v1018, %v257
  %v1024 = vmul.f32 %v1022, %v258
  %v1025 = vadd.f32 %v1012, %v1023
  %v1026 = vadd.f32 %v1013, %v1024
  %1027 = vrot.lane.b32.xlu0 %v941, 112
  %v1028 = vpop.permute.xlu0 %1027
  %1029 = vrot.lane.b32.xlu0 %v945, 112
  %v1030 = vpop.permute.xlu0 %1029
  %v1031 = vsel %vm399, %v1028, %v1030
  %v1035 = vsel %vm399, %v1030, %v1028
  %v1036 = vmul.f32 %v1031, %v276
  %v1037 = vmul.f32 %v1035, %v277
  %v1038 = vadd.f32 %v1025, %v1036
  %v1039 = vadd.f32 %v1026, %v1037
  %1040 = vrot.lane.b32.xlu0 %v941, 111
  %v1041 = vpop.permute.xlu0 %1040
  %1042 = vrot.lane.b32.xlu0 %v945, 111
  %v1043 = vpop.permute.xlu0 %1042
  %v1044 = vsel %vm413, %v1041, %v1043
  %v1048 = vsel %vm413, %v1043, %v1041
  %v1049 = vmul.f32 %v1044, %v295
  %v1050 = vmul.f32 %v1048, %v296
  %v1051 = vadd.f32 %v1038, %v1049
  %v1052 = vadd.f32 %v1039, %v1050
  %v1053 = vadd.f32 %v1051, %v427
  %v1054 = vadd.f32 %v1052, %v427
  %v1055 = vmax.f32 %v1053, 0.0
  %v1056 = vmax.f32 %v1054, 0.0
  %v1057 = vmul.f32 %v1055, 0.012557229
  %v1058 = vmul.f32 %v1056, 0.012557229
  %v1059 = vadd.f32 %v934, %v1057
  %v1060 = vadd.f32 %v935, %v1058
  %1061 = vrot.lane.b32.xlu0 %v123, 127
  %v1062 = vpop.permute.xlu0 %1061
  %1063 = vrot.lane.b32.xlu0 %v124, 127
  %v1064 = vpop.permute.xlu0 %1063
  %v1065 = vsel %vm371, %v1062, %v1064
  %v1069 = vsel %vm371, %v1064, %v1062
  %1070 = vrot.lane.b32.xlu0 %v124, 15
  %v1071 = vpop.permute.xlu0 %1070
  %1073 = vrot.lane.b32.xlu0 %v123, 15
  %v1074 = vpop.permute.xlu0 %1073
  %v1075 = vsel %vm344, %v1074, %v1071
  %v1078 = vsel %vm344, %v1071, %v1074
  %s1079 = scalar_lea.vmem %s7, 6
  %v1080 = vld [vmem:[%s1079] ss:$8 sm:$0x3]
  %v1081 = vsub.f32 %v1078, %v1065
  %v1082 = vsub.f32 %v1075, %v1069
  %v1084 = vlaneseq
  %v1085 = vshrl.u32 %v1084, 7
  %v1086 = vsub.s32 0, %v1085
  %v1087 = vrot.slane %v1080, %v1086
  %v1088 = vlaneseq
  %v1089 = vshrl.u32 %v1088, 7
  %v1090 = vsub.s32 1, %v1089
  %v1091 = vrot.slane %v1080, %v1090
  %v1094 = vmul.f32 %v1081, %v1087
  %v1095 = vmul.f32 %v1082, %v1091
  %v1096 = vadd.f32 %v1065, %v1094
  %v1097 = vadd.f32 %v1069, %v1095
  %v1098 = vmul.f32 %v1096, %v219
  %v1099 = vmul.f32 %v1097, %v220
  %1101 = vrot.lane.b32.xlu0 %v1097, 17
  %v1102 = vpop.permute.xlu0 %1101
  %1105 = vrot.lane.b32.xlu0 %v1096, 17
  %v1106 = vpop.permute.xlu0 %1105
  %v1107 = vsel %vm317, %v1106, %v1102
  %v1110 = vsel %vm317, %v1102, %v1106
  %v1111 = vmul.f32 %v1110, %v143
  %v1112 = vmul.f32 %v1107, %v144
  %v1113 = vadd.f32 %v1098, %v1111
  %v1114 = vadd.f32 %v1099, %v1112
  %1115 = vrot.lane.b32.xlu0 %v1097, 16
  %v1116 = vpop.permute.xlu0 %1115
  %1118 = vrot.lane.b32.xlu0 %v1096, 16
  %v1119 = vpop.permute.xlu0 %1118
  %v1120 = vsel %vm304, %v1119, %v1116
  %v1123 = vsel %vm304, %v1116, %v1119
  %v1124 = vmul.f32 %v1123, %v162
  %v1125 = vmul.f32 %v1120, %v163
  %v1126 = vadd.f32 %v1113, %v1124
  %v1127 = vadd.f32 %v1114, %v1125
  %1128 = vrot.lane.b32.xlu0 %v1097, 15
  %v1129 = vpop.permute.xlu0 %1128
  %1131 = vrot.lane.b32.xlu0 %v1096, 15
  %v1132 = vpop.permute.xlu0 %1131
  %v1133 = vsel %vm344, %v1132, %v1129
  %v1136 = vsel %vm344, %v1129, %v1132
  %v1137 = vmul.f32 %v1136, %v181
  %v1138 = vmul.f32 %v1133, %v182
  %v1139 = vadd.f32 %v1126, %v1137
  %v1140 = vadd.f32 %v1127, %v1138
  %1141 = vrot.lane.b32.xlu0 %v1097, 1
  %v1142 = vpop.permute.xlu0 %1141
  %1144 = vrot.lane.b32.xlu0 %v1096, 1
  %v1145 = vpop.permute.xlu0 %1144
  %v1146 = vsel %vm358, %v1145, %v1142
  %v1149 = vsel %vm358, %v1142, %v1145
  %v1150 = vmul.f32 %v1149, %v200
  %v1151 = vmul.f32 %v1146, %v201
  %v1152 = vadd.f32 %v1139, %v1150
  %v1153 = vadd.f32 %v1140, %v1151
  %1154 = vrot.lane.b32.xlu0 %v1096, 127
  %v1155 = vpop.permute.xlu0 %1154
  %1156 = vrot.lane.b32.xlu0 %v1097, 127
  %v1157 = vpop.permute.xlu0 %1156
  %v1158 = vsel %vm371, %v1155, %v1157
  %v1162 = vsel %vm371, %v1157, %v1155
  %v1163 = vmul.f32 %v1158, %v238
  %v1164 = vmul.f32 %v1162, %v239
  %v1165 = vadd.f32 %v1152, %v1163
  %v1166 = vadd.f32 %v1153, %v1164
  %1167 = vrot.lane.b32.xlu0 %v1096, 113
  %v1168 = vpop.permute.xlu0 %1167
  %1169 = vrot.lane.b32.xlu0 %v1097, 113
  %v1170 = vpop.permute.xlu0 %1169
  %v1171 = vsel %vm385, %v1168, %v1170
  %v1175 = vsel %vm385, %v1170, %v1168
  %v1176 = vmul.f32 %v1171, %v257
  %v1177 = vmul.f32 %v1175, %v258
  %v1178 = vadd.f32 %v1165, %v1176
  %v1179 = vadd.f32 %v1166, %v1177
  %1180 = vrot.lane.b32.xlu0 %v1096, 112
  %v1181 = vpop.permute.xlu0 %1180
  %1182 = vrot.lane.b32.xlu0 %v1097, 112
  %v1183 = vpop.permute.xlu0 %1182
  %v1184 = vsel %vm399, %v1181, %v1183
  %v1188 = vsel %vm399, %v1183, %v1181
  %v1189 = vmul.f32 %v1184, %v276
  %v1190 = vmul.f32 %v1188, %v277
  %v1191 = vadd.f32 %v1178, %v1189
  %v1192 = vadd.f32 %v1179, %v1190
  %1193 = vrot.lane.b32.xlu0 %v1096, 111
  %v1194 = vpop.permute.xlu0 %1193
  %1195 = vrot.lane.b32.xlu0 %v1097, 111
  %v1196 = vpop.permute.xlu0 %1195
  %v1197 = vsel %vm413, %v1194, %v1196
  %v1201 = vsel %vm413, %v1196, %v1194
  %v1202 = vmul.f32 %v1197, %v295
  %v1203 = vmul.f32 %v1201, %v296
  %v1204 = vadd.f32 %v1191, %v1202
  %v1205 = vadd.f32 %v1192, %v1203
  %v1206 = vadd.f32 %v1204, %v427
  %v1207 = vadd.f32 %v1205, %v427
  %v1208 = vmax.f32 %v1206, 0.0
  %v1209 = vmax.f32 %v1207, 0.0
  %v1210 = vmul.f32 %v1208, 0.07429727
  %v1211 = vmul.f32 %v1209, 0.07429727
  %v1212 = vadd.f32 %v1059, %v1210
  %v1213 = vadd.f32 %v1060, %v1211
  %1214 = vrot.lane.b32.xlu0 %v123, 126
  %v1215 = vpop.permute.xlu0 %1214
  %1216 = vrot.lane.b32.xlu0 %v124, 126
  %v1217 = vpop.permute.xlu0 %1216
  %vm1218 = vcmask 1031168
  %v1219 = vsel %vm1218, %v1215, %v1217
  %v1223 = vsel %vm1218, %v1217, %v1215
  %1224 = vrot.lane.b32.xlu0 %v124, 14
  %v1225 = vpop.permute.xlu0 %1224
  %1227 = vrot.lane.b32.xlu0 %v123, 14
  %v1228 = vpop.permute.xlu0 %1227
  %vm1229 = vcmask 113664
  %v1230 = vsel %vm1229, %v1228, %v1225
  %v1233 = vsel %vm1229, %v1225, %v1228
  %s1234 = scalar_lea.vmem %s7, 7
  %v1235 = vld [vmem:[%s1234] ss:$8 sm:$0x3]
  %v1236 = vsub.f32 %v1233, %v1219
  %v1237 = vsub.f32 %v1230, %v1223
  %v1239 = vlaneseq
  %v1240 = vshrl.u32 %v1239, 7
  %v1241 = vsub.s32 0, %v1240
  %v1242 = vrot.slane %v1235, %v1241
  %v1243 = vlaneseq
  %v1244 = vshrl.u32 %v1243, 7
  %v1245 = vsub.s32 1, %v1244
  %v1246 = vrot.slane %v1235, %v1245
  %v1249 = vmul.f32 %v1236, %v1242
  %v1250 = vmul.f32 %v1237, %v1246
  %v1251 = vadd.f32 %v1219, %v1249
  %v1252 = vadd.f32 %v1223, %v1250
  %v1253 = vmul.f32 %v1251, %v219
  %v1254 = vmul.f32 %v1252, %v220
  %1256 = vrot.lane.b32.xlu0 %v1252, 17
  %v1257 = vpop.permute.xlu0 %1256
  %1260 = vrot.lane.b32.xlu0 %v1251, 17
  %v1261 = vpop.permute.xlu0 %1260
  %v1262 = vsel %vm317, %v1261, %v1257
  %v1265 = vsel %vm317, %v1257, %v1261
  %v1266 = vmul.f32 %v1265, %v143
  %v1267 = vmul.f32 %v1262, %v144
  %v1268 = vadd.f32 %v1253, %v1266
  %v1269 = vadd.f32 %v1254, %v1267
  %1270 = vrot.lane.b32.xlu0 %v1252, 16
  %v1271 = vpop.permute.xlu0 %1270
  %1273 = vrot.lane.b32.xlu0 %v1251, 16
  %v1274 = vpop.permute.xlu0 %1273
  %v1275 = vsel %vm304, %v1274, %v1271
  %v1278 = vsel %vm304, %v1271, %v1274
  %v1279 = vmul.f32 %v1278, %v162
  %v1280 = vmul.f32 %v1275, %v163
  %v1281 = vadd.f32 %v1268, %v1279
  %v1282 = vadd.f32 %v1269, %v1280
  %1283 = vrot.lane.b32.xlu0 %v1252, 15
  %v1284 = vpop.permute.xlu0 %1283
  %1286 = vrot.lane.b32.xlu0 %v1251, 15
  %v1287 = vpop.permute.xlu0 %1286
  %v1288 = vsel %vm344, %v1287, %v1284
  %v1291 = vsel %vm344, %v1284, %v1287
  %v1292 = vmul.f32 %v1291, %v181
  %v1293 = vmul.f32 %v1288, %v182
  %v1294 = vadd.f32 %v1281, %v1292
  %v1295 = vadd.f32 %v1282, %v1293
  %1296 = vrot.lane.b32.xlu0 %v1252, 1
  %v1297 = vpop.permute.xlu0 %1296
  %1299 = vrot.lane.b32.xlu0 %v1251, 1
  %v1300 = vpop.permute.xlu0 %1299
  %v1301 = vsel %vm358, %v1300, %v1297
  %v1304 = vsel %vm358, %v1297, %v1300
  %v1305 = vmul.f32 %v1304, %v200
  %v1306 = vmul.f32 %v1301, %v201
  %v1307 = vadd.f32 %v1294, %v1305
  %v1308 = vadd.f32 %v1295, %v1306
  %1309 = vrot.lane.b32.xlu0 %v1251, 127
  %v1310 = vpop.permute.xlu0 %1309
  %1311 = vrot.lane.b32.xlu0 %v1252, 127
  %v1312 = vpop.permute.xlu0 %1311
  %v1313 = vsel %vm371, %v1310, %v1312
  %v1317 = vsel %vm371, %v1312, %v1310
  %v1318 = vmul.f32 %v1313, %v238
  %v1319 = vmul.f32 %v1317, %v239
  %v1320 = vadd.f32 %v1307, %v1318
  %v1321 = vadd.f32 %v1308, %v1319
  %1322 = vrot.lane.b32.xlu0 %v1251, 113
  %v1323 = vpop.permute.xlu0 %1322
  %1324 = vrot.lane.b32.xlu0 %v1252, 113
  %v1325 = vpop.permute.xlu0 %1324
  %v1326 = vsel %vm385, %v1323, %v1325
  %v1330 = vsel %vm385, %v1325, %v1323
  %v1331 = vmul.f32 %v1326, %v257
  %v1332 = vmul.f32 %v1330, %v258
  %v1333 = vadd.f32 %v1320, %v1331
  %v1334 = vadd.f32 %v1321, %v1332
  %1335 = vrot.lane.b32.xlu0 %v1251, 112
  %v1336 = vpop.permute.xlu0 %1335
  %1337 = vrot.lane.b32.xlu0 %v1252, 112
  %v1338 = vpop.permute.xlu0 %1337
  %v1339 = vsel %vm399, %v1336, %v1338
  %v1343 = vsel %vm399, %v1338, %v1336
  %v1344 = vmul.f32 %v1339, %v276
  %v1345 = vmul.f32 %v1343, %v277
  %v1346 = vadd.f32 %v1333, %v1344
  %v1347 = vadd.f32 %v1334, %v1345
  %1348 = vrot.lane.b32.xlu0 %v1251, 111
  %v1349 = vpop.permute.xlu0 %1348
  %1350 = vrot.lane.b32.xlu0 %v1252, 111
  %v1351 = vpop.permute.xlu0 %1350
  %v1352 = vsel %vm413, %v1349, %v1351
  %v1356 = vsel %vm413, %v1351, %v1349
  %v1357 = vmul.f32 %v1352, %v295
  %v1358 = vmul.f32 %v1356, %v296
  %v1359 = vadd.f32 %v1346, %v1357
  %v1360 = vadd.f32 %v1347, %v1358
  %v1361 = vadd.f32 %v1359, %v427
  %v1362 = vadd.f32 %v1360, %v427
  %v1363 = vmax.f32 %v1361, 0.0
  %v1364 = vmax.f32 %v1362, 0.0
  %v1365 = vmul.f32 %v1363, 0.038145494
  %v1366 = vmul.f32 %v1364, 0.038145494
  %v1367 = vadd.f32 %v1212, %v1365
  %v1368 = vadd.f32 %v1213, %v1366
  %1369 = vrot.lane.b32.xlu0 %v123, 125
  %v1370 = vpop.permute.xlu0 %1369
  %1371 = vrot.lane.b32.xlu0 %v124, 125
  %v1372 = vpop.permute.xlu0 %1371
  %vm1373 = vcmask 1022976
  %v1374 = vsel %vm1373, %v1370, %v1372
  %v1378 = vsel %vm1373, %v1372, %v1370
  %1379 = vrot.lane.b32.xlu0 %v124, 13
  %v1380 = vpop.permute.xlu0 %1379
  %1382 = vrot.lane.b32.xlu0 %v123, 13
  %v1383 = vpop.permute.xlu0 %1382
  %vm1384 = vcmask 105472
  %v1385 = vsel %vm1384, %v1383, %v1380
  %v1388 = vsel %vm1384, %v1380, %v1383
  %s1389 = scalar_lea.vmem %s7, 16
  %v1390 = vld [vmem:[%s1389] ss:$8 sm:$0x3]
  %v1391 = vsub.f32 %v1388, %v1374
  %v1392 = vsub.f32 %v1385, %v1378
  %v1394 = vlaneseq
  %v1395 = vshrl.u32 %v1394, 7
  %v1396 = vsub.s32 0, %v1395
  %v1397 = vrot.slane %v1390, %v1396
  %v1398 = vlaneseq
  %v1399 = vshrl.u32 %v1398, 7
  %v1400 = vsub.s32 1, %v1399
  %v1401 = vrot.slane %v1390, %v1400
  %v1404 = vmul.f32 %v1391, %v1397
  %v1405 = vmul.f32 %v1392, %v1401
  %v1406 = vadd.f32 %v1374, %v1404
  %v1407 = vadd.f32 %v1378, %v1405
  %v1408 = vmul.f32 %v1406, %v219
  %v1409 = vmul.f32 %v1407, %v220
  %1411 = vrot.lane.b32.xlu0 %v1407, 17
  %v1412 = vpop.permute.xlu0 %1411
  %1415 = vrot.lane.b32.xlu0 %v1406, 17
  %v1416 = vpop.permute.xlu0 %1415
  %v1417 = vsel %vm317, %v1416, %v1412
  %v1420 = vsel %vm317, %v1412, %v1416
  %v1421 = vmul.f32 %v1420, %v143
  %v1422 = vmul.f32 %v1417, %v144
  %v1423 = vadd.f32 %v1408, %v1421
  %v1424 = vadd.f32 %v1409, %v1422
  %1425 = vrot.lane.b32.xlu0 %v1407, 16
  %v1426 = vpop.permute.xlu0 %1425
  %1428 = vrot.lane.b32.xlu0 %v1406, 16
  %v1429 = vpop.permute.xlu0 %1428
  %v1430 = vsel %vm304, %v1429, %v1426
  %v1433 = vsel %vm304, %v1426, %v1429
  %v1434 = vmul.f32 %v1433, %v162
  %v1435 = vmul.f32 %v1430, %v163
  %v1436 = vadd.f32 %v1423, %v1434
  %v1437 = vadd.f32 %v1424, %v1435
  %1438 = vrot.lane.b32.xlu0 %v1407, 15
  %v1439 = vpop.permute.xlu0 %1438
  %1441 = vrot.lane.b32.xlu0 %v1406, 15
  %v1442 = vpop.permute.xlu0 %1441
  %v1443 = vsel %vm344, %v1442, %v1439
  %v1446 = vsel %vm344, %v1439, %v1442
  %v1447 = vmul.f32 %v1446, %v181
  %v1448 = vmul.f32 %v1443, %v182
  %v1449 = vadd.f32 %v1436, %v1447
  %v1450 = vadd.f32 %v1437, %v1448
  %1451 = vrot.lane.b32.xlu0 %v1407, 1
  %v1452 = vpop.permute.xlu0 %1451
  %1454 = vrot.lane.b32.xlu0 %v1406, 1
  %v1455 = vpop.permute.xlu0 %1454
  %v1456 = vsel %vm358, %v1455, %v1452
  %v1459 = vsel %vm358, %v1452, %v1455
  %v1460 = vmul.f32 %v1459, %v200
  %v1461 = vmul.f32 %v1456, %v201
  %v1462 = vadd.f32 %v1449, %v1460
  %v1463 = vadd.f32 %v1450, %v1461
  %1464 = vrot.lane.b32.xlu0 %v1406, 127
  %v1465 = vpop.permute.xlu0 %1464
  %1466 = vrot.lane.b32.xlu0 %v1407, 127
  %v1467 = vpop.permute.xlu0 %1466
  %v1468 = vsel %vm371, %v1465, %v1467
  %v1472 = vsel %vm371, %v1467, %v1465
  %v1473 = vmul.f32 %v1468, %v238
  %v1474 = vmul.f32 %v1472, %v239
  %v1475 = vadd.f32 %v1462, %v1473
  %v1476 = vadd.f32 %v1463, %v1474
  %1477 = vrot.lane.b32.xlu0 %v1406, 113
  %v1478 = vpop.permute.xlu0 %1477
  %1479 = vrot.lane.b32.xlu0 %v1407, 113
  %v1480 = vpop.permute.xlu0 %1479
  %v1481 = vsel %vm385, %v1478, %v1480
  %v1485 = vsel %vm385, %v1480, %v1478
  %v1486 = vmul.f32 %v1481, %v257
  %v1487 = vmul.f32 %v1485, %v258
  %v1488 = vadd.f32 %v1475, %v1486
  %v1489 = vadd.f32 %v1476, %v1487
  %1490 = vrot.lane.b32.xlu0 %v1406, 112
  %v1491 = vpop.permute.xlu0 %1490
  %1492 = vrot.lane.b32.xlu0 %v1407, 112
  %v1493 = vpop.permute.xlu0 %1492
  %v1494 = vsel %vm399, %v1491, %v1493
  %v1498 = vsel %vm399, %v1493, %v1491
  %v1499 = vmul.f32 %v1494, %v276
  %v1500 = vmul.f32 %v1498, %v277
  %v1501 = vadd.f32 %v1488, %v1499
  %v1502 = vadd.f32 %v1489, %v1500
  %1503 = vrot.lane.b32.xlu0 %v1406, 111
  %v1504 = vpop.permute.xlu0 %1503
  %1505 = vrot.lane.b32.xlu0 %v1407, 111
  %v1506 = vpop.permute.xlu0 %1505
  %v1507 = vsel %vm413, %v1504, %v1506
  %v1511 = vsel %vm413, %v1506, %v1504
  %v1512 = vmul.f32 %v1507, %v295
  %v1513 = vmul.f32 %v1511, %v296
  %v1514 = vadd.f32 %v1501, %v1512
  %v1515 = vadd.f32 %v1502, %v1513
  %v1516 = vadd.f32 %v1514, %v427
  %v1517 = vadd.f32 %v1515, %v427
  %v1518 = vmax.f32 %v1516, 0.0
  %v1519 = vmax.f32 %v1517, 0.0
  %v1520 = vmul.f32 %v1518, 0.012557229
  %v1521 = vmul.f32 %v1519, 0.012557229
  %v1522 = vadd.f32 %v1367, %v1520
  %v1523 = vadd.f32 %v1368, %v1521
  %1524 = vrot.lane.b32.xlu0 %v124, 1
  %v1525 = vpop.permute.xlu0 %1524
  %1527 = vrot.lane.b32.xlu0 %v123, 1
  %v1528 = vpop.permute.xlu0 %1527
  %v1529 = vsel %vm358, %v1528, %v1525
  %v1532 = vsel %vm358, %v1525, %v1528
  %1533 = vrot.lane.b32.xlu0 %v123, 113
  %v1534 = vpop.permute.xlu0 %1533
  %1535 = vrot.lane.b32.xlu0 %v124, 113
  %v1536 = vpop.permute.xlu0 %1535
  %v1537 = vsel %vm385, %v1534, %v1536
  %v1541 = vsel %vm385, %v1536, %v1534
  %s1542 = scalar_lea.vmem %s7, 17
  %v1543 = vld [vmem:[%s1542] ss:$8 sm:$0x3]
  %v1544 = vsub.f32 %v1537, %v1532
  %v1545 = vsub.f32 %v1541, %v1529
  %v1547 = vlaneseq
  %v1548 = vshrl.u32 %v1547, 7
  %v1549 = vsub.s32 0, %v1548
  %v1550 = vrot.slane %v1543, %v1549
  %v1551 = vlaneseq
  %v1552 = vshrl.u32 %v1551, 7
  %v1553 = vsub.s32 1, %v1552
  %v1554 = vrot.slane %v1543, %v1553
  %v1557 = vmul.f32 %v1544, %v1550
  %v1558 = vmul.f32 %v1545, %v1554
  %v1559 = vadd.f32 %v1532, %v1557
  %v1560 = vadd.f32 %v1529, %v1558
  %v1561 = vmul.f32 %v1559, %v219
  %v1562 = vmul.f32 %v1560, %v220
  %1564 = vrot.lane.b32.xlu0 %v1560, 17
  %v1565 = vpop.permute.xlu0 %1564
  %1568 = vrot.lane.b32.xlu0 %v1559, 17
  %v1569 = vpop.permute.xlu0 %1568
  %v1570 = vsel %vm317, %v1569, %v1565
  %v1573 = vsel %vm317, %v1565, %v1569
  %v1574 = vmul.f32 %v1573, %v143
  %v1575 = vmul.f32 %v1570, %v144
  %v1576 = vadd.f32 %v1561, %v1574
  %v1577 = vadd.f32 %v1562, %v1575
  %1578 = vrot.lane.b32.xlu0 %v1560, 16
  %v1579 = vpop.permute.xlu0 %1578
  %1581 = vrot.lane.b32.xlu0 %v1559, 16
  %v1582 = vpop.permute.xlu0 %1581
  %v1583 = vsel %vm304, %v1582, %v1579
  %v1586 = vsel %vm304, %v1579, %v1582
  %v1587 = vmul.f32 %v1586, %v162
  %v1588 = vmul.f32 %v1583, %v163
  %v1589 = vadd.f32 %v1576, %v1587
  %v1590 = vadd.f32 %v1577, %v1588
  %1591 = vrot.lane.b32.xlu0 %v1560, 15
  %v1592 = vpop.permute.xlu0 %1591
  %1594 = vrot.lane.b32.xlu0 %v1559, 15
  %v1595 = vpop.permute.xlu0 %1594
  %v1596 = vsel %vm344, %v1595, %v1592
  %v1599 = vsel %vm344, %v1592, %v1595
  %v1600 = vmul.f32 %v1599, %v181
  %v1601 = vmul.f32 %v1596, %v182
  %v1602 = vadd.f32 %v1589, %v1600
  %v1603 = vadd.f32 %v1590, %v1601
  %1604 = vrot.lane.b32.xlu0 %v1560, 1
  %v1605 = vpop.permute.xlu0 %1604
  %1607 = vrot.lane.b32.xlu0 %v1559, 1
  %v1608 = vpop.permute.xlu0 %1607
  %v1609 = vsel %vm358, %v1608, %v1605
  %v1612 = vsel %vm358, %v1605, %v1608
  %v1613 = vmul.f32 %v1612, %v200
  %v1614 = vmul.f32 %v1609, %v201
  %v1615 = vadd.f32 %v1602, %v1613
  %v1616 = vadd.f32 %v1603, %v1614
  %1617 = vrot.lane.b32.xlu0 %v1559, 127
  %v1618 = vpop.permute.xlu0 %1617
  %1619 = vrot.lane.b32.xlu0 %v1560, 127
  %v1620 = vpop.permute.xlu0 %1619
  %v1621 = vsel %vm371, %v1618, %v1620
  %v1625 = vsel %vm371, %v1620, %v1618
  %v1626 = vmul.f32 %v1621, %v238
  %v1627 = vmul.f32 %v1625, %v239
  %v1628 = vadd.f32 %v1615, %v1626
  %v1629 = vadd.f32 %v1616, %v1627
  %1630 = vrot.lane.b32.xlu0 %v1559, 113
  %v1631 = vpop.permute.xlu0 %1630
  %1632 = vrot.lane.b32.xlu0 %v1560, 113
  %v1633 = vpop.permute.xlu0 %1632
  %v1634 = vsel %vm385, %v1631, %v1633
  %v1638 = vsel %vm385, %v1633, %v1631
  %v1639 = vmul.f32 %v1634, %v257
  %v1640 = vmul.f32 %v1638, %v258
  %v1641 = vadd.f32 %v1628, %v1639
  %v1642 = vadd.f32 %v1629, %v1640
  %1643 = vrot.lane.b32.xlu0 %v1559, 112
  %v1644 = vpop.permute.xlu0 %1643
  %1645 = vrot.lane.b32.xlu0 %v1560, 112
  %v1646 = vpop.permute.xlu0 %1645
  %v1647 = vsel %vm399, %v1644, %v1646
  %v1651 = vsel %vm399, %v1646, %v1644
  %v1652 = vmul.f32 %v1647, %v276
  %v1653 = vmul.f32 %v1651, %v277
  %v1654 = vadd.f32 %v1641, %v1652
  %v1655 = vadd.f32 %v1642, %v1653
  %1656 = vrot.lane.b32.xlu0 %v1559, 111
  %v1657 = vpop.permute.xlu0 %1656
  %1658 = vrot.lane.b32.xlu0 %v1560, 111
  %v1659 = vpop.permute.xlu0 %1658
  %v1660 = vsel %vm413, %v1657, %v1659
  %v1664 = vsel %vm413, %v1659, %v1657
  %v1665 = vmul.f32 %v1660, %v295
  %v1666 = vmul.f32 %v1664, %v296
  %v1667 = vadd.f32 %v1654, %v1665
  %v1668 = vadd.f32 %v1655, %v1666
  %v1669 = vadd.f32 %v1667, %v427
  %v1670 = vadd.f32 %v1668, %v427
  %v1671 = vmax.f32 %v1669, 0.0
  %v1672 = vmax.f32 %v1670, 0.0
  %v1673 = vmul.f32 %v1671, 0.07429727
  %v1674 = vmul.f32 %v1672, 0.07429727
  %v1675 = vadd.f32 %v1522, %v1673
  %v1676 = vadd.f32 %v1523, %v1674
  %1677 = vrot.lane.b32.xlu0 %v124, 2
  %v1678 = vpop.permute.xlu0 %1677
  %1680 = vrot.lane.b32.xlu0 %v123, 2
  %v1681 = vpop.permute.xlu0 %1680
  %vm1682 = vcmask 15360
  %v1683 = vsel %vm1682, %v1681, %v1678
  %v1686 = vsel %vm1682, %v1678, %v1681
  %1687 = vrot.lane.b32.xlu0 %v123, 114
  %v1688 = vpop.permute.xlu0 %1687
  %1689 = vrot.lane.b32.xlu0 %v124, 114
  %v1690 = vpop.permute.xlu0 %1689
  %vm1691 = vcmask 932864
  %v1692 = vsel %vm1691, %v1688, %v1690
  %v1696 = vsel %vm1691, %v1690, %v1688
  %s1697 = scalar_lea.vmem %s7, 18
  %v1698 = vld [vmem:[%s1697] ss:$8 sm:$0x3]
  %v1699 = vsub.f32 %v1692, %v1686
  %v1700 = vsub.f32 %v1696, %v1683
  %v1702 = vlaneseq
  %v1703 = vshrl.u32 %v1702, 7
  %v1704 = vsub.s32 0, %v1703
  %v1705 = vrot.slane %v1698, %v1704
  %v1706 = vlaneseq
  %v1707 = vshrl.u32 %v1706, 7
  %v1708 = vsub.s32 1, %v1707
  %v1709 = vrot.slane %v1698, %v1708
  %v1712 = vmul.f32 %v1699, %v1705
  %v1713 = vmul.f32 %v1700, %v1709
  %v1714 = vadd.f32 %v1686, %v1712
  %v1715 = vadd.f32 %v1683, %v1713
  %v1716 = vmul.f32 %v1714, %v219
  %v1717 = vmul.f32 %v1715, %v220
  %1719 = vrot.lane.b32.xlu0 %v1715, 17
  %v1720 = vpop.permute.xlu0 %1719
  %1723 = vrot.lane.b32.xlu0 %v1714, 17
  %v1724 = vpop.permute.xlu0 %1723
  %v1725 = vsel %vm317, %v1724, %v1720
  %v1728 = vsel %vm317, %v1720, %v1724
  %v1729 = vmul.f32 %v1728, %v143
  %v1730 = vmul.f32 %v1725, %v144
  %v1731 = vadd.f32 %v1716, %v1729
  %v1732 = vadd.f32 %v1717, %v1730
  %1733 = vrot.lane.b32.xlu0 %v1715, 16
  %v1734 = vpop.permute.xlu0 %1733
  %1736 = vrot.lane.b32.xlu0 %v1714, 16
  %v1737 = vpop.permute.xlu0 %1736
  %v1738 = vsel %vm304, %v1737, %v1734
  %v1741 = vsel %vm304, %v1734, %v1737
  %v1742 = vmul.f32 %v1741, %v162
  %v1743 = vmul.f32 %v1738, %v163
  %v1744 = vadd.f32 %v1731, %v1742
  %v1745 = vadd.f32 %v1732, %v1743
  %1746 = vrot.lane.b32.xlu0 %v1715, 15
  %v1747 = vpop.permute.xlu0 %1746
  %1749 = vrot.lane.b32.xlu0 %v1714, 15
  %v1750 = vpop.permute.xlu0 %1749
  %v1751 = vsel %vm344, %v1750, %v1747
  %v1754 = vsel %vm344, %v1747, %v1750
  %v1755 = vmul.f32 %v1754, %v181
  %v1756 = vmul.f32 %v1751, %v182
  %v1757 = vadd.f32 %v1744, %v1755
  %v1758 = vadd.f32 %v1745, %v1756
  %1759 = vrot.lane.b32.xlu0 %v1715, 1
  %v1760 = vpop.permute.xlu0 %1759
  %1762 = vrot.lane.b32.xlu0 %v1714, 1
  %v1763 = vpop.permute.xlu0 %1762
  %v1764 = vsel %vm358, %v1763, %v1760
  %v1767 = vsel %vm358, %v1760, %v1763
  %v1768 = vmul.f32 %v1767, %v200
  %v1769 = vmul.f32 %v1764, %v201
  %v1770 = vadd.f32 %v1757, %v1768
  %v1771 = vadd.f32 %v1758, %v1769
  %1772 = vrot.lane.b32.xlu0 %v1714, 127
  %v1773 = vpop.permute.xlu0 %1772
  %1774 = vrot.lane.b32.xlu0 %v1715, 127
  %v1775 = vpop.permute.xlu0 %1774
  %v1776 = vsel %vm371, %v1773, %v1775
  %v1780 = vsel %vm371, %v1775, %v1773
  %v1781 = vmul.f32 %v1776, %v238
  %v1782 = vmul.f32 %v1780, %v239
  %v1783 = vadd.f32 %v1770, %v1781
  %v1784 = vadd.f32 %v1771, %v1782
  %1785 = vrot.lane.b32.xlu0 %v1714, 113
  %v1786 = vpop.permute.xlu0 %1785
  %1787 = vrot.lane.b32.xlu0 %v1715, 113
  %v1788 = vpop.permute.xlu0 %1787
  %v1789 = vsel %vm385, %v1786, %v1788
  %v1793 = vsel %vm385, %v1788, %v1786
  %v1794 = vmul.f32 %v1789, %v257
  %v1795 = vmul.f32 %v1793, %v258
  %v1796 = vadd.f32 %v1783, %v1794
  %v1797 = vadd.f32 %v1784, %v1795
  %1798 = vrot.lane.b32.xlu0 %v1714, 112
  %v1799 = vpop.permute.xlu0 %1798
  %1800 = vrot.lane.b32.xlu0 %v1715, 112
  %v1801 = vpop.permute.xlu0 %1800
  %v1802 = vsel %vm399, %v1799, %v1801
  %v1806 = vsel %vm399, %v1801, %v1799
  %v1807 = vmul.f32 %v1802, %v276
  %v1808 = vmul.f32 %v1806, %v277
  %v1809 = vadd.f32 %v1796, %v1807
  %v1810 = vadd.f32 %v1797, %v1808
  %1811 = vrot.lane.b32.xlu0 %v1714, 111
  %v1812 = vpop.permute.xlu0 %1811
  %1813 = vrot.lane.b32.xlu0 %v1715, 111
  %v1814 = vpop.permute.xlu0 %1813
  %v1815 = vsel %vm413, %v1812, %v1814
  %v1819 = vsel %vm413, %v1814, %v1812
  %v1820 = vmul.f32 %v1815, %v295
  %v1821 = vmul.f32 %v1819, %v296
  %v1822 = vadd.f32 %v1809, %v1820
  %v1823 = vadd.f32 %v1810, %v1821
  %v1824 = vadd.f32 %v1822, %v427
  %v1825 = vadd.f32 %v1823, %v427
  %v1826 = vmax.f32 %v1824, 0.0
  %v1827 = vmax.f32 %v1825, 0.0
  %v1828 = vmul.f32 %v1826, 0.038145494
  %v1829 = vmul.f32 %v1827, 0.038145494
  %v1830 = vadd.f32 %v1675, %v1828
  %v1831 = vadd.f32 %v1676, %v1829
  %1832 = vrot.lane.b32.xlu0 %v124, 3
  %v1833 = vpop.permute.xlu0 %1832
  %1835 = vrot.lane.b32.xlu0 %v123, 3
  %v1836 = vpop.permute.xlu0 %1835
  %vm1837 = vcmask 23552
  %v1838 = vsel %vm1837, %v1836, %v1833
  %v1841 = vsel %vm1837, %v1833, %v1836
  %1842 = vrot.lane.b32.xlu0 %v123, 115
  %v1843 = vpop.permute.xlu0 %1842
  %1844 = vrot.lane.b32.xlu0 %v124, 115
  %v1845 = vpop.permute.xlu0 %1844
  %vm1846 = vcmask 941056
  %v1847 = vsel %vm1846, %v1843, %v1845
  %v1851 = vsel %vm1846, %v1845, %v1843
  %s1852 = scalar_lea.vmem %s7, 19
  %v1853 = vld [vmem:[%s1852] ss:$8 sm:$0x3]
  %v1854 = vsub.f32 %v1847, %v1841
  %v1855 = vsub.f32 %v1851, %v1838
  %v1857 = vlaneseq
  %v1858 = vshrl.u32 %v1857, 7
  %v1859 = vsub.s32 0, %v1858
  %v1860 = vrot.slane %v1853, %v1859
  %v1861 = vlaneseq
  %v1862 = vshrl.u32 %v1861, 7
  %v1863 = vsub.s32 1, %v1862
  %v1864 = vrot.slane %v1853, %v1863
  %v1867 = vmul.f32 %v1854, %v1860
  %v1868 = vmul.f32 %v1855, %v1864
  %v1869 = vadd.f32 %v1841, %v1867
  %v1870 = vadd.f32 %v1838, %v1868
  %v1871 = vmul.f32 %v1869, %v219
  %v1872 = vmul.f32 %v1870, %v220
  %1874 = vrot.lane.b32.xlu0 %v1870, 17
  %v1875 = vpop.permute.xlu0 %1874
  %1878 = vrot.lane.b32.xlu0 %v1869, 17
  %v1879 = vpop.permute.xlu0 %1878
  %v1880 = vsel %vm317, %v1879, %v1875
  %v1883 = vsel %vm317, %v1875, %v1879
  %v1884 = vmul.f32 %v1883, %v143
  %v1885 = vmul.f32 %v1880, %v144
  %v1886 = vadd.f32 %v1871, %v1884
  %v1887 = vadd.f32 %v1872, %v1885
  %1888 = vrot.lane.b32.xlu0 %v1870, 16
  %v1889 = vpop.permute.xlu0 %1888
  %1891 = vrot.lane.b32.xlu0 %v1869, 16
  %v1892 = vpop.permute.xlu0 %1891
  %v1893 = vsel %vm304, %v1892, %v1889
  %v1896 = vsel %vm304, %v1889, %v1892
  %v1897 = vmul.f32 %v1896, %v162
  %v1898 = vmul.f32 %v1893, %v163
  %v1899 = vadd.f32 %v1886, %v1897
  %v1900 = vadd.f32 %v1887, %v1898
  %1901 = vrot.lane.b32.xlu0 %v1870, 15
  %v1902 = vpop.permute.xlu0 %1901
  %1904 = vrot.lane.b32.xlu0 %v1869, 15
  %v1905 = vpop.permute.xlu0 %1904
  %v1906 = vsel %vm344, %v1905, %v1902
  %v1909 = vsel %vm344, %v1902, %v1905
  %v1910 = vmul.f32 %v1909, %v181
  %v1911 = vmul.f32 %v1906, %v182
  %v1912 = vadd.f32 %v1899, %v1910
  %v1913 = vadd.f32 %v1900, %v1911
  %1914 = vrot.lane.b32.xlu0 %v1870, 1
  %v1915 = vpop.permute.xlu0 %1914
  %1917 = vrot.lane.b32.xlu0 %v1869, 1
  %v1918 = vpop.permute.xlu0 %1917
  %v1919 = vsel %vm358, %v1918, %v1915
  %v1922 = vsel %vm358, %v1915, %v1918
  %v1923 = vmul.f32 %v1922, %v200
  %v1924 = vmul.f32 %v1919, %v201
  %v1925 = vadd.f32 %v1912, %v1923
  %v1926 = vadd.f32 %v1913, %v1924
  %1927 = vrot.lane.b32.xlu0 %v1869, 127
  %v1928 = vpop.permute.xlu0 %1927
  %1929 = vrot.lane.b32.xlu0 %v1870, 127
  %v1930 = vpop.permute.xlu0 %1929
  %v1931 = vsel %vm371, %v1928, %v1930
  %v1935 = vsel %vm371, %v1930, %v1928
  %v1936 = vmul.f32 %v1931, %v238
  %v1937 = vmul.f32 %v1935, %v239
  %v1938 = vadd.f32 %v1925, %v1936
  %v1939 = vadd.f32 %v1926, %v1937
  %1940 = vrot.lane.b32.xlu0 %v1869, 113
  %v1941 = vpop.permute.xlu0 %1940
  %1942 = vrot.lane.b32.xlu0 %v1870, 113
  %v1943 = vpop.permute.xlu0 %1942
  %v1944 = vsel %vm385, %v1941, %v1943
  %v1948 = vsel %vm385, %v1943, %v1941
  %v1949 = vmul.f32 %v1944, %v257
  %v1950 = vmul.f32 %v1948, %v258
  %v1951 = vadd.f32 %v1938, %v1949
  %v1952 = vadd.f32 %v1939, %v1950
  %1953 = vrot.lane.b32.xlu0 %v1869, 112
  %v1954 = vpop.permute.xlu0 %1953
  %1955 = vrot.lane.b32.xlu0 %v1870, 112
  %v1956 = vpop.permute.xlu0 %1955
  %v1957 = vsel %vm399, %v1954, %v1956
  %v1961 = vsel %vm399, %v1956, %v1954
  %v1962 = vmul.f32 %v1957, %v276
  %v1963 = vmul.f32 %v1961, %v277
  %v1964 = vadd.f32 %v1951, %v1962
  %v1965 = vadd.f32 %v1952, %v1963
  %1966 = vrot.lane.b32.xlu0 %v1869, 111
  %v1967 = vpop.permute.xlu0 %1966
  %1968 = vrot.lane.b32.xlu0 %v1870, 111
  %v1969 = vpop.permute.xlu0 %1968
  %v1970 = vsel %vm413, %v1967, %v1969
  %v1974 = vsel %vm413, %v1969, %v1967
  %v1975 = vmul.f32 %v1970, %v295
  %v1976 = vmul.f32 %v1974, %v296
  %v1977 = vadd.f32 %v1964, %v1975
  %v1978 = vadd.f32 %v1965, %v1976
  %v1979 = vadd.f32 %v1977, %v427
  %v1980 = vadd.f32 %v1978, %v427
  %v1981 = vmax.f32 %v1979, 0.0
  %v1982 = vmax.f32 %v1980, 0.0
  %v1983 = vmul.f32 %v1981, 0.012557229
  %v1984 = vmul.f32 %v1982, 0.012557229
  %v1985 = vadd.f32 %v1830, %v1983
  %v1986 = vadd.f32 %v1831, %v1984
  %v1987 = vadd.f32 %v29, %v1985
  %v1988 = vadd.f32 %v30, %v1986
  %1989 = vst [vmem:[%s8] sm:$0xff] %v1987
  %1990 = vst [vmem:[%s8 + $0x8] sm:$0xff] %v1988
  // Predicated region
  $region34: #{resa_forward.1} parent=0 // pred_check
    _
  $region35: #{resa_forward.1} parent=0 // pred_check_branch
    %1992 = sbr.rel (0) target = $region37
  $region36: #{resa_forward.1} parent=0 // pred_region
    _
  $region37: #{resa_forward.1} parent=0 // pred_fallthru
    _
  // Predicated region
  $region38: #{resa_forward.1} parent=0 // pred_check
    _
  $region39: #{resa_forward.1} parent=0 // pred_check_branch
    %1994 = sbr.rel (0) target = $region41
  $region40: #{resa_forward.1} parent=0 // pred_region
    _
  $region41: #{resa_forward.1} parent=0 // pred_fallthru
    _

</llo_original>
